<compile_context>
chip_gen: v7x
topology: tpu7x:2x2x1
jax: 0.10.0
libtpu: 0.0.40
codegen_flags: <defaults>
</compile_context>

<pallas_src>
import functools

import jax
import jax.numpy as jnp
from jax.experimental import pallas as pl
from jax.experimental.pallas import tpu as pltpu


# ----------------------------------------------------------------------------
# in-kernel math helpers (f32)
# ----------------------------------------------------------------------------
def _layernorm(x, gamma, beta, eps=1e-5):
    mean = jnp.mean(x, axis=-1, keepdims=True)
    c = x - mean
    var = jnp.mean(c * c, axis=-1, keepdims=True)
    return c * jax.lax.rsqrt(var + eps) * gamma + beta


def _gelu(x):
    # TODO(synk): tanh-approx GELU; torch nn.GELU() default is the exact erf form.
    return 0.5 * x * (1.0 + jnp.tanh(0.7978845608028654 * (x + 0.044715 * x * x * x)))


# ----------------------------------------------------------------------------
# fully fused kernel: embed -> L transformer blocks -> action head
# ----------------------------------------------------------------------------
def dt_fused_kernel(states_ref, actions_ref, rtg_ref, time_ref,
                    ws_ref, bs_ref, wa_ref, ba_ref, wr_ref, br_ref, enw_ref, enb_ref,
                    small_ref, bqkv_ref, b1_ref, wqkv_ref, wo_ref, w1_ref, w2_ref,
                    onw_ref, onb_ref, hw_ref, hb_ref,
                    o_ref, h_ref, *, num_heads, max_action):
    layer = pl.program_id(1)
    n_layers = pl.num_programs(1)

    Bb, T, D = time_ref.shape
    L = 3 * T
    H = num_heads
    hd = D // H
    bf16 = jnp.bfloat16
    f32 = jnp.float32

    # ---------------- layer 0: embeddings + emb_norm into the resident scratch -------
    @pl.when(layer == 0)
    def _():
        S_in = states_ref.shape[-1]
        A_in = actions_ref.shape[-1]
        t = time_ref[...]                                   # (Bb, T, D) f32
        gw, gb = enw_ref[...], enb_ref[...]                 # (1, D)

        ret = rtg_ref[...] * wr_ref[...] + br_ref[...] + t  # nn.Linear(1, D)
        st = (jnp.dot(states_ref[...].reshape(Bb * T, S_in).astype(bf16), ws_ref[...],
                      preferred_element_type=f32).reshape(Bb, T, D)
              + bs_ref[...] + t)
        ac = (jnp.dot(actions_ref[...].reshape(Bb * T, A_in).astype(bf16), wa_ref[...],
                      preferred_element_type=f32).reshape(Bb, T, D)
              + ba_ref[...] + t)

        # grouped token layout [returns | states | actions]; emb_norm fused (per-token).
        h_ref[:, 0:T, :] = _layernorm(ret, gw, gb)
        h_ref[:, T:2 * T, :] = _layernorm(st, gw, gb)
        h_ref[:, 2 * T:3 * T, :] = _layernorm(ac, gw, gb)

    # ---------------- transformer block (runs every layer step) ----------------------
    x = h_ref[...]                                          # (Bb, L, D) f32
    sm = small_ref[0]                                       # (6, D) packed f32 params
    ln1w, ln1b = sm[0:1], sm[1:2]
    ln2w, ln2b = sm[2:3], sm[3:4]
    bo, b2 = sm[4:5], sm[5:6]

    # --- self attention (pre-norm), fused QKV projection ---
    nx = _layernorm(x, ln1w, ln1b)
    qkv = (jnp.dot(nx.reshape(Bb * L, D).astype(bf16), wqkv_ref[0],
                   preferred_element_type=f32) + bqkv_ref[0]).reshape(Bb, L, 3 * D)

    # causal mask for the grouped layout, built in-kernel (no HBM (L,L) array):
    # token g = c*T + t (c in {ret,state,act}) sits at interleaved position p = 3*t + c.
    qi = jax.lax.broadcasted_iota(jnp.int32, (L, L), 0)
    ki = jax.lax.broadcasted_iota(jnp.int32, (L, L), 1)
    cq = (qi >= T).astype(jnp.int32) + (qi >= 2 * T).astype(jnp.int32)
    ck = (ki >= T).astype(jnp.int32) + (ki >= 2 * T).astype(jnp.int32)
    allowed = (3 * ki - ck * (3 * T - 1)) <= (3 * qi - cq * (3 * T - 1))

    scale = 1.0 / float(hd) ** 0.5
    head_outs = []
    for hh in range(H):                                     # H is small & static
        q = qkv[:, :, hh * hd:(hh + 1) * hd]
        k = qkv[:, :, D + hh * hd:D + (hh + 1) * hd]
        v = qkv[:, :, 2 * D + hh * hd:2 * D + (hh + 1) * hd]
        s = jnp.einsum('bqd,bkd->bqk', (q * scale).astype(bf16), k.astype(bf16),
                       preferred_element_type=f32)          # (Bb, L, L) f32
        s = jnp.where(allowed, s, jnp.float32(-1e30))
        m = jnp.max(s, axis=-1, keepdims=True)
        e = jnp.exp(s - m)
        p = e * pl.reciprocal(jnp.sum(e, axis=-1, keepdims=True), approx=True)
        head_outs.append(jnp.einsum('bqk,bkd->bqd', p.astype(bf16), v.astype(bf16),
                                    preferred_element_type=f32))
    o_cat = jnp.concatenate(head_outs, axis=-1)             # (Bb, L, D)

    # single lane-dense output projection over the concatenated heads
    attn = (jnp.dot(o_cat.reshape(Bb * L, D).astype(bf16), wo_ref[0],
                    preferred_element_type=f32).reshape(Bb, L, D) + bo)
    x = x + attn                                            # residual (dropout p=0)

    # --- MLP (pre-norm) ---
    nx2 = _layernorm(x, ln2w, ln2b)
    h1 = jnp.dot(nx2.reshape(Bb * L, D).astype(bf16), w1_ref[0],
                 preferred_element_type=f32) + b1_ref[0]
    h2 = (jnp.dot(_gelu(h1).astype(bf16), w2_ref[0],
                  preferred_element_type=f32).reshape(Bb, L, D) + b2)
    x = x + h2
    h_ref[...] = x

    # ---------------- last layer: out_norm + state-token select + action head --------
    @pl.when(layer == n_layers - 1)
    def _():
        A_out = hw_ref.shape[-1]
        xs = x[:, T:2 * T, :]                               # state tokens (contiguous)
        nxs = _layernorm(xs, onw_ref[...], onb_ref[...])
        y = jnp.dot(nxs.reshape(Bb * T, D).astype(bf16), hw_ref[...],
                    preferred_element_type=f32) + hb_ref[...]
        o_ref[...] = (jnp.tanh(y) * max_action).reshape(Bb, T, A_out)


# ----------------------------------------------------------------------------
# wrapper
# ----------------------------------------------------------------------------
def _pick_batch_block(B, L, target_rows=1024):
    """Largest divisor of B with Bb*L <= target_rows (keeps score tensors modest)."""
    best = 1
    for cand in range(1, B + 1):
        if B % cand == 0 and cand * L <= target_rows:
            best = cand
    return best


def decision_transformer_forward(params, states, actions, returns_to_go, timesteps,
                                 num_heads, max_action=1.0):
    B, T, S = states.shape
    A = actions.shape[-1]
    D = params['emb_norm_w'].shape[-1]
    bp = params['blocks']
    NL = bp['wqkv'].shape[0]
    F = 4 * D
    L = 3 * T

    # TODO(synk): fold this gather into the kernel (scalar-prefetched timesteps) to
    # drop the (B, T, D) HBM intermediate; kept outside for simplicity.
    time_emb = jnp.take(params['timestep_emb'], timesteps, axis=0)      # (B, T, D)
    rtg3 = returns_to_go[..., None].astype(jnp.float32)                 # (B, T, 1)

    Bb = _pick_batch_block(B, L)
    nb = B // Bb

    data_map = lambda b, l: (b, 0, 0)
    const2 = lambda b, l: (0, 0)
    layer3 = lambda b, l: (l, 0, 0)

    in_specs = [
        pl.BlockSpec((Bb, T, S), data_map),          # states
        pl.BlockSpec((Bb, T, A), data_map),          # actions
        pl.BlockSpec((Bb, T, 1), data_map),          # returns-to-go
        pl.BlockSpec((Bb, T, D), data_map),          # time embeddings
        pl.BlockSpec((S, D), const2),                # state_emb W
        pl.BlockSpec((1, D), const2),                # state_emb b
        pl.BlockSpec((A, D), const2),                # action_emb W
        pl.BlockSpec((1, D), const2),                # action_emb b
        pl.BlockSpec((1, D), const2),                # return_emb W
        pl.BlockSpec((1, D), const2),                # return_emb b
        pl.BlockSpec((1, D), const2),                # emb_norm gamma
        pl.BlockSpec((1, D), const2),                # emb_norm beta
        pl.BlockSpec((1, 6, D), layer3),             # packed [ln1_w,ln1_b,ln2_w,ln2_b,bo,b2]
        pl.BlockSpec((1, 1, 3 * D), layer3),         # qkv bias
        pl.BlockSpec((1, 1, F), layer3),             # mlp hidden bias
        pl.BlockSpec((1, D, 3 * D), layer3),         # fused qkv weight (bf16)
        pl.BlockSpec((1, D, D), layer3),             # out-proj weight (bf16)
        pl.BlockSpec((1, D, F), layer3),             # mlp w1 (bf16)
        pl.BlockSpec((1, F, D), layer3),             # mlp w2 (bf16)
        pl.BlockSpec((1, D), const2),                # out_norm gamma
        pl.BlockSpec((1, D), const2),                # out_norm beta
        pl.BlockSpec((D, A), const2),                # head W
        pl.BlockSpec((1, A), const2),                # head b
    ]

    # VMEM budget: resident activation + double-buffered bf16 layer weights + data
    # blocks + f32 matmul/softmax intermediates, 1.5x headroom, capped at 64 MiB (v7x).
    w_layer_bytes = 2 * (3 * D * D + D * D + 2 * 4 * D * D)             # bf16/layer
    est = (Bb * L * D * 4
           + 2 * Bb * T * (S + A + 1 + D) * 4
           + 2 * w_layer_bytes
           + 2 * (6 * D + 3 * D + F) * 4
           + Bb * L * (3 * D + F + 3 * D) * 4
           + 4 * Bb * L * L * 4
           + (S + A + 4) * D * 4 + D * A * 4
           + 2 * Bb * T * A * 4)
    vmem_limit = int(min(max(est * 3 // 2, 16 * 2 ** 20), 64 * 2 ** 20))

    kernel = functools.partial(dt_fused_kernel, num_heads=num_heads,
                               max_action=float(max_action))

    return pl.pallas_call(
        kernel,
        out_shape=jax.ShapeDtypeStruct((B, T, A), jnp.float32),
        grid=(nb, NL),                               # layer axis innermost (resident act)
        in_specs=in_specs,
        out_specs=pl.BlockSpec((Bb, T, A), data_map),
        scratch_shapes=[pltpu.VMEM((Bb, L, D), jnp.float32)],
        compiler_params=pltpu.CompilerParams(
            dimension_semantics=("parallel", "arbitrary"),
            vmem_limit_bytes=vmem_limit),
    )(states, actions, rtg3, time_emb,
      params['state_w'], params['state_b'], params['action_w'], params['action_b'],
      params['return_w'], params['return_b'], params['emb_norm_w'], params['emb_norm_b'],
      bp['small'], bp['bqkv'], bp['b1'],
      bp['wqkv'], bp['wo'], bp['w1'], bp['w2'],
      params['out_norm_w'], params['out_norm_b'], params['head_w'], params['head_b'])


# ----------------------------------------------------------------------------
# parameters
# ----------------------------------------------------------------------------
def init_params(key, state_dim, action_dim, seq_len, episode_len, D, num_layers, num_heads):
    # Layout (vs torch):
    #   state_w/action_w/return_w/head_w : torch Linear weight transposed -> (in, out)
    #   wqkv[l]  = MultiheadAttention in_proj_weight.T    (D, 3D), cols [q | k | v],
    #              head h of q/k/v = columns h*hd:(h+1)*hd within its D-block
    #   wo[l]    = out_proj.weight.T                      (D, D)
    #   small[l] = [ln1_w, ln1_b, ln2_w, ln2_b, out_proj.bias, mlp2.bias]   (6, D)
    #   w1/w2    = mlp Linear weights transposed; matmul weights stored bf16.
    F = 4 * D
    NL = num_layers
    bf = jnp.bfloat16
    keys = iter(jax.random.split(key, 16))

    def nrm(shape, dtype=jnp.float32):
        return (0.02 * jax.random.normal(next(keys), shape, jnp.float32)).astype(dtype)

    params = dict(
        timestep_emb=nrm((episode_len + seq_len, D)),
        state_w=nrm((state_dim, D), bf), state_b=jnp.zeros((1, D), jnp.float32),
        action_w=nrm((action_dim, D), bf), action_b=jnp.zeros((1, D), jnp.float32),
        return_w=nrm((1, D)), return_b=jnp.zeros((1, D), jnp.float32),
        emb_norm_w=jnp.ones((1, D), jnp.float32), emb_norm_b=jnp.zeros((1, D), jnp.float32),
        out_norm_w=jnp.ones((1, D), jnp.float32), out_norm_b=jnp.zeros((1, D), jnp.float32),
        head_w=nrm((D, action_dim), bf), head_b=jnp.zeros((1, action_dim), jnp.float32),
    )
    ln1_w = jnp.ones((NL, D), jnp.float32); ln1_b = jnp.zeros((NL, D), jnp.float32)
    ln2_w = jnp.ones((NL, D), jnp.float32); ln2_b = jnp.zeros((NL, D), jnp.float32)
    bo = jnp.zeros((NL, D), jnp.float32); b2 = jnp.zeros((NL, D), jnp.float32)
    params['blocks'] = dict(
        small=jnp.stack([ln1_w, ln1_b, ln2_w, ln2_b, bo, b2], axis=1),   # (NL, 6, D) f32
        wqkv=nrm((NL, D, 3 * D), bf), bqkv=jnp.zeros((NL, 1, 3 * D), jnp.float32),
        wo=nrm((NL, D, D), bf),
        w1=nrm((NL, D, F), bf), b1=jnp.zeros((NL, 1, F), jnp.float32),
        w2=nrm((NL, F, D), bf),
    )
    return params


# ----------------------------------------------------------------------------
if __name__ == "__main__":
    key = jax.random.PRNGKey(0)
    B, T = 2, 8                       # batch, seq_len
    state_dim, action_dim = 4, 3
    D, num_layers, num_heads = 32, 2, 2
    episode_len = 16
    max_action = 1.0

    pk, sk, ak, rk, tk = jax.random.split(key, 5)
    params = init_params(pk, state_dim, action_dim, T, episode_len, D,
                         num_layers, num_heads)

    states = jax.random.normal(sk, (B, T, state_dim), jnp.float32)
    actions = jax.random.normal(ak, (B, T, action_dim), jnp.float32)
    returns_to_go = jax.random.normal(rk, (B, T), jnp.float32)
    timesteps = jax.random.randint(tk, (B, T), 0, episode_len)

    logits = decision_transformer_forward(params, states, actions, returns_to_go,
                                          timesteps, num_heads=num_heads,
                                          max_action=max_action)
    jax.block_until_ready(logits)
    assert logits.shape == (B, T, action_dim), logits.shape
    print("KERNEL_OK")
</pallas_src>

<mosaic_0001>
module attributes {stable_mosaic.version = 11 : i64} {
  func.func @dt_fused_kernel(%arg0: i32, %arg1: i32, %arg2: memref<2x8x4xf32, #tpu.memory_space<vmem>>, %arg3: memref<2x8x3xf32, #tpu.memory_space<vmem>>, %arg4: memref<2x8x1xf32, #tpu.memory_space<vmem>>, %arg5: memref<2x8x32xf32, #tpu.memory_space<vmem>>, %arg6: memref<4x32xbf16, #tpu.memory_space<vmem>>, %arg7: memref<1x32xf32, #tpu.memory_space<vmem>>, %arg8: memref<3x32xbf16, #tpu.memory_space<vmem>>, %arg9: memref<1x32xf32, #tpu.memory_space<vmem>>, %arg10: memref<1x32xf32, #tpu.memory_space<vmem>>, %arg11: memref<1x32xf32, #tpu.memory_space<vmem>>, %arg12: memref<1x32xf32, #tpu.memory_space<vmem>>, %arg13: memref<1x32xf32, #tpu.memory_space<vmem>>, %arg14: memref<1x6x32xf32, #tpu.memory_space<vmem>>, %arg15: memref<1x1x96xf32, #tpu.memory_space<vmem>>, %arg16: memref<1x1x128xf32, #tpu.memory_space<vmem>>, %arg17: memref<1x32x96xbf16, #tpu.memory_space<vmem>>, %arg18: memref<1x32x32xbf16, #tpu.memory_space<vmem>>, %arg19: memref<1x32x128xbf16, #tpu.memory_space<vmem>>, %arg20: memref<1x128x32xbf16, #tpu.memory_space<vmem>>, %arg21: memref<1x32xf32, #tpu.memory_space<vmem>>, %arg22: memref<1x32xf32, #tpu.memory_space<vmem>>, %arg23: memref<32x3xbf16, #tpu.memory_space<vmem>>, %arg24: memref<1x3xf32, #tpu.memory_space<vmem>>, %arg25: memref<2x8x3xf32, #tpu.memory_space<vmem>>, %arg26: memref<2x24x32xf32, #tpu.memory_space<vmem>>) attributes {dimension_semantics = [#tpu.dimension_semantics<parallel>, #tpu.dimension_semantics<arbitrary>], iteration_bounds = array<i64: 1, 2>, scalar_prefetch = 0 : i64, scratch_operands = 1 : i64, tpu.core_type = #tpu.core_type<tc>, window_params = [{transform_indices = @transform_0, window_bounds = array<i64: 2, 8, 4>}, {transform_indices = @transform_1, window_bounds = array<i64: 2, 8, 3>}, {transform_indices = @transform_2, window_bounds = array<i64: 2, 8, 1>}, {transform_indices = @transform_3, window_bounds = array<i64: 2, 8, 32>}, {pipeline_mode = #tpu.pipeline_mode<synchronous>, transform_indices = @transform_4, window_bounds = array<i64: 4, 32>}, {pipeline_mode = #tpu.pipeline_mode<synchronous>, transform_indices = @transform_5, window_bounds = array<i64: 1, 32>}, {pipeline_mode = #tpu.pipeline_mode<synchronous>, transform_indices = @transform_6, window_bounds = array<i64: 3, 32>}, {pipeline_mode = #tpu.pipeline_mode<synchronous>, transform_indices = @transform_7, window_bounds = array<i64: 1, 32>}, {pipeline_mode = #tpu.pipeline_mode<synchronous>, transform_indices = @transform_8, window_bounds = array<i64: 1, 32>}, {pipeline_mode = #tpu.pipeline_mode<synchronous>, transform_indices = @transform_9, window_bounds = array<i64: 1, 32>}, {pipeline_mode = #tpu.pipeline_mode<synchronous>, transform_indices = @transform_10, window_bounds = array<i64: 1, 32>}, {pipeline_mode = #tpu.pipeline_mode<synchronous>, transform_indices = @transform_11, window_bounds = array<i64: 1, 32>}, {transform_indices = @transform_12, window_bounds = array<i64: 1, 6, 32>}, {transform_indices = @transform_13, window_bounds = array<i64: 1, 1, 96>}, {transform_indices = @transform_14, window_bounds = array<i64: 1, 1, 128>}, {transform_indices = @transform_15, window_bounds = array<i64: 1, 32, 96>}, {transform_indices = @transform_16, window_bounds = array<i64: 1, 32, 32>}, {transform_indices = @transform_17, window_bounds = array<i64: 1, 32, 128>}, {transform_indices = @transform_18, window_bounds = array<i64: 1, 128, 32>}, {pipeline_mode = #tpu.pipeline_mode<synchronous>, transform_indices = @transform_19, window_bounds = array<i64: 1, 32>}, {pipeline_mode = #tpu.pipeline_mode<synchronous>, transform_indices = @transform_20, window_bounds = array<i64: 1, 32>}, {pipeline_mode = #tpu.pipeline_mode<synchronous>, transform_indices = @transform_21, window_bounds = array<i64: 32, 3>}, {pipeline_mode = #tpu.pipeline_mode<synchronous>, transform_indices = @transform_22, window_bounds = array<i64: 1, 3>}, {transform_indices = @transform_23, window_bounds = array<i64: 2, 8, 3>}]} {
    %c0_i32 = arith.constant 0 : i32
    %0 = arith.cmpi eq, %arg1, %c0_i32 : i32
    %1 = arith.extui %0 : i1 to i32
    %c0_i32_0 = arith.constant 0 : i32
    %2 = arith.cmpi ne, %1, %c0_i32_0 : i32
    scf.if %2 {
      %c0_61 = arith.constant 0 : index
      %c0_62 = arith.constant 0 : index
      %c0_63 = arith.constant 0 : index
      %189 = vector.load %arg5[%c0_61, %c0_62, %c0_63] : memref<2x8x32xf32, #tpu.memory_space<vmem>>, vector<2x8x32xf32>
      %c0_64 = arith.constant 0 : index
      %c0_65 = arith.constant 0 : index
      %190 = vector.load %arg12[%c0_64, %c0_65] : memref<1x32xf32, #tpu.memory_space<vmem>>, vector<1x32xf32>
      %c0_66 = arith.constant 0 : index
      %c0_67 = arith.constant 0 : index
      %191 = vector.load %arg13[%c0_66, %c0_67] : memref<1x32xf32, #tpu.memory_space<vmem>>, vector<1x32xf32>
      %c0_68 = arith.constant 0 : index
      %c0_69 = arith.constant 0 : index
      %c0_70 = arith.constant 0 : index
      %192 = vector.load %arg4[%c0_68, %c0_69, %c0_70] : memref<2x8x1xf32, #tpu.memory_space<vmem>>, vector<2x8x1xf32>
      %c0_71 = arith.constant 0 : index
      %c0_72 = arith.constant 0 : index
      %193 = vector.load %arg10[%c0_71, %c0_72] : memref<1x32xf32, #tpu.memory_space<vmem>>, vector<1x32xf32>
      %194 = vector.shape_cast %193 : vector<1x32xf32> to vector<1x1x32xf32>
      %195 = vector.broadcast %192 : vector<2x8x1xf32> to vector<2x8x32xf32>
      %196 = vector.broadcast %194 : vector<1x1x32xf32> to vector<2x8x32xf32>
      %197 = arith.mulf %195, %196 : vector<2x8x32xf32>
      %c0_73 = arith.constant 0 : index
      %c0_74 = arith.constant 0 : index
      %198 = vector.load %arg11[%c0_73, %c0_74] : memref<1x32xf32, #tpu.memory_space<vmem>>, vector<1x32xf32>
      %199 = vector.shape_cast %198 : vector<1x32xf32> to vector<1x1x32xf32>
      %200 = vector.broadcast %199 : vector<1x1x32xf32> to vector<2x8x32xf32>
      %201 = arith.addf %197, %200 : vector<2x8x32xf32>
      %202 = arith.addf %201, %189 : vector<2x8x32xf32>
      %c0_75 = arith.constant 0 : index
      %c0_76 = arith.constant 0 : index
      %c0_77 = arith.constant 0 : index
      %203 = vector.load %arg2[%c0_75, %c0_76, %c0_77] : memref<2x8x4xf32, #tpu.memory_space<vmem>>, vector<2x8x4xf32>
      %204 = vector.shape_cast %203 : vector<2x8x4xf32> to vector<16x4xf32>
      %205 = arith.truncf %204 : vector<16x4xf32> to vector<16x4xbf16>
      %c0_78 = arith.constant 0 : index
      %c0_79 = arith.constant 0 : index
      %206 = vector.load %arg6[%c0_78, %c0_79] : memref<4x32xbf16, #tpu.memory_space<vmem>>, vector<4x32xbf16>
      %cst_80 = arith.constant dense<0.000000e+00> : vector<16x32xf32>
      %207 = tpu.matmul %205, %206, %cst_80 {dimension_numbers = #tpu.dot_dimension_numbers<[1], [0], [0], [1], [0, 0, 1, 1], [], []>} : vector<16x4xbf16>, vector<4x32xbf16>, vector<16x32xf32> -> vector<16x32xf32>
      %208 = vector.shape_cast %207 : vector<16x32xf32> to vector<2x8x32xf32>
      %c0_81 = arith.constant 0 : index
      %c0_82 = arith.constant 0 : index
      %209 = vector.load %arg7[%c0_81, %c0_82] : memref<1x32xf32, #tpu.memory_space<vmem>>, vector<1x32xf32>
      %210 = vector.shape_cast %209 : vector<1x32xf32> to vector<1x1x32xf32>
      %211 = vector.broadcast %210 : vector<1x1x32xf32> to vector<2x8x32xf32>
      %212 = arith.addf %208, %211 : vector<2x8x32xf32>
      %213 = arith.addf %212, %189 : vector<2x8x32xf32>
      %c0_83 = arith.constant 0 : index
      %c0_84 = arith.constant 0 : index
      %c0_85 = arith.constant 0 : index
      %214 = vector.load %arg3[%c0_83, %c0_84, %c0_85] : memref<2x8x3xf32, #tpu.memory_space<vmem>>, vector<2x8x3xf32>
      %215 = vector.shape_cast %214 : vector<2x8x3xf32> to vector<16x3xf32>
      %216 = arith.truncf %215 : vector<16x3xf32> to vector<16x3xbf16>
      %c0_86 = arith.constant 0 : index
      %c0_87 = arith.constant 0 : index
      %217 = vector.load %arg8[%c0_86, %c0_87] : memref<3x32xbf16, #tpu.memory_space<vmem>>, vector<3x32xbf16>
      %cst_88 = arith.constant dense<0.000000e+00> : vector<16x32xf32>
      %218 = tpu.matmul %216, %217, %cst_88 {dimension_numbers = #tpu.dot_dimension_numbers<[1], [0], [0], [1], [0, 0, 1, 1], [], []>} : vector<16x3xbf16>, vector<3x32xbf16>, vector<16x32xf32> -> vector<16x32xf32>
      %219 = vector.shape_cast %218 : vector<16x32xf32> to vector<2x8x32xf32>
      %c0_89 = arith.constant 0 : index
      %c0_90 = arith.constant 0 : index
      %220 = vector.load %arg9[%c0_89, %c0_90] : memref<1x32xf32, #tpu.memory_space<vmem>>, vector<1x32xf32>
      %221 = vector.shape_cast %220 : vector<1x32xf32> to vector<1x1x32xf32>
      %222 = vector.broadcast %221 : vector<1x1x32xf32> to vector<2x8x32xf32>
      %223 = arith.addf %219, %222 : vector<2x8x32xf32>
      %224 = arith.addf %223, %189 : vector<2x8x32xf32>
      %cst_91 = arith.constant dense<0.000000e+00> : vector<2x8xf32>
      %225 = vector.multi_reduction <add>, %202, %cst_91 [2] : vector<2x8x32xf32> to vector<2x8xf32>
      %226 = vector.shape_cast %225 : vector<2x8xf32> to vector<2x8x1xf32>
      %cst_92 = arith.constant 3.200000e+01 : f32
      %227 = vector.broadcast %cst_92 : f32 to vector<2x8x1xf32>
      %228 = arith.divf %226, %227 : vector<2x8x1xf32>
      %229 = vector.broadcast %228 : vector<2x8x1xf32> to vector<2x8x32xf32>
      %230 = arith.subf %202, %229 : vector<2x8x32xf32>
      %231 = arith.mulf %230, %230 : vector<2x8x32xf32>
      %cst_93 = arith.constant dense<0.000000e+00> : vector<2x8xf32>
      %232 = vector.multi_reduction <add>, %231, %cst_93 [2] : vector<2x8x32xf32> to vector<2x8xf32>
      %233 = vector.shape_cast %232 : vector<2x8xf32> to vector<2x8x1xf32>
      %cst_94 = arith.constant 3.200000e+01 : f32
      %234 = vector.broadcast %cst_94 : f32 to vector<2x8x1xf32>
      %235 = arith.divf %233, %234 : vector<2x8x1xf32>
      %cst_95 = arith.constant 9.99999974E-6 : f32
      %236 = vector.broadcast %cst_95 : f32 to vector<2x8x1xf32>
      %237 = arith.addf %235, %236 : vector<2x8x1xf32>
      %238 = math.rsqrt %237 : vector<2x8x1xf32>
      %239 = vector.broadcast %238 : vector<2x8x1xf32> to vector<2x8x32xf32>
      %240 = arith.mulf %230, %239 : vector<2x8x32xf32>
      %241 = vector.shape_cast %190 : vector<1x32xf32> to vector<1x1x32xf32>
      %242 = vector.broadcast %241 : vector<1x1x32xf32> to vector<2x8x32xf32>
      %243 = arith.mulf %240, %242 : vector<2x8x32xf32>
      %244 = vector.shape_cast %191 : vector<1x32xf32> to vector<1x1x32xf32>
      %245 = vector.broadcast %244 : vector<1x1x32xf32> to vector<2x8x32xf32>
      %246 = arith.addf %243, %245 : vector<2x8x32xf32>
      %c0_96 = arith.constant 0 : index
      %c0_97 = arith.constant 0 : index
      %c0_98 = arith.constant 0 : index
      %247 = vector.load %arg26[%c0_96, %c0_97, %c0_98] : memref<2x24x32xf32, #tpu.memory_space<vmem>>, vector<2x8x32xf32>
      tpu.vector_store %arg26[%c0_96, %c0_97, %c0_98], %246 {strides = array<i32>} : memref<2x24x32xf32, #tpu.memory_space<vmem>>, vector<2x8x32xf32>,
      %cst_99 = arith.constant dense<0.000000e+00> : vector<2x8xf32>
      %248 = vector.multi_reduction <add>, %213, %cst_99 [2] : vector<2x8x32xf32> to vector<2x8xf32>
      %249 = vector.shape_cast %248 : vector<2x8xf32> to vector<2x8x1xf32>
      %cst_100 = arith.constant 3.200000e+01 : f32
      %250 = vector.broadcast %cst_100 : f32 to vector<2x8x1xf32>
      %251 = arith.divf %249, %250 : vector<2x8x1xf32>
      %252 = vector.broadcast %251 : vector<2x8x1xf32> to vector<2x8x32xf32>
      %253 = arith.subf %213, %252 : vector<2x8x32xf32>
      %254 = arith.mulf %253, %253 : vector<2x8x32xf32>
      %cst_101 = arith.constant dense<0.000000e+00> : vector<2x8xf32>
      %255 = vector.multi_reduction <add>, %254, %cst_101 [2] : vector<2x8x32xf32> to vector<2x8xf32>
      %256 = vector.shape_cast %255 : vector<2x8xf32> to vector<2x8x1xf32>
      %cst_102 = arith.constant 3.200000e+01 : f32
      %257 = vector.broadcast %cst_102 : f32 to vector<2x8x1xf32>
      %258 = arith.divf %256, %257 : vector<2x8x1xf32>
      %cst_103 = arith.constant 9.99999974E-6 : f32
      %259 = vector.broadcast %cst_103 : f32 to vector<2x8x1xf32>
      %260 = arith.addf %258, %259 : vector<2x8x1xf32>
      %261 = math.rsqrt %260 : vector<2x8x1xf32>
      %262 = vector.broadcast %261 : vector<2x8x1xf32> to vector<2x8x32xf32>
      %263 = arith.mulf %253, %262 : vector<2x8x32xf32>
      %264 = vector.shape_cast %190 : vector<1x32xf32> to vector<1x1x32xf32>
      %265 = vector.broadcast %264 : vector<1x1x32xf32> to vector<2x8x32xf32>
      %266 = arith.mulf %263, %265 : vector<2x8x32xf32>
      %267 = vector.shape_cast %191 : vector<1x32xf32> to vector<1x1x32xf32>
      %268 = vector.broadcast %267 : vector<1x1x32xf32> to vector<2x8x32xf32>
      %269 = arith.addf %266, %268 : vector<2x8x32xf32>
      %c0_104 = arith.constant 0 : index
      %c8 = arith.constant 8 : index
      %c0_105 = arith.constant 0 : index
      %270 = vector.load %arg26[%c0_104, %c8, %c0_105] : memref<2x24x32xf32, #tpu.memory_space<vmem>>, vector<2x8x32xf32>
      tpu.vector_store %arg26[%c0_104, %c8, %c0_105], %269 {strides = array<i32>} : memref<2x24x32xf32, #tpu.memory_space<vmem>>, vector<2x8x32xf32>,
      %cst_106 = arith.constant dense<0.000000e+00> : vector<2x8xf32>
      %271 = vector.multi_reduction <add>, %224, %cst_106 [2] : vector<2x8x32xf32> to vector<2x8xf32>
      %272 = vector.shape_cast %271 : vector<2x8xf32> to vector<2x8x1xf32>
      %cst_107 = arith.constant 3.200000e+01 : f32
      %273 = vector.broadcast %cst_107 : f32 to vector<2x8x1xf32>
      %274 = arith.divf %272, %273 : vector<2x8x1xf32>
      %275 = vector.broadcast %274 : vector<2x8x1xf32> to vector<2x8x32xf32>
      %276 = arith.subf %224, %275 : vector<2x8x32xf32>
      %277 = arith.mulf %276, %276 : vector<2x8x32xf32>
      %cst_108 = arith.constant dense<0.000000e+00> : vector<2x8xf32>
      %278 = vector.multi_reduction <add>, %277, %cst_108 [2] : vector<2x8x32xf32> to vector<2x8xf32>
      %279 = vector.shape_cast %278 : vector<2x8xf32> to vector<2x8x1xf32>
      %cst_109 = arith.constant 3.200000e+01 : f32
      %280 = vector.broadcast %cst_109 : f32 to vector<2x8x1xf32>
      %281 = arith.divf %279, %280 : vector<2x8x1xf32>
      %cst_110 = arith.constant 9.99999974E-6 : f32
      %282 = vector.broadcast %cst_110 : f32 to vector<2x8x1xf32>
      %283 = arith.addf %281, %282 : vector<2x8x1xf32>
      %284 = math.rsqrt %283 : vector<2x8x1xf32>
      %285 = vector.broadcast %284 : vector<2x8x1xf32> to vector<2x8x32xf32>
      %286 = arith.mulf %276, %285 : vector<2x8x32xf32>
      %287 = vector.shape_cast %190 : vector<1x32xf32> to vector<1x1x32xf32>
      %288 = vector.broadcast %287 : vector<1x1x32xf32> to vector<2x8x32xf32>
      %289 = arith.mulf %286, %288 : vector<2x8x32xf32>
      %290 = vector.shape_cast %191 : vector<1x32xf32> to vector<1x1x32xf32>
      %291 = vector.broadcast %290 : vector<1x1x32xf32> to vector<2x8x32xf32>
      %292 = arith.addf %289, %291 : vector<2x8x32xf32>
      %c0_111 = arith.constant 0 : index
      %c16 = arith.constant 16 : index
      %c0_112 = arith.constant 0 : index
      %293 = vector.load %arg26[%c0_111, %c16, %c0_112] : memref<2x24x32xf32, #tpu.memory_space<vmem>>, vector<2x8x32xf32>
      tpu.vector_store %arg26[%c0_111, %c16, %c0_112], %292 {strides = array<i32>} : memref<2x24x32xf32, #tpu.memory_space<vmem>>, vector<2x8x32xf32>,
    } else {
    }
    %c0 = arith.constant 0 : index
    %c0_1 = arith.constant 0 : index
    %c0_2 = arith.constant 0 : index
    %3 = vector.load %arg26[%c0, %c0_1, %c0_2] : memref<2x24x32xf32, #tpu.memory_space<vmem>>, vector<2x24x32xf32>
    %c0_3 = arith.constant 0 : index
    %c0_4 = arith.constant 0 : index
    %c0_5 = arith.constant 0 : index
    %4 = vector.load %arg14[%c0_3, %c0_4, %c0_5] : memref<1x6x32xf32, #tpu.memory_space<vmem>>, vector<1x6x32xf32>
    %5 = vector.shape_cast %4 : vector<1x6x32xf32> to vector<6x32xf32>
    %6 = vector.extract_strided_slice %5 {offsets = [0, 0], sizes = [1, 32], strides = [1, 1]} : vector<6x32xf32> to vector<1x32xf32>
    %7 = vector.extract_strided_slice %5 {offsets = [1, 0], sizes = [1, 32], strides = [1, 1]} : vector<6x32xf32> to vector<1x32xf32>
    %8 = vector.extract_strided_slice %5 {offsets = [2, 0], sizes = [1, 32], strides = [1, 1]} : vector<6x32xf32> to vector<1x32xf32>
    %9 = vector.extract_strided_slice %5 {offsets = [3, 0], sizes = [1, 32], strides = [1, 1]} : vector<6x32xf32> to vector<1x32xf32>
    %10 = vector.extract_strided_slice %5 {offsets = [4, 0], sizes = [1, 32], strides = [1, 1]} : vector<6x32xf32> to vector<1x32xf32>
    %11 = vector.extract_strided_slice %5 {offsets = [5, 0], sizes = [1, 32], strides = [1, 1]} : vector<6x32xf32> to vector<1x32xf32>
    %cst = arith.constant dense<0.000000e+00> : vector<2x24xf32>
    %12 = vector.multi_reduction <add>, %3, %cst [2] : vector<2x24x32xf32> to vector<2x24xf32>
    %13 = vector.shape_cast %12 : vector<2x24xf32> to vector<2x24x1xf32>
    %cst_6 = arith.constant 3.200000e+01 : f32
    %14 = vector.broadcast %cst_6 : f32 to vector<2x24x1xf32>
    %15 = arith.divf %13, %14 : vector<2x24x1xf32>
    %16 = vector.broadcast %15 : vector<2x24x1xf32> to vector<2x24x32xf32>
    %17 = arith.subf %3, %16 : vector<2x24x32xf32>
    %18 = arith.mulf %17, %17 : vector<2x24x32xf32>
    %cst_7 = arith.constant dense<0.000000e+00> : vector<2x24xf32>
    %19 = vector.multi_reduction <add>, %18, %cst_7 [2] : vector<2x24x32xf32> to vector<2x24xf32>
    %20 = vector.shape_cast %19 : vector<2x24xf32> to vector<2x24x1xf32>
    %cst_8 = arith.constant 3.200000e+01 : f32
    %21 = vector.broadcast %cst_8 : f32 to vector<2x24x1xf32>
    %22 = arith.divf %20, %21 : vector<2x24x1xf32>
    %cst_9 = arith.constant 9.99999974E-6 : f32
    %23 = vector.broadcast %cst_9 : f32 to vector<2x24x1xf32>
    %24 = arith.addf %22, %23 : vector<2x24x1xf32>
    %25 = math.rsqrt %24 : vector<2x24x1xf32>
    %26 = vector.broadcast %25 : vector<2x24x1xf32> to vector<2x24x32xf32>
    %27 = arith.mulf %17, %26 : vector<2x24x32xf32>
    %28 = vector.shape_cast %6 : vector<1x32xf32> to vector<1x1x32xf32>
    %29 = vector.broadcast %28 : vector<1x1x32xf32> to vector<2x24x32xf32>
    %30 = arith.mulf %27, %29 : vector<2x24x32xf32>
    %31 = vector.shape_cast %7 : vector<1x32xf32> to vector<1x1x32xf32>
    %32 = vector.broadcast %31 : vector<1x1x32xf32> to vector<2x24x32xf32>
    %33 = arith.addf %30, %32 : vector<2x24x32xf32>
    %34 = vector.shape_cast %33 : vector<2x24x32xf32> to vector<48x32xf32>
    %35 = arith.truncf %34 : vector<48x32xf32> to vector<48x32xbf16>
    %c0_10 = arith.constant 0 : index
    %c0_11 = arith.constant 0 : index
    %c0_12 = arith.constant 0 : index
    %36 = vector.load %arg17[%c0_10, %c0_11, %c0_12] : memref<1x32x96xbf16, #tpu.memory_space<vmem>>, vector<1x32x96xbf16>
    %37 = vector.shape_cast %36 : vector<1x32x96xbf16> to vector<32x96xbf16>
    %cst_13 = arith.constant dense<0.000000e+00> : vector<48x96xf32>
    %38 = tpu.matmul %35, %37, %cst_13 {dimension_numbers = #tpu.dot_dimension_numbers<[1], [0], [0], [1], [0, 0, 1, 1], [], []>} : vector<48x32xbf16>, vector<32x96xbf16>, vector<48x96xf32> -> vector<48x96xf32>
    %c0_14 = arith.constant 0 : index
    %c0_15 = arith.constant 0 : index
    %c0_16 = arith.constant 0 : index
    %39 = vector.load %arg15[%c0_14, %c0_15, %c0_16] : memref<1x1x96xf32, #tpu.memory_space<vmem>>, vector<1x1x96xf32>
    %40 = vector.shape_cast %39 : vector<1x1x96xf32> to vector<1x96xf32>
    %41 = vector.broadcast %40 : vector<1x96xf32> to vector<48x96xf32>
    %42 = arith.addf %38, %41 : vector<48x96xf32>
    %43 = vector.shape_cast %42 : vector<48x96xf32> to vector<2x24x96xf32>
    %44 = tpu.iota {dimensions = array<i32: 0>} : vector<24x24xi32>
    %45 = tpu.iota {dimensions = array<i32: 1>} : vector<24x24xi32>
    %c8_i32 = arith.constant 8 : i32
    %46 = vector.broadcast %c8_i32 : i32 to vector<24x24xi32>
    %47 = arith.cmpi sge, %44, %46 : vector<24x24xi32>
    %48 = arith.extui %47 : vector<24x24xi1> to vector<24x24xi32>
    %c16_i32 = arith.constant 16 : i32
    %49 = vector.broadcast %c16_i32 : i32 to vector<24x24xi32>
    %50 = arith.cmpi sge, %44, %49 : vector<24x24xi32>
    %51 = arith.extui %50 : vector<24x24xi1> to vector<24x24xi32>
    %52 = arith.addi %48, %51 : vector<24x24xi32>
    %c8_i32_17 = arith.constant 8 : i32
    %53 = vector.broadcast %c8_i32_17 : i32 to vector<24x24xi32>
    %54 = arith.cmpi sge, %45, %53 : vector<24x24xi32>
    %55 = arith.extui %54 : vector<24x24xi1> to vector<24x24xi32>
    %c16_i32_18 = arith.constant 16 : i32
    %56 = vector.broadcast %c16_i32_18 : i32 to vector<24x24xi32>
    %57 = arith.cmpi sge, %45, %56 : vector<24x24xi32>
    %58 = arith.extui %57 : vector<24x24xi1> to vector<24x24xi32>
    %59 = arith.addi %55, %58 : vector<24x24xi32>
    %c3_i32 = arith.constant 3 : i32
    %60 = vector.broadcast %c3_i32 : i32 to vector<24x24xi32>
    %61 = arith.muli %60, %45 : vector<24x24xi32>
    %c23_i32 = arith.constant 23 : i32
    %62 = vector.broadcast %c23_i32 : i32 to vector<24x24xi32>
    %63 = arith.muli %59, %62 : vector<24x24xi32>
    %64 = arith.subi %61, %63 : vector<24x24xi32>
    %c3_i32_19 = arith.constant 3 : i32
    %65 = vector.broadcast %c3_i32_19 : i32 to vector<24x24xi32>
    %66 = arith.muli %65, %44 : vector<24x24xi32>
    %c23_i32_20 = arith.constant 23 : i32
    %67 = vector.broadcast %c23_i32_20 : i32 to vector<24x24xi32>
    %68 = arith.muli %52, %67 : vector<24x24xi32>
    %69 = arith.subi %66, %68 : vector<24x24xi32>
    %70 = arith.cmpi sle, %64, %69 : vector<24x24xi32>
    %71 = vector.extract_strided_slice %43 {offsets = [0, 0, 0], sizes = [2, 24, 16], strides = [1, 1, 1]} : vector<2x24x96xf32> to vector<2x24x16xf32>
    %72 = vector.extract_strided_slice %43 {offsets = [0, 0, 32], sizes = [2, 24, 16], strides = [1, 1, 1]} : vector<2x24x96xf32> to vector<2x24x16xf32>
    %73 = vector.extract_strided_slice %43 {offsets = [0, 0, 64], sizes = [2, 24, 16], strides = [1, 1, 1]} : vector<2x24x96xf32> to vector<2x24x16xf32>
    %cst_21 = arith.constant 2.500000e-01 : f32
    %74 = vector.broadcast %cst_21 : f32 to vector<2x24x16xf32>
    %75 = arith.mulf %71, %74 : vector<2x24x16xf32>
    %76 = arith.truncf %75 : vector<2x24x16xf32> to vector<2x24x16xbf16>
    %77 = arith.truncf %72 : vector<2x24x16xf32> to vector<2x24x16xbf16>
    "tpu.trace_start"() <{level = 10 : i32, message = "bqd,bkd->bqk"}> : () -> ()
    %cst_22 = arith.constant dense<0.000000e+00> : vector<2x24x24xf32>
    %78 = tpu.matmul %76, %77, %cst_22 {dimension_numbers = #tpu.dot_dimension_numbers<[2], [2], [1], [1], [0, 0, 0, 1, 1, 1], [0], [0]>} : vector<2x24x16xbf16>, vector<2x24x16xbf16>, vector<2x24x24xf32> -> vector<2x24x24xf32>
    %cst_23 = arith.constant -1.000000e+30 : f32
    "tpu.trace_stop"() : () -> ()
    %79 = vector.shape_cast %70 : vector<24x24xi1> to vector<1x24x24xi1>
    %80 = vector.broadcast %79 : vector<1x24x24xi1> to vector<2x24x24xi1>
    %81 = vector.broadcast %cst_23 : f32 to vector<2x24x24xf32>
    %82 = arith.select %80, %78, %81 : vector<2x24x24xi1>, vector<2x24x24xf32>
    %cst_24 = arith.constant dense<0xFF800000> : vector<2x24xf32>
    %83 = vector.multi_reduction <maximumf>, %82, %cst_24 [2] : vector<2x24x24xf32> to vector<2x24xf32>
    %84 = vector.shape_cast %83 : vector<2x24xf32> to vector<2x24x1xf32>
    %85 = vector.broadcast %84 : vector<2x24x1xf32> to vector<2x24x24xf32>
    %86 = arith.subf %82, %85 : vector<2x24x24xf32>
    %87 = math.exp %86 : vector<2x24x24xf32>
    %cst_25 = arith.constant dense<0.000000e+00> : vector<2x24xf32>
    %88 = vector.multi_reduction <add>, %87, %cst_25 [2] : vector<2x24x24xf32> to vector<2x24xf32>
    %89 = vector.shape_cast %88 : vector<2x24xf32> to vector<2x24x1xf32>
    %90 = tpu.reciprocal %89 {approx = true} : vector<2x24x1xf32> -> vector<2x24x1xf32>
    %91 = vector.broadcast %90 : vector<2x24x1xf32> to vector<2x24x24xf32>
    %92 = arith.mulf %87, %91 : vector<2x24x24xf32>
    %93 = arith.truncf %92 : vector<2x24x24xf32> to vector<2x24x24xbf16>
    %94 = arith.truncf %73 : vector<2x24x16xf32> to vector<2x24x16xbf16>
    "tpu.trace_start"() <{level = 10 : i32, message = "bqk,bkd->bqd"}> : () -> ()
    %cst_26 = arith.constant dense<0.000000e+00> : vector<2x24x16xf32>
    %95 = tpu.matmul %93, %94, %cst_26 {dimension_numbers = #tpu.dot_dimension_numbers<[2], [1], [1], [2], [0, 0, 0, 1, 1, 2], [0], [0]>} : vector<2x24x24xbf16>, vector<2x24x16xbf16>, vector<2x24x16xf32> -> vector<2x24x16xf32>
    "tpu.trace_stop"() : () -> ()
    %96 = vector.extract_strided_slice %43 {offsets = [0, 0, 16], sizes = [2, 24, 16], strides = [1, 1, 1]} : vector<2x24x96xf32> to vector<2x24x16xf32>
    %97 = vector.extract_strided_slice %43 {offsets = [0, 0, 48], sizes = [2, 24, 16], strides = [1, 1, 1]} : vector<2x24x96xf32> to vector<2x24x16xf32>
    %98 = vector.extract_strided_slice %43 {offsets = [0, 0, 80], sizes = [2, 24, 16], strides = [1, 1, 1]} : vector<2x24x96xf32> to vector<2x24x16xf32>
    %cst_27 = arith.constant 2.500000e-01 : f32
    %99 = vector.broadcast %cst_27 : f32 to vector<2x24x16xf32>
    %100 = arith.mulf %96, %99 : vector<2x24x16xf32>
    %101 = arith.truncf %100 : vector<2x24x16xf32> to vector<2x24x16xbf16>
    %102 = arith.truncf %97 : vector<2x24x16xf32> to vector<2x24x16xbf16>
    "tpu.trace_start"() <{level = 10 : i32, message = "bqd,bkd->bqk"}> : () -> ()
    %cst_28 = arith.constant dense<0.000000e+00> : vector<2x24x24xf32>
    %103 = tpu.matmul %101, %102, %cst_28 {dimension_numbers = #tpu.dot_dimension_numbers<[2], [2], [1], [1], [0, 0, 0, 1, 1, 1], [0], [0]>} : vector<2x24x16xbf16>, vector<2x24x16xbf16>, vector<2x24x24xf32> -> vector<2x24x24xf32>
    %cst_29 = arith.constant -1.000000e+30 : f32
    "tpu.trace_stop"() : () -> ()
    %104 = vector.shape_cast %70 : vector<24x24xi1> to vector<1x24x24xi1>
    %105 = vector.broadcast %104 : vector<1x24x24xi1> to vector<2x24x24xi1>
    %106 = vector.broadcast %cst_29 : f32 to vector<2x24x24xf32>
    %107 = arith.select %105, %103, %106 : vector<2x24x24xi1>, vector<2x24x24xf32>
    %cst_30 = arith.constant dense<0xFF800000> : vector<2x24xf32>
    %108 = vector.multi_reduction <maximumf>, %107, %cst_30 [2] : vector<2x24x24xf32> to vector<2x24xf32>
    %109 = vector.shape_cast %108 : vector<2x24xf32> to vector<2x24x1xf32>
    %110 = vector.broadcast %109 : vector<2x24x1xf32> to vector<2x24x24xf32>
    %111 = arith.subf %107, %110 : vector<2x24x24xf32>
    %112 = math.exp %111 : vector<2x24x24xf32>
    %cst_31 = arith.constant dense<0.000000e+00> : vector<2x24xf32>
    %113 = vector.multi_reduction <add>, %112, %cst_31 [2] : vector<2x24x24xf32> to vector<2x24xf32>
    %114 = vector.shape_cast %113 : vector<2x24xf32> to vector<2x24x1xf32>
    %115 = tpu.reciprocal %114 {approx = true} : vector<2x24x1xf32> -> vector<2x24x1xf32>
    %116 = vector.broadcast %115 : vector<2x24x1xf32> to vector<2x24x24xf32>
    %117 = arith.mulf %112, %116 : vector<2x24x24xf32>
    %118 = arith.truncf %117 : vector<2x24x24xf32> to vector<2x24x24xbf16>
    %119 = arith.truncf %98 : vector<2x24x16xf32> to vector<2x24x16xbf16>
    "tpu.trace_start"() <{level = 10 : i32, message = "bqk,bkd->bqd"}> : () -> ()
    %cst_32 = arith.constant dense<0.000000e+00> : vector<2x24x16xf32>
    %120 = tpu.matmul %118, %119, %cst_32 {dimension_numbers = #tpu.dot_dimension_numbers<[2], [1], [1], [2], [0, 0, 0, 1, 1, 2], [0], [0]>} : vector<2x24x24xbf16>, vector<2x24x16xbf16>, vector<2x24x16xf32> -> vector<2x24x16xf32>
    "tpu.trace_stop"() : () -> ()
    %121 = tpu.concatenate %95, %120 in 2 : vector<2x24x16xf32>, vector<2x24x16xf32> -> vector<2x24x32xf32>
    %122 = vector.shape_cast %121 : vector<2x24x32xf32> to vector<48x32xf32>
    %123 = arith.truncf %122 : vector<48x32xf32> to vector<48x32xbf16>
    %c0_33 = arith.constant 0 : index
    %c0_34 = arith.constant 0 : index
    %c0_35 = arith.constant 0 : index
    %124 = vector.load %arg18[%c0_33, %c0_34, %c0_35] : memref<1x32x32xbf16, #tpu.memory_space<vmem>>, vector<1x32x32xbf16>
    %125 = vector.shape_cast %124 : vector<1x32x32xbf16> to vector<32x32xbf16>
    %cst_36 = arith.constant dense<0.000000e+00> : vector<48x32xf32>
    %126 = tpu.matmul %123, %125, %cst_36 {dimension_numbers = #tpu.dot_dimension_numbers<[1], [0], [0], [1], [0, 0, 1, 1], [], []>} : vector<48x32xbf16>, vector<32x32xbf16>, vector<48x32xf32> -> vector<48x32xf32>
    %127 = vector.shape_cast %126 : vector<48x32xf32> to vector<2x24x32xf32>
    %128 = vector.shape_cast %10 : vector<1x32xf32> to vector<1x1x32xf32>
    %129 = vector.broadcast %128 : vector<1x1x32xf32> to vector<2x24x32xf32>
    %130 = arith.addf %127, %129 : vector<2x24x32xf32>
    %131 = arith.addf %3, %130 : vector<2x24x32xf32>
    %cst_37 = arith.constant dense<0.000000e+00> : vector<2x24xf32>
    %132 = vector.multi_reduction <add>, %131, %cst_37 [2] : vector<2x24x32xf32> to vector<2x24xf32>
    %133 = vector.shape_cast %132 : vector<2x24xf32> to vector<2x24x1xf32>
    %cst_38 = arith.constant 3.200000e+01 : f32
    %134 = vector.broadcast %cst_38 : f32 to vector<2x24x1xf32>
    %135 = arith.divf %133, %134 : vector<2x24x1xf32>
    %136 = vector.broadcast %135 : vector<2x24x1xf32> to vector<2x24x32xf32>
    %137 = arith.subf %131, %136 : vector<2x24x32xf32>
    %138 = arith.mulf %137, %137 : vector<2x24x32xf32>
    %cst_39 = arith.constant dense<0.000000e+00> : vector<2x24xf32>
    %139 = vector.multi_reduction <add>, %138, %cst_39 [2] : vector<2x24x32xf32> to vector<2x24xf32>
    %140 = vector.shape_cast %139 : vector<2x24xf32> to vector<2x24x1xf32>
    %cst_40 = arith.constant 3.200000e+01 : f32
    %141 = vector.broadcast %cst_40 : f32 to vector<2x24x1xf32>
    %142 = arith.divf %140, %141 : vector<2x24x1xf32>
    %cst_41 = arith.constant 9.99999974E-6 : f32
    %143 = vector.broadcast %cst_41 : f32 to vector<2x24x1xf32>
    %144 = arith.addf %142, %143 : vector<2x24x1xf32>
    %145 = math.rsqrt %144 : vector<2x24x1xf32>
    %146 = vector.broadcast %145 : vector<2x24x1xf32> to vector<2x24x32xf32>
    %147 = arith.mulf %137, %146 : vector<2x24x32xf32>
    %148 = vector.shape_cast %8 : vector<1x32xf32> to vector<1x1x32xf32>
    %149 = vector.broadcast %148 : vector<1x1x32xf32> to vector<2x24x32xf32>
    %150 = arith.mulf %147, %149 : vector<2x24x32xf32>
    %151 = vector.shape_cast %9 : vector<1x32xf32> to vector<1x1x32xf32>
    %152 = vector.broadcast %151 : vector<1x1x32xf32> to vector<2x24x32xf32>
    %153 = arith.addf %150, %152 : vector<2x24x32xf32>
    %154 = vector.shape_cast %153 : vector<2x24x32xf32> to vector<48x32xf32>
    %155 = arith.truncf %154 : vector<48x32xf32> to vector<48x32xbf16>
    %c0_42 = arith.constant 0 : index
    %c0_43 = arith.constant 0 : index
    %c0_44 = arith.constant 0 : index
    %156 = vector.load %arg19[%c0_42, %c0_43, %c0_44] : memref<1x32x128xbf16, #tpu.memory_space<vmem>>, vector<1x32x128xbf16>
    %157 = vector.shape_cast %156 : vector<1x32x128xbf16> to vector<32x128xbf16>
    %cst_45 = arith.constant dense<0.000000e+00> : vector<48x128xf32>
    %158 = tpu.matmul %155, %157, %cst_45 {dimension_numbers = #tpu.dot_dimension_numbers<[1], [0], [0], [1], [0, 0, 1, 1], [], []>} : vector<48x32xbf16>, vector<32x128xbf16>, vector<48x128xf32> -> vector<48x128xf32>
    %c0_46 = arith.constant 0 : index
    %c0_47 = arith.constant 0 : index
    %c0_48 = arith.constant 0 : index
    %159 = vector.load %arg16[%c0_46, %c0_47, %c0_48] : memref<1x1x128xf32, #tpu.memory_space<vmem>>, vector<1x1x128xf32>
    %160 = vector.shape_cast %159 : vector<1x1x128xf32> to vector<1x128xf32>
    %161 = vector.broadcast %160 : vector<1x128xf32> to vector<48x128xf32>
    %162 = arith.addf %158, %161 : vector<48x128xf32>
    %cst_49 = arith.constant 5.000000e-01 : f32
    %163 = vector.broadcast %cst_49 : f32 to vector<48x128xf32>
    %164 = arith.mulf %163, %162 : vector<48x128xf32>
    %cst_50 = arith.constant 4.471500e-02 : f32
    %165 = vector.broadcast %cst_50 : f32 to vector<48x128xf32>
    %166 = arith.mulf %165, %162 : vector<48x128xf32>
    %167 = arith.mulf %166, %162 : vector<48x128xf32>
    %168 = arith.mulf %167, %162 : vector<48x128xf32>
    %169 = arith.addf %162, %168 : vector<48x128xf32>
    %cst_51 = arith.constant 0.797884583 : f32
    %170 = vector.broadcast %cst_51 : f32 to vector<48x128xf32>
    %171 = arith.mulf %170, %169 : vector<48x128xf32>
    %172 = math.tanh %171 : vector<48x128xf32>
    %cst_52 = arith.constant 1.000000e+00 : f32
    %173 = vector.broadcast %cst_52 : f32 to vector<48x128xf32>
    %174 = arith.addf %173, %172 : vector<48x128xf32>
    %175 = arith.mulf %164, %174 : vector<48x128xf32>
    %176 = arith.truncf %175 : vector<48x128xf32> to vector<48x128xbf16>
    %c0_53 = arith.constant 0 : index
    %c0_54 = arith.constant 0 : index
    %c0_55 = arith.constant 0 : index
    %177 = vector.load %arg20[%c0_53, %c0_54, %c0_55] : memref<1x128x32xbf16, #tpu.memory_space<vmem>>, vector<1x128x32xbf16>
    %178 = vector.shape_cast %177 : vector<1x128x32xbf16> to vector<128x32xbf16>
    %cst_56 = arith.constant dense<0.000000e+00> : vector<48x32xf32>
    %179 = tpu.matmul %176, %178, %cst_56 {dimension_numbers = #tpu.dot_dimension_numbers<[1], [0], [0], [1], [0, 0, 1, 1], [], []>} : vector<48x128xbf16>, vector<128x32xbf16>, vector<48x32xf32> -> vector<48x32xf32>
    %180 = vector.shape_cast %179 : vector<48x32xf32> to vector<2x24x32xf32>
    %181 = vector.shape_cast %11 : vector<1x32xf32> to vector<1x1x32xf32>
    %182 = vector.broadcast %181 : vector<1x1x32xf32> to vector<2x24x32xf32>
    %183 = arith.addf %180, %182 : vector<2x24x32xf32>
    %184 = arith.addf %131, %183 : vector<2x24x32xf32>
    %c0_57 = arith.constant 0 : index
    %c0_58 = arith.constant 0 : index
    %c0_59 = arith.constant 0 : index
    %185 = vector.load %arg26[%c0_57, %c0_58, %c0_59] : memref<2x24x32xf32, #tpu.memory_space<vmem>>, vector<2x24x32xf32>
    tpu.vector_store %arg26[%c0_57, %c0_58, %c0_59], %184 {strides = array<i32>} : memref<2x24x32xf32, #tpu.memory_space<vmem>>, vector<2x24x32xf32>,
    %c1_i32 = arith.constant 1 : i32
    %186 = arith.cmpi eq, %arg1, %c1_i32 : i32
    %187 = arith.extui %186 : i1 to i32
    %c0_i32_60 = arith.constant 0 : i32
    %188 = arith.cmpi ne, %187, %c0_i32_60 : i32
    scf.if %188 {
      %189 = vector.extract_strided_slice %184 {offsets = [0, 8, 0], sizes = [2, 8, 32], strides = [1, 1, 1]} : vector<2x24x32xf32> to vector<2x8x32xf32>
      %c0_61 = arith.constant 0 : index
      %c0_62 = arith.constant 0 : index
      %190 = vector.load %arg21[%c0_61, %c0_62] : memref<1x32xf32, #tpu.memory_space<vmem>>, vector<1x32xf32>
      %c0_63 = arith.constant 0 : index
      %c0_64 = arith.constant 0 : index
      %191 = vector.load %arg22[%c0_63, %c0_64] : memref<1x32xf32, #tpu.memory_space<vmem>>, vector<1x32xf32>
      %cst_65 = arith.constant dense<0.000000e+00> : vector<2x8xf32>
      %192 = vector.multi_reduction <add>, %189, %cst_65 [2] : vector<2x8x32xf32> to vector<2x8xf32>
      %193 = vector.shape_cast %192 : vector<2x8xf32> to vector<2x8x1xf32>
      %cst_66 = arith.constant 3.200000e+01 : f32
      %194 = vector.broadcast %cst_66 : f32 to vector<2x8x1xf32>
      %195 = arith.divf %193, %194 : vector<2x8x1xf32>
      %196 = vector.broadcast %195 : vector<2x8x1xf32> to vector<2x8x32xf32>
      %197 = arith.subf %189, %196 : vector<2x8x32xf32>
      %198 = arith.mulf %197, %197 : vector<2x8x32xf32>
      %cst_67 = arith.constant dense<0.000000e+00> : vector<2x8xf32>
      %199 = vector.multi_reduction <add>, %198, %cst_67 [2] : vector<2x8x32xf32> to vector<2x8xf32>
      %200 = vector.shape_cast %199 : vector<2x8xf32> to vector<2x8x1xf32>
      %cst_68 = arith.constant 3.200000e+01 : f32
      %201 = vector.broadcast %cst_68 : f32 to vector<2x8x1xf32>
      %202 = arith.divf %200, %201 : vector<2x8x1xf32>
      %cst_69 = arith.constant 9.99999974E-6 : f32
      %203 = vector.broadcast %cst_69 : f32 to vector<2x8x1xf32>
      %204 = arith.addf %202, %203 : vector<2x8x1xf32>
      %205 = math.rsqrt %204 : vector<2x8x1xf32>
      %206 = vector.broadcast %205 : vector<2x8x1xf32> to vector<2x8x32xf32>
      %207 = arith.mulf %197, %206 : vector<2x8x32xf32>
      %208 = vector.shape_cast %190 : vector<1x32xf32> to vector<1x1x32xf32>
      %209 = vector.broadcast %208 : vector<1x1x32xf32> to vector<2x8x32xf32>
      %210 = arith.mulf %207, %209 : vector<2x8x32xf32>
      %211 = vector.shape_cast %191 : vector<1x32xf32> to vector<1x1x32xf32>
      %212 = vector.broadcast %211 : vector<1x1x32xf32> to vector<2x8x32xf32>
      %213 = arith.addf %210, %212 : vector<2x8x32xf32>
      %214 = vector.shape_cast %213 : vector<2x8x32xf32> to vector<16x32xf32>
      %215 = arith.truncf %214 : vector<16x32xf32> to vector<16x32xbf16>
      %c0_70 = arith.constant 0 : index
      %c0_71 = arith.constant 0 : index
      %216 = vector.load %arg23[%c0_70, %c0_71] : memref<32x3xbf16, #tpu.memory_space<vmem>>, vector<32x3xbf16>
      %cst_72 = arith.constant dense<0.000000e+00> : vector<16x3xf32>
      %217 = tpu.matmul %215, %216, %cst_72 {dimension_numbers = #tpu.dot_dimension_numbers<[1], [0], [0], [1], [0, 0, 1, 1], [], []>} : vector<16x32xbf16>, vector<32x3xbf16>, vector<16x3xf32> -> vector<16x3xf32>
      %c0_73 = arith.constant 0 : index
      %c0_74 = arith.constant 0 : index
      %218 = vector.load %arg24[%c0_73, %c0_74] : memref<1x3xf32, #tpu.memory_space<vmem>>, vector<1x3xf32>
      %219 = vector.broadcast %218 : vector<1x3xf32> to vector<16x3xf32>
      %220 = arith.addf %217, %219 : vector<16x3xf32>
      %221 = math.tanh %220 : vector<16x3xf32>
      %cst_75 = arith.constant 1.000000e+00 : f32
      %222 = vector.broadcast %cst_75 : f32 to vector<16x3xf32>
      %223 = arith.mulf %221, %222 : vector<16x3xf32>
      %224 = vector.shape_cast %223 : vector<16x3xf32> to vector<2x8x3xf32>
      %c0_76 = arith.constant 0 : index
      %c0_77 = arith.constant 0 : index
      %c0_78 = arith.constant 0 : index
      %225 = vector.load %arg25[%c0_76, %c0_77, %c0_78] : memref<2x8x3xf32, #tpu.memory_space<vmem>>, vector<2x8x3xf32>
      tpu.vector_store %arg25[%c0_76, %c0_77, %c0_78], %224 {strides = array<i32>} : memref<2x8x3xf32, #tpu.memory_space<vmem>>, vector<2x8x3xf32>,
    } else {
    }
    return
  }
  func.func @transform_0(%arg0: i32, %arg1: i32) -> (i32, i32, i32) {
    %c0_i32 = arith.constant 0 : i32
    %c0_i32_0 = arith.constant 0 : i32
    %c0_i32_1 = arith.constant 0 : i32
    return %arg0, %c0_i32, %c0_i32_0 : i32, i32, i32
  }
  func.func @transform_1(%arg0: i32, %arg1: i32) -> (i32, i32, i32) {
    %c0_i32 = arith.constant 0 : i32
    %c0_i32_0 = arith.constant 0 : i32
    %c0_i32_1 = arith.constant 0 : i32
    return %arg0, %c0_i32, %c0_i32_0 : i32, i32, i32
  }
  func.func @transform_2(%arg0: i32, %arg1: i32) -> (i32, i32, i32) {
    %c0_i32 = arith.constant 0 : i32
    %c0_i32_0 = arith.constant 0 : i32
    %c0_i32_1 = arith.constant 0 : i32
    return %arg0, %c0_i32, %c0_i32_0 : i32, i32, i32
  }
  func.func @transform_3(%arg0: i32, %arg1: i32) -> (i32, i32, i32) {
    %c0_i32 = arith.constant 0 : i32
    %c0_i32_0 = arith.constant 0 : i32
    %c0_i32_1 = arith.constant 0 : i32
    return %arg0, %c0_i32, %c0_i32_0 : i32, i32, i32
  }
  func.func @transform_4(%arg0: i32, %arg1: i32) -> (i32, i32) {
    %c0_i32 = arith.constant 0 : i32
    %c0_i32_0 = arith.constant 0 : i32
    %c0_i32_1 = arith.constant 0 : i32
    return %c0_i32, %c0_i32_0 : i32, i32
  }
  func.func @transform_5(%arg0: i32, %arg1: i32) -> (i32, i32) {
    %c0_i32 = arith.constant 0 : i32
    %c0_i32_0 = arith.constant 0 : i32
    %c0_i32_1 = arith.constant 0 : i32
    return %c0_i32, %c0_i32_0 : i32, i32
  }
  func.func @transform_6(%arg0: i32, %arg1: i32) -> (i32, i32) {
    %c0_i32 = arith.constant 0 : i32
    %c0_i32_0 = arith.constant 0 : i32
    %c0_i32_1 = arith.constant 0 : i32
    return %c0_i32, %c0_i32_0 : i32, i32
  }
  func.func @transform_7(%arg0: i32, %arg1: i32) -> (i32, i32) {
    %c0_i32 = arith.constant 0 : i32
    %c0_i32_0 = arith.constant 0 : i32
    %c0_i32_1 = arith.constant 0 : i32
    return %c0_i32, %c0_i32_0 : i32, i32
  }
  func.func @transform_8(%arg0: i32, %arg1: i32) -> (i32, i32) {
    %c0_i32 = arith.constant 0 : i32
    %c0_i32_0 = arith.constant 0 : i32
    %c0_i32_1 = arith.constant 0 : i32
    return %c0_i32, %c0_i32_0 : i32, i32
  }
  func.func @transform_9(%arg0: i32, %arg1: i32) -> (i32, i32) {
    %c0_i32 = arith.constant 0 : i32
    %c0_i32_0 = arith.constant 0 : i32
    %c0_i32_1 = arith.constant 0 : i32
    return %c0_i32, %c0_i32_0 : i32, i32
  }
  func.func @transform_10(%arg0: i32, %arg1: i32) -> (i32, i32) {
    %c0_i32 = arith.constant 0 : i32
    %c0_i32_0 = arith.constant 0 : i32
    %c0_i32_1 = arith.constant 0 : i32
    return %c0_i32, %c0_i32_0 : i32, i32
  }
  func.func @transform_11(%arg0: i32, %arg1: i32) -> (i32, i32) {
    %c0_i32 = arith.constant 0 : i32
    %c0_i32_0 = arith.constant 0 : i32
    %c0_i32_1 = arith.constant 0 : i32
    return %c0_i32, %c0_i32_0 : i32, i32
  }
  func.func @transform_12(%arg0: i32, %arg1: i32) -> (i32, i32, i32) {
    %c0_i32 = arith.constant 0 : i32
    %c0_i32_0 = arith.constant 0 : i32
    %c0_i32_1 = arith.constant 0 : i32
    return %arg1, %c0_i32, %c0_i32_0 : i32, i32, i32
  }
  func.func @transform_13(%arg0: i32, %arg1: i32) -> (i32, i32, i32) {
    %c0_i32 = arith.constant 0 : i32
    %c0_i32_0 = arith.constant 0 : i32
    %c0_i32_1 = arith.constant 0 : i32
    return %arg1, %c0_i32, %c0_i32_0 : i32, i32, i32
  }
  func.func @transform_14(%arg0: i32, %arg1: i32) -> (i32, i32, i32) {
    %c0_i32 = arith.constant 0 : i32
    %c0_i32_0 = arith.constant 0 : i32
    %c0_i32_1 = arith.constant 0 : i32
    return %arg1, %c0_i32, %c0_i32_0 : i32, i32, i32
  }
  func.func @transform_15(%arg0: i32, %arg1: i32) -> (i32, i32, i32) {
    %c0_i32 = arith.constant 0 : i32
    %c0_i32_0 = arith.constant 0 : i32
    %c0_i32_1 = arith.constant 0 : i32
    return %arg1, %c0_i32, %c0_i32_0 : i32, i32, i32
  }
  func.func @transform_16(%arg0: i32, %arg1: i32) -> (i32, i32, i32) {
    %c0_i32 = arith.constant 0 : i32
    %c0_i32_0 = arith.constant 0 : i32
    %c0_i32_1 = arith.constant 0 : i32
    return %arg1, %c0_i32, %c0_i32_0 : i32, i32, i32
  }
  func.func @transform_17(%arg0: i32, %arg1: i32) -> (i32, i32, i32) {
    %c0_i32 = arith.constant 0 : i32
    %c0_i32_0 = arith.constant 0 : i32
    %c0_i32_1 = arith.constant 0 : i32
    return %arg1, %c0_i32, %c0_i32_0 : i32, i32, i32
  }
  func.func @transform_18(%arg0: i32, %arg1: i32) -> (i32, i32, i32) {
    %c0_i32 = arith.constant 0 : i32
    %c0_i32_0 = arith.constant 0 : i32
    %c0_i32_1 = arith.constant 0 : i32
    return %arg1, %c0_i32, %c0_i32_0 : i32, i32, i32
  }
  func.func @transform_19(%arg0: i32, %arg1: i32) -> (i32, i32) {
    %c0_i32 = arith.constant 0 : i32
    %c0_i32_0 = arith.constant 0 : i32
    %c0_i32_1 = arith.constant 0 : i32
    return %c0_i32, %c0_i32_0 : i32, i32
  }
  func.func @transform_20(%arg0: i32, %arg1: i32) -> (i32, i32) {
    %c0_i32 = arith.constant 0 : i32
    %c0_i32_0 = arith.constant 0 : i32
    %c0_i32_1 = arith.constant 0 : i32
    return %c0_i32, %c0_i32_0 : i32, i32
  }
  func.func @transform_21(%arg0: i32, %arg1: i32) -> (i32, i32) {
    %c0_i32 = arith.constant 0 : i32
    %c0_i32_0 = arith.constant 0 : i32
    %c0_i32_1 = arith.constant 0 : i32
    return %c0_i32, %c0_i32_0 : i32, i32
  }
  func.func @transform_22(%arg0: i32, %arg1: i32) -> (i32, i32) {
    %c0_i32 = arith.constant 0 : i32
    %c0_i32_0 = arith.constant 0 : i32
    %c0_i32_1 = arith.constant 0 : i32
    return %c0_i32, %c0_i32_0 : i32, i32
  }
  func.func @transform_23(%arg0: i32, %arg1: i32) -> (i32, i32, i32) {
    %c0_i32 = arith.constant 0 : i32
    %c0_i32_0 = arith.constant 0 : i32
    %c0_i32_1 = arith.constant 0 : i32
    return %arg0, %c0_i32, %c0_i32_0 : i32, i32, i32
  }
}

</mosaic_0001>

<llo_original>
// kernel: tpu_custom_call.1
$region0: #{tpu_custom_call.1}
  #allocation0 [shape = 'u32[]', space=smem, size = 0x4, offset = 0x4, fixed_abs, tag = 'smem constant byte address 0x4 - core index']
  #allocation1 [shape = 'u32[144,128]{1,0:T(1,128)}', space=vmem, size = 0x12000, scoped, tag = 'internal scratch']
  #allocation2 [shape = 'f32[2,24,32]{2,1,0:T(8,128)}', space=vmem, size = 0x6000, scoped, tag = 'scratch operand']
  %s0 = inlined_call_operand.vmem [shape: f32[2,8,4], index: 0, kind: input, shape index: {}]
  %s1 = inlined_call_operand.vmem [shape: f32[2,8,3], index: 1, kind: input, shape index: {}]
  %s2 = inlined_call_operand.vmem [shape: f32[2,8,1], index: 2, kind: input, shape index: {}]
  %s3 = inlined_call_operand.vmem [shape: f32[2,8,32], index: 3, kind: input, shape index: {}]
  %s4 = inlined_call_operand.vmem [shape: bf16[4,32], index: 4, kind: input, shape index: {}]
  %s5 = inlined_call_operand.vmem [shape: f32[1,32], index: 5, kind: input, shape index: {}]
  %s6 = inlined_call_operand.vmem [shape: bf16[3,32], index: 6, kind: input, shape index: {}]
  %s7 = inlined_call_operand.vmem [shape: f32[1,32], index: 7, kind: input, shape index: {}]
  %s8 = inlined_call_operand.vmem [shape: f32[1,32], index: 8, kind: input, shape index: {}]
  %s9 = inlined_call_operand.vmem [shape: f32[1,32], index: 9, kind: input, shape index: {}]
  %s10 = inlined_call_operand.vmem [shape: f32[1,32], index: 10, kind: input, shape index: {}]
  %s11 = inlined_call_operand.vmem [shape: f32[1,32], index: 11, kind: input, shape index: {}]
  %s12 = inlined_call_operand.vmem [shape: f32[2,6,32], index: 12, kind: input, shape index: {}]
  %s13 = inlined_call_operand.vmem [shape: f32[2,1,96], index: 13, kind: input, shape index: {}]
  %s14 = inlined_call_operand.vmem [shape: f32[2,1,128], index: 14, kind: input, shape index: {}]
  %s15 = inlined_call_operand.vmem [shape: bf16[2,32,96], index: 15, kind: input, shape index: {}]
  %s16 = inlined_call_operand.vmem [shape: bf16[2,32,32], index: 16, kind: input, shape index: {}]
  %s17 = inlined_call_operand.vmem [shape: bf16[2,32,128], index: 17, kind: input, shape index: {}]
  %s18 = inlined_call_operand.vmem [shape: bf16[2,128,32], index: 18, kind: input, shape index: {}]
  %s19 = inlined_call_operand.vmem [shape: f32[1,32], index: 19, kind: input, shape index: {}]
  %s20 = inlined_call_operand.vmem [shape: f32[1,32], index: 20, kind: input, shape index: {}]
  %s21 = inlined_call_operand.vmem [shape: bf16[32,3], index: 21, kind: input, shape index: {}]
  %s22 = inlined_call_operand.vmem [shape: f32[1,3], index: 22, kind: input, shape index: {}]
  %s23 = inlined_call_operand.vmem [shape: f32[2,8,3], index: 23, kind: output, shape index: {}]
  %s24 = sld [smem:[#allocation0]]
  $region133: #{tpu_custom_call.1} parent=0
    _
  %s26 = ssub.s32 1, %s24
  %s27 = scalar_select 0, %s26, %s24
  loop: start=0, step=1, limit=4
  $region2: #{tpu_custom_call.1} parent=0 // loop_pre_header
    _
  $region3: #{tpu_custom_call.1} parent=0 // loop_header
    %s29 = sphi 0, %s33
    %p30 = scmp.ge.s32.totalorder %s29, 4
    %s36 = sphi 0, %s48
    %s37 = sphi 0, %s44
    %s38 = sphi 0, %s36
    %s39 = sphi 0, %s37
    %s40 = sphi 0, %s38
    %s41 = sphi 0, %s39
    %s51 = sphi 0, %s53
    %s54 = sphi 0, %s51
    %s55 = sphi 0, %s54
    %s71 = sphi 0, %s55
    %s77 = sphi 0, %s79
    %s80 = sphi 0, %s77
    %s81 = sphi 0, %s80
    %s97 = sphi 0, %s81
    %s103 = sphi 0, %s105
    %s106 = sphi 0, %s103
    %s107 = sphi 0, %s106
    %s123 = sphi 0, %s107
    %s129 = sphi 0, %s131
    %s132 = sphi 0, %s129
    %s133 = sphi 0, %s132
    %s149 = sphi 0, %s133
    %s153 = sphi 0, %s153
    %s155 = sphi 0, %s153
    %s156 = sphi 0, %s155
    %s170 = sphi 0, %s156
    %s174 = sphi 0, %s174
    %s176 = sphi 0, %s174
    %s177 = sphi 0, %s176
    %s191 = sphi 0, %s177
    %s195 = sphi 0, %s195
    %s197 = sphi 0, %s195
    %s198 = sphi 0, %s197
    %s212 = sphi 0, %s198
    %s216 = sphi 0, %s216
    %s218 = sphi 0, %s216
    %s219 = sphi 0, %s218
    %s233 = sphi 0, %s219
    %s237 = sphi 0, %s237
    %s239 = sphi 0, %s237
    %s240 = sphi 0, %s239
    %s254 = sphi 0, %s240
    %s258 = sphi 0, %s258
    %s260 = sphi 0, %s258
    %s261 = sphi 0, %s260
    %s275 = sphi 0, %s261
    %s279 = sphi 0, %s279
    %s281 = sphi 0, %s279
    %s282 = sphi 0, %s281
    %s296 = sphi 0, %s282
    %s300 = sphi 0, %s300
    %s302 = sphi 0, %s300
    %s303 = sphi 0, %s302
    %s317 = sphi 0, %s303
    %s323 = sphi 0, %s325
    %s326 = sphi 0, %s323
    %s327 = sphi 0, %s326
    %s343 = sphi 0, %s327
    %s349 = sphi 0, %s351
    %s352 = sphi 0, %s349
    %s353 = sphi 0, %s352
    %s369 = sphi 0, %s353
    %s375 = sphi 0, %s377
    %s378 = sphi 0, %s375
    %s379 = sphi 0, %s378
    %s395 = sphi 0, %s379
    %s401 = sphi 0, %s403
    %s404 = sphi 0, %s401
    %s405 = sphi 0, %s404
    %s421 = sphi 0, %s405
    %s427 = sphi 0, %s429
    %s430 = sphi 0, %s427
    %s431 = sphi 0, %s430
    %s447 = sphi 0, %s431
    %s453 = sphi 0, %s455
    %s456 = sphi 0, %s453
    %s457 = sphi 0, %s456
    %s473 = sphi 0, %s457
    %s479 = sphi 0, %s481
    %s482 = sphi 0, %s479
    %s483 = sphi 0, %s482
    %s499 = sphi 0, %s483
    %s503 = sphi 0, %s503
    %s505 = sphi 0, %s503
    %s506 = sphi 0, %s505
    %s520 = sphi 0, %s506
    %s524 = sphi 0, %s524
    %s526 = sphi 0, %s524
    %s527 = sphi 0, %s526
    %s541 = sphi 0, %s527
    %s545 = sphi 0, %s545
    %s547 = sphi 0, %s545
    %s548 = sphi 0, %s547
    %s562 = sphi 0, %s548
    %s566 = sphi 0, %s566
    %s568 = sphi 0, %s566
    %s569 = sphi 0, %s568
    %s583 = sphi 0, %s569
    %s589 = sphi 0, %s591
    %s592 = sphi 0, %s589
    %s593 = sphi 0, %s592
    %s609 = sphi 0, %s593
  $region4: #{tpu_custom_call.1} parent=0 // loop_header_branch
    %32 = sbr.rel (%p30) target = $region8
  $region5: #{tpu_custom_call.1} parent=0 // loop_body
    %s34 = ssub.s32 %s29, 1
    %s35 = ssub.s32 %s29, 2
    %s42 = sadd.s32 1, %s37
    %p43 = scmp.ge.s32.totalorder %s42, 2
    %s44 = scalar_select %p43, 0, %s42
    %s45 = sadd.s32 1, %s36
    %s46 = scalar_select %p43, %s45, %s36
    %p47 = scmp.ge.s32.totalorder %s46, 1
    %s48 = scalar_select %p47, 0, %s46
    %s49 = ssub.s32 %s36, %s48
    %p50 = scmp.eq.s32.totalorder %s49, 0
    %s52 = sadd.s32 %s51, 1
    %s53 = scalar_select %p50, %s51, %s52
    %p56 = pneg %p50
    %p57 = scmp.eq.s32.totalorder %s29, 1
    %p58 = por %p56, %p57
    %p59 = scmp.ne.s32.totalorder %s51, %s54
    %p60 = scmp.eq.s32.totalorder %s29, 0
    %p61 = por %p59, %p60
    %p62 = scmp.ne.s32.totalorder %s51, %s54
    %p63 = scmp.eq.s32.totalorder %s34, 1
    %p64 = por %p62, %p63
    %p65 = scmp.ne.s32.totalorder %s54, %s55
    %p66 = scmp.eq.s32.totalorder %s34, 0
    %p67 = por %p65, %p66
    %p68 = scmp.ne.s32.totalorder %s54, %s55
    %p69 = scmp.eq.s32.totalorder %s35, 1
    %p70 = por %p68, %p69
    %p72 = scmp.ne.s32.totalorder %s55, %s71
    %p73 = scmp.eq.s32.totalorder %s35, 0
    %p74 = por %p72, %p73
    %s75 = ssub.s32 %s36, %s48
    %p76 = scmp.eq.s32.totalorder %s75, 0
    %s78 = sadd.s32 %s77, 1
    %s79 = scalar_select %p76, %s77, %s78
    %p82 = pneg %p76
    %p83 = scmp.eq.s32.totalorder %s29, 1
    %p84 = por %p82, %p83
    %p85 = scmp.ne.s32.totalorder %s77, %s80
    %p86 = scmp.eq.s32.totalorder %s29, 0
    %p87 = por %p85, %p86
    %p88 = scmp.ne.s32.totalorder %s77, %s80
    %p89 = scmp.eq.s32.totalorder %s34, 1
    %p90 = por %p88, %p89
    %p91 = scmp.ne.s32.totalorder %s80, %s81
    %p92 = scmp.eq.s32.totalorder %s34, 0
    %p93 = por %p91, %p92
    %p94 = scmp.ne.s32.totalorder %s80, %s81
    %p95 = scmp.eq.s32.totalorder %s35, 1
    %p96 = por %p94, %p95
    %p98 = scmp.ne.s32.totalorder %s81, %s97
    %p99 = scmp.eq.s32.totalorder %s35, 0
    %p100 = por %p98, %p99
    %s101 = ssub.s32 %s36, %s48
    %p102 = scmp.eq.s32.totalorder %s101, 0
    %s104 = sadd.s32 %s103, 1
    %s105 = scalar_select %p102, %s103, %s104
    %p108 = pneg %p102
    %p109 = scmp.eq.s32.totalorder %s29, 1
    %p110 = por %p108, %p109
    %p111 = scmp.ne.s32.totalorder %s103, %s106
    %p112 = scmp.eq.s32.totalorder %s29, 0
    %p113 = por %p111, %p112
    %p114 = scmp.ne.s32.totalorder %s103, %s106
    %p115 = scmp.eq.s32.totalorder %s34, 1
    %p116 = por %p114, %p115
    %p117 = scmp.ne.s32.totalorder %s106, %s107
    %p118 = scmp.eq.s32.totalorder %s34, 0
    %p119 = por %p117, %p118
    %p120 = scmp.ne.s32.totalorder %s106, %s107
    %p121 = scmp.eq.s32.totalorder %s35, 1
    %p122 = por %p120, %p121
    %p124 = scmp.ne.s32.totalorder %s107, %s123
    %p125 = scmp.eq.s32.totalorder %s35, 0
    %p126 = por %p124, %p125
    %s127 = ssub.s32 %s36, %s48
    %p128 = scmp.eq.s32.totalorder %s127, 0
    %s130 = sadd.s32 %s129, 1
    %s131 = scalar_select %p128, %s129, %s130
    %p134 = pneg %p128
    %p135 = scmp.eq.s32.totalorder %s29, 1
    %p136 = por %p134, %p135
    %p137 = scmp.ne.s32.totalorder %s129, %s132
    %p138 = scmp.eq.s32.totalorder %s29, 0
    %p139 = por %p137, %p138
    %p140 = scmp.ne.s32.totalorder %s129, %s132
    %p141 = scmp.eq.s32.totalorder %s34, 1
    %p142 = por %p140, %p141
    %p143 = scmp.ne.s32.totalorder %s132, %s133
    %p144 = scmp.eq.s32.totalorder %s34, 0
    %p145 = por %p143, %p144
    %p146 = scmp.ne.s32.totalorder %s132, %s133
    %p147 = scmp.eq.s32.totalorder %s35, 1
    %p148 = por %p146, %p147
    %p150 = scmp.ne.s32.totalorder %s133, %s149
    %p151 = scmp.eq.s32.totalorder %s35, 0
    %p152 = por %p150, %p151
    %s154 = sadd.s32 %s153, 1
    %p157 = scmp.eq.s32.totalorder %s29, 1
    %p158 = scmp.ne.s32.totalorder %s153, %s155
    %p159 = scmp.eq.s32.totalorder %s29, 0
    %p160 = por %p158, %p159
    %p161 = scmp.ne.s32.totalorder %s153, %s155
    %p162 = scmp.eq.s32.totalorder %s34, 1
    %p163 = por %p161, %p162
    %p164 = scmp.ne.s32.totalorder %s155, %s156
    %p165 = scmp.eq.s32.totalorder %s34, 0
    %p166 = por %p164, %p165
    %p167 = scmp.ne.s32.totalorder %s155, %s156
    %p168 = scmp.eq.s32.totalorder %s35, 1
    %p169 = por %p167, %p168
    %p171 = scmp.ne.s32.totalorder %s156, %s170
    %p172 = scmp.eq.s32.totalorder %s35, 0
    %p173 = por %p171, %p172
    %s175 = sadd.s32 %s174, 1
    %p178 = scmp.eq.s32.totalorder %s29, 1
    %p179 = scmp.ne.s32.totalorder %s174, %s176
    %p180 = scmp.eq.s32.totalorder %s29, 0
    %p181 = por %p179, %p180
    %p182 = scmp.ne.s32.totalorder %s174, %s176
    %p183 = scmp.eq.s32.totalorder %s34, 1
    %p184 = por %p182, %p183
    %p185 = scmp.ne.s32.totalorder %s176, %s177
    %p186 = scmp.eq.s32.totalorder %s34, 0
    %p187 = por %p185, %p186
    %p188 = scmp.ne.s32.totalorder %s176, %s177
    %p189 = scmp.eq.s32.totalorder %s35, 1
    %p190 = por %p188, %p189
    %p192 = scmp.ne.s32.totalorder %s177, %s191
    %p193 = scmp.eq.s32.totalorder %s35, 0
    %p194 = por %p192, %p193
    %s196 = sadd.s32 %s195, 1
    %p199 = scmp.eq.s32.totalorder %s29, 1
    %p200 = scmp.ne.s32.totalorder %s195, %s197
    %p201 = scmp.eq.s32.totalorder %s29, 0
    %p202 = por %p200, %p201
    %p203 = scmp.ne.s32.totalorder %s195, %s197
    %p204 = scmp.eq.s32.totalorder %s34, 1
    %p205 = por %p203, %p204
    %p206 = scmp.ne.s32.totalorder %s197, %s198
    %p207 = scmp.eq.s32.totalorder %s34, 0
    %p208 = por %p206, %p207
    %p209 = scmp.ne.s32.totalorder %s197, %s198
    %p210 = scmp.eq.s32.totalorder %s35, 1
    %p211 = por %p209, %p210
    %p213 = scmp.ne.s32.totalorder %s198, %s212
    %p214 = scmp.eq.s32.totalorder %s35, 0
    %p215 = por %p213, %p214
    %s217 = sadd.s32 %s216, 1
    %p220 = scmp.eq.s32.totalorder %s29, 1
    %p221 = scmp.ne.s32.totalorder %s216, %s218
    %p222 = scmp.eq.s32.totalorder %s29, 0
    %p223 = por %p221, %p222
    %p224 = scmp.ne.s32.totalorder %s216, %s218
    %p225 = scmp.eq.s32.totalorder %s34, 1
    %p226 = por %p224, %p225
    %p227 = scmp.ne.s32.totalorder %s218, %s219
    %p228 = scmp.eq.s32.totalorder %s34, 0
    %p229 = por %p227, %p228
    %p230 = scmp.ne.s32.totalorder %s218, %s219
    %p231 = scmp.eq.s32.totalorder %s35, 1
    %p232 = por %p230, %p231
    %p234 = scmp.ne.s32.totalorder %s219, %s233
    %p235 = scmp.eq.s32.totalorder %s35, 0
    %p236 = por %p234, %p235
    %s238 = sadd.s32 %s237, 1
    %p241 = scmp.eq.s32.totalorder %s29, 1
    %p242 = scmp.ne.s32.totalorder %s237, %s239
    %p243 = scmp.eq.s32.totalorder %s29, 0
    %p244 = por %p242, %p243
    %p245 = scmp.ne.s32.totalorder %s237, %s239
    %p246 = scmp.eq.s32.totalorder %s34, 1
    %p247 = por %p245, %p246
    %p248 = scmp.ne.s32.totalorder %s239, %s240
    %p249 = scmp.eq.s32.totalorder %s34, 0
    %p250 = por %p248, %p249
    %p251 = scmp.ne.s32.totalorder %s239, %s240
    %p252 = scmp.eq.s32.totalorder %s35, 1
    %p253 = por %p251, %p252
    %p255 = scmp.ne.s32.totalorder %s240, %s254
    %p256 = scmp.eq.s32.totalorder %s35, 0
    %p257 = por %p255, %p256
    %s259 = sadd.s32 %s258, 1
    %p262 = scmp.eq.s32.totalorder %s29, 1
    %p263 = scmp.ne.s32.totalorder %s258, %s260
    %p264 = scmp.eq.s32.totalorder %s29, 0
    %p265 = por %p263, %p264
    %p266 = scmp.ne.s32.totalorder %s258, %s260
    %p267 = scmp.eq.s32.totalorder %s34, 1
    %p268 = por %p266, %p267
    %p269 = scmp.ne.s32.totalorder %s260, %s261
    %p270 = scmp.eq.s32.totalorder %s34, 0
    %p271 = por %p269, %p270
    %p272 = scmp.ne.s32.totalorder %s260, %s261
    %p273 = scmp.eq.s32.totalorder %s35, 1
    %p274 = por %p272, %p273
    %p276 = scmp.ne.s32.totalorder %s261, %s275
    %p277 = scmp.eq.s32.totalorder %s35, 0
    %p278 = por %p276, %p277
    %s280 = sadd.s32 %s279, 1
    %p283 = scmp.eq.s32.totalorder %s29, 1
    %p284 = scmp.ne.s32.totalorder %s279, %s281
    %p285 = scmp.eq.s32.totalorder %s29, 0
    %p286 = por %p284, %p285
    %p287 = scmp.ne.s32.totalorder %s279, %s281
    %p288 = scmp.eq.s32.totalorder %s34, 1
    %p289 = por %p287, %p288
    %p290 = scmp.ne.s32.totalorder %s281, %s282
    %p291 = scmp.eq.s32.totalorder %s34, 0
    %p292 = por %p290, %p291
    %p293 = scmp.ne.s32.totalorder %s281, %s282
    %p294 = scmp.eq.s32.totalorder %s35, 1
    %p295 = por %p293, %p294
    %p297 = scmp.ne.s32.totalorder %s282, %s296
    %p298 = scmp.eq.s32.totalorder %s35, 0
    %p299 = por %p297, %p298
    %s301 = sadd.s32 %s300, 1
    %p304 = scmp.eq.s32.totalorder %s29, 1
    %p305 = scmp.ne.s32.totalorder %s300, %s302
    %p306 = scmp.eq.s32.totalorder %s29, 0
    %p307 = por %p305, %p306
    %p308 = scmp.ne.s32.totalorder %s300, %s302
    %p309 = scmp.eq.s32.totalorder %s34, 1
    %p310 = por %p308, %p309
    %p311 = scmp.ne.s32.totalorder %s302, %s303
    %p312 = scmp.eq.s32.totalorder %s34, 0
    %p313 = por %p311, %p312
    %p314 = scmp.ne.s32.totalorder %s302, %s303
    %p315 = scmp.eq.s32.totalorder %s35, 1
    %p316 = por %p314, %p315
    %p318 = scmp.ne.s32.totalorder %s303, %s317
    %p319 = scmp.eq.s32.totalorder %s35, 0
    %p320 = por %p318, %p319
    %s321 = ssub.s32 %s37, %s44
    %p322 = scmp.eq.s32.totalorder %s321, 0
    %s324 = sadd.s32 %s323, 1
    %s325 = scalar_select %p322, %s323, %s324
    %p328 = pneg %p322
    %p329 = scmp.eq.s32.totalorder %s29, 1
    %p330 = por %p328, %p329
    %p331 = scmp.ne.s32.totalorder %s323, %s326
    %p332 = scmp.eq.s32.totalorder %s29, 0
    %p333 = por %p331, %p332
    %p334 = scmp.ne.s32.totalorder %s323, %s326
    %p335 = scmp.eq.s32.totalorder %s34, 1
    %p336 = por %p334, %p335
    %p337 = scmp.ne.s32.totalorder %s326, %s327
    %p338 = scmp.eq.s32.totalorder %s34, 0
    %p339 = por %p337, %p338
    %p340 = scmp.ne.s32.totalorder %s326, %s327
    %p341 = scmp.eq.s32.totalorder %s35, 1
    %p342 = por %p340, %p341
    %p344 = scmp.ne.s32.totalorder %s327, %s343
    %p345 = scmp.eq.s32.totalorder %s35, 0
    %p346 = por %p344, %p345
    %s347 = ssub.s32 %s37, %s44
    %p348 = scmp.eq.s32.totalorder %s347, 0
    %s350 = sadd.s32 %s349, 1
    %s351 = scalar_select %p348, %s349, %s350
    %p354 = pneg %p348
    %p355 = scmp.eq.s32.totalorder %s29, 1
    %p356 = por %p354, %p355
    %p357 = scmp.ne.s32.totalorder %s349, %s352
    %p358 = scmp.eq.s32.totalorder %s29, 0
    %p359 = por %p357, %p358
    %p360 = scmp.ne.s32.totalorder %s349, %s352
    %p361 = scmp.eq.s32.totalorder %s34, 1
    %p362 = por %p360, %p361
    %p363 = scmp.ne.s32.totalorder %s352, %s353
    %p364 = scmp.eq.s32.totalorder %s34, 0
    %p365 = por %p363, %p364
    %p366 = scmp.ne.s32.totalorder %s352, %s353
    %p367 = scmp.eq.s32.totalorder %s35, 1
    %p368 = por %p366, %p367
    %p370 = scmp.ne.s32.totalorder %s353, %s369
    %p371 = scmp.eq.s32.totalorder %s35, 0
    %p372 = por %p370, %p371
    %s373 = ssub.s32 %s37, %s44
    %p374 = scmp.eq.s32.totalorder %s373, 0
    %s376 = sadd.s32 %s375, 1
    %s377 = scalar_select %p374, %s375, %s376
    %p380 = pneg %p374
    %p381 = scmp.eq.s32.totalorder %s29, 1
    %p382 = por %p380, %p381
    %p383 = scmp.ne.s32.totalorder %s375, %s378
    %p384 = scmp.eq.s32.totalorder %s29, 0
    %p385 = por %p383, %p384
    %p386 = scmp.ne.s32.totalorder %s375, %s378
    %p387 = scmp.eq.s32.totalorder %s34, 1
    %p388 = por %p386, %p387
    %p389 = scmp.ne.s32.totalorder %s378, %s379
    %p390 = scmp.eq.s32.totalorder %s34, 0
    %p391 = por %p389, %p390
    %p392 = scmp.ne.s32.totalorder %s378, %s379
    %p393 = scmp.eq.s32.totalorder %s35, 1
    %p394 = por %p392, %p393
    %p396 = scmp.ne.s32.totalorder %s379, %s395
    %p397 = scmp.eq.s32.totalorder %s35, 0
    %p398 = por %p396, %p397
    %s399 = ssub.s32 %s37, %s44
    %p400 = scmp.eq.s32.totalorder %s399, 0
    %s402 = sadd.s32 %s401, 1
    %s403 = scalar_select %p400, %s401, %s402
    %p406 = pneg %p400
    %p407 = scmp.eq.s32.totalorder %s29, 1
    %p408 = por %p406, %p407
    %p409 = scmp.ne.s32.totalorder %s401, %s404
    %p410 = scmp.eq.s32.totalorder %s29, 0
    %p411 = por %p409, %p410
    %p412 = scmp.ne.s32.totalorder %s401, %s404
    %p413 = scmp.eq.s32.totalorder %s34, 1
    %p414 = por %p412, %p413
    %p415 = scmp.ne.s32.totalorder %s404, %s405
    %p416 = scmp.eq.s32.totalorder %s34, 0
    %p417 = por %p415, %p416
    %p418 = scmp.ne.s32.totalorder %s404, %s405
    %p419 = scmp.eq.s32.totalorder %s35, 1
    %p420 = por %p418, %p419
    %p422 = scmp.ne.s32.totalorder %s405, %s421
    %p423 = scmp.eq.s32.totalorder %s35, 0
    %p424 = por %p422, %p423
    %s425 = ssub.s32 %s37, %s44
    %p426 = scmp.eq.s32.totalorder %s425, 0
    %s428 = sadd.s32 %s427, 1
    %s429 = scalar_select %p426, %s427, %s428
    %p432 = pneg %p426
    %p433 = scmp.eq.s32.totalorder %s29, 1
    %p434 = por %p432, %p433
    %p435 = scmp.ne.s32.totalorder %s427, %s430
    %p436 = scmp.eq.s32.totalorder %s29, 0
    %p437 = por %p435, %p436
    %p438 = scmp.ne.s32.totalorder %s427, %s430
    %p439 = scmp.eq.s32.totalorder %s34, 1
    %p440 = por %p438, %p439
    %p441 = scmp.ne.s32.totalorder %s430, %s431
    %p442 = scmp.eq.s32.totalorder %s34, 0
    %p443 = por %p441, %p442
    %p444 = scmp.ne.s32.totalorder %s430, %s431
    %p445 = scmp.eq.s32.totalorder %s35, 1
    %p446 = por %p444, %p445
    %p448 = scmp.ne.s32.totalorder %s431, %s447
    %p449 = scmp.eq.s32.totalorder %s35, 0
    %p450 = por %p448, %p449
    %s451 = ssub.s32 %s37, %s44
    %p452 = scmp.eq.s32.totalorder %s451, 0
    %s454 = sadd.s32 %s453, 1
    %s455 = scalar_select %p452, %s453, %s454
    %p458 = pneg %p452
    %p459 = scmp.eq.s32.totalorder %s29, 1
    %p460 = por %p458, %p459
    %p461 = scmp.ne.s32.totalorder %s453, %s456
    %p462 = scmp.eq.s32.totalorder %s29, 0
    %p463 = por %p461, %p462
    %p464 = scmp.ne.s32.totalorder %s453, %s456
    %p465 = scmp.eq.s32.totalorder %s34, 1
    %p466 = por %p464, %p465
    %p467 = scmp.ne.s32.totalorder %s456, %s457
    %p468 = scmp.eq.s32.totalorder %s34, 0
    %p469 = por %p467, %p468
    %p470 = scmp.ne.s32.totalorder %s456, %s457
    %p471 = scmp.eq.s32.totalorder %s35, 1
    %p472 = por %p470, %p471
    %p474 = scmp.ne.s32.totalorder %s457, %s473
    %p475 = scmp.eq.s32.totalorder %s35, 0
    %p476 = por %p474, %p475
    %s477 = ssub.s32 %s37, %s44
    %p478 = scmp.eq.s32.totalorder %s477, 0
    %s480 = sadd.s32 %s479, 1
    %s481 = scalar_select %p478, %s479, %s480
    %p484 = pneg %p478
    %p485 = scmp.eq.s32.totalorder %s29, 1
    %p486 = por %p484, %p485
    %p487 = scmp.ne.s32.totalorder %s479, %s482
    %p488 = scmp.eq.s32.totalorder %s29, 0
    %p489 = por %p487, %p488
    %p490 = scmp.ne.s32.totalorder %s479, %s482
    %p491 = scmp.eq.s32.totalorder %s34, 1
    %p492 = por %p490, %p491
    %p493 = scmp.ne.s32.totalorder %s482, %s483
    %p494 = scmp.eq.s32.totalorder %s34, 0
    %p495 = por %p493, %p494
    %p496 = scmp.ne.s32.totalorder %s482, %s483
    %p497 = scmp.eq.s32.totalorder %s35, 1
    %p498 = por %p496, %p497
    %p500 = scmp.ne.s32.totalorder %s483, %s499
    %p501 = scmp.eq.s32.totalorder %s35, 0
    %p502 = por %p500, %p501
    %s504 = sadd.s32 %s503, 1
    %p507 = scmp.eq.s32.totalorder %s29, 1
    %p508 = scmp.ne.s32.totalorder %s503, %s505
    %p509 = scmp.eq.s32.totalorder %s29, 0
    %p510 = por %p508, %p509
    %p511 = scmp.ne.s32.totalorder %s503, %s505
    %p512 = scmp.eq.s32.totalorder %s34, 1
    %p513 = por %p511, %p512
    %p514 = scmp.ne.s32.totalorder %s505, %s506
    %p515 = scmp.eq.s32.totalorder %s34, 0
    %p516 = por %p514, %p515
    %p517 = scmp.ne.s32.totalorder %s505, %s506
    %p518 = scmp.eq.s32.totalorder %s35, 1
    %p519 = por %p517, %p518
    %p521 = scmp.ne.s32.totalorder %s506, %s520
    %p522 = scmp.eq.s32.totalorder %s35, 0
    %p523 = por %p521, %p522
    %s525 = sadd.s32 %s524, 1
    %p528 = scmp.eq.s32.totalorder %s29, 1
    %p529 = scmp.ne.s32.totalorder %s524, %s526
    %p530 = scmp.eq.s32.totalorder %s29, 0
    %p531 = por %p529, %p530
    %p532 = scmp.ne.s32.totalorder %s524, %s526
    %p533 = scmp.eq.s32.totalorder %s34, 1
    %p534 = por %p532, %p533
    %p535 = scmp.ne.s32.totalorder %s526, %s527
    %p536 = scmp.eq.s32.totalorder %s34, 0
    %p537 = por %p535, %p536
    %p538 = scmp.ne.s32.totalorder %s526, %s527
    %p539 = scmp.eq.s32.totalorder %s35, 1
    %p540 = por %p538, %p539
    %p542 = scmp.ne.s32.totalorder %s527, %s541
    %p543 = scmp.eq.s32.totalorder %s35, 0
    %p544 = por %p542, %p543
    %s546 = sadd.s32 %s545, 1
    %p549 = scmp.eq.s32.totalorder %s29, 1
    %p550 = scmp.ne.s32.totalorder %s545, %s547
    %p551 = scmp.eq.s32.totalorder %s29, 0
    %p552 = por %p550, %p551
    %p553 = scmp.ne.s32.totalorder %s545, %s547
    %p554 = scmp.eq.s32.totalorder %s34, 1
    %p555 = por %p553, %p554
    %p556 = scmp.ne.s32.totalorder %s547, %s548
    %p557 = scmp.eq.s32.totalorder %s34, 0
    %p558 = por %p556, %p557
    %p559 = scmp.ne.s32.totalorder %s547, %s548
    %p560 = scmp.eq.s32.totalorder %s35, 1
    %p561 = por %p559, %p560
    %p563 = scmp.ne.s32.totalorder %s548, %s562
    %p564 = scmp.eq.s32.totalorder %s35, 0
    %p565 = por %p563, %p564
    %s567 = sadd.s32 %s566, 1
    %p570 = scmp.eq.s32.totalorder %s29, 1
    %p571 = scmp.ne.s32.totalorder %s566, %s568
    %p572 = scmp.eq.s32.totalorder %s29, 0
    %p573 = por %p571, %p572
    %p574 = scmp.ne.s32.totalorder %s566, %s568
    %p575 = scmp.eq.s32.totalorder %s34, 1
    %p576 = por %p574, %p575
    %p577 = scmp.ne.s32.totalorder %s568, %s569
    %p578 = scmp.eq.s32.totalorder %s34, 0
    %p579 = por %p577, %p578
    %p580 = scmp.ne.s32.totalorder %s568, %s569
    %p581 = scmp.eq.s32.totalorder %s35, 1
    %p582 = por %p580, %p581
    %p584 = scmp.ne.s32.totalorder %s569, %s583
    %p585 = scmp.eq.s32.totalorder %s35, 0
    %p586 = por %p584, %p585
    %s587 = ssub.s32 %s36, %s48
    %p588 = scmp.eq.s32.totalorder %s587, 0
    %s590 = sadd.s32 %s589, 1
    %s591 = scalar_select %p588, %s589, %s590
    %p594 = pneg %p588
    %p595 = scmp.eq.s32.totalorder %s29, 1
    %p596 = por %p594, %p595
    %p597 = scmp.ne.s32.totalorder %s589, %s592
    %p598 = scmp.eq.s32.totalorder %s29, 0
    %p599 = por %p597, %p598
    %p600 = scmp.ne.s32.totalorder %s589, %s592
    %p601 = scmp.eq.s32.totalorder %s34, 1
    %p602 = por %p600, %p601
    %p603 = scmp.ne.s32.totalorder %s592, %s593
    %p604 = scmp.eq.s32.totalorder %s34, 0
    %p605 = por %p603, %p604
    %p606 = scmp.ne.s32.totalorder %s592, %s593
    %p607 = scmp.eq.s32.totalorder %s35, 1
    %p608 = por %p606, %p607
    %p610 = scmp.ne.s32.totalorder %s593, %s609
    %p611 = scmp.eq.s32.totalorder %s35, 0
    %p612 = por %p610, %p611
    %p613 = scmp.le.s32.totalorder 1, %s29
    %p614 = scmp.lt.s32.totalorder %s29, 3
    %p615 = pnand %p613, %p614
    %p616 = pneg %p615
    // Predicated region
    $region9: #{tpu_custom_call.1} parent=5 // pred_check
      _
    $region10: #{tpu_custom_call.1} parent=5 // pred_check_branch
      %618 = sbr.rel (%p615) target = $region12
    $region11: #{tpu_custom_call.1} parent=5 // pred_region
      %s619 = ssub.s32 %s29, 1
      // Predicated region
      $region13: #{tpu_custom_call.1} parent=11 // pred_check
        %p620 = pneg %p67
      $region14: #{tpu_custom_call.1} parent=11 // pred_check_branch
        %622 = sbr.rel (%p620) target = $region16
      $region15: #{tpu_custom_call.1} parent=11 // pred_region
        %s623 = smul.u32 2, %s38
        %p624 = scmp.lt.s32.totalorder %s623, 1
        %s625 = scalar_select %p624, %s623, 1
        %s626 = smul.addr %s625, 8
        %s627 = scalar_lea.vmem %s0, %s626
        %s628 = smul.u32 2, %s38
      $region16: #{tpu_custom_call.1} parent=11 // pred_fallthru
        _
      // Predicated region
      $region17: #{tpu_custom_call.1} parent=11 // pred_check
        %p629 = pneg %p93
      $region18: #{tpu_custom_call.1} parent=11 // pred_check_branch
        %631 = sbr.rel (%p629) target = $region20
      $region19: #{tpu_custom_call.1} parent=11 // pred_region
        %s632 = smul.u32 2, %s38
        %p633 = scmp.lt.s32.totalorder %s632, 1
        %s634 = scalar_select %p633, %s632, 1
        %s635 = smul.addr %s634, 8
        %s636 = scalar_lea.vmem %s1, %s635
        %s637 = smul.u32 2, %s38
      $region20: #{tpu_custom_call.1} parent=11 // pred_fallthru
        _
      // Predicated region
      $region21: #{tpu_custom_call.1} parent=11 // pred_check
        %p638 = pneg %p119
      $region22: #{tpu_custom_call.1} parent=11 // pred_check_branch
        %640 = sbr.rel (%p638) target = $region24
      $region23: #{tpu_custom_call.1} parent=11 // pred_region
        %s641 = smul.u32 2, %s38
        %p642 = scmp.lt.s32.totalorder %s641, 1
        %s643 = scalar_select %p642, %s641, 1
        %s644 = smul.addr %s643, 8
        %s645 = scalar_lea.vmem %s2, %s644
        %s646 = smul.u32 2, %s38
      $region24: #{tpu_custom_call.1} parent=11 // pred_fallthru
        _
      // Predicated region
      $region25: #{tpu_custom_call.1} parent=11 // pred_check
        %p647 = pneg %p145
      $region26: #{tpu_custom_call.1} parent=11 // pred_check_branch
        %649 = sbr.rel (%p647) target = $region28
      $region27: #{tpu_custom_call.1} parent=11 // pred_region
        %s650 = smul.u32 2, %s38
        %p651 = scmp.lt.s32.totalorder %s650, 1
        %s652 = scalar_select %p651, %s650, 1
        %s653 = smul.addr %s652, 8
        %s654 = scalar_lea.vmem %s3, %s653
        %s655 = smul.u32 2, %s38
      $region28: #{tpu_custom_call.1} parent=11 // pred_fallthru
        _
      // Predicated region
      $region29: #{tpu_custom_call.1} parent=11 // pred_check
        %p656 = pneg %p166
      $region30: #{tpu_custom_call.1} parent=11 // pred_check_branch
        %658 = sbr.rel (%p656) target = $region32
      $region31: #{tpu_custom_call.1} parent=11 // pred_region
        _
      $region32: #{tpu_custom_call.1} parent=11 // pred_fallthru
        _
      // Predicated region
      $region33: #{tpu_custom_call.1} parent=11 // pred_check
        %p659 = pneg %p187
      $region34: #{tpu_custom_call.1} parent=11 // pred_check_branch
        %661 = sbr.rel (%p659) target = $region36
      $region35: #{tpu_custom_call.1} parent=11 // pred_region
        _
      $region36: #{tpu_custom_call.1} parent=11 // pred_fallthru
        _
      // Predicated region
      $region37: #{tpu_custom_call.1} parent=11 // pred_check
        %p662 = pneg %p208
      $region38: #{tpu_custom_call.1} parent=11 // pred_check_branch
        %664 = sbr.rel (%p662) target = $region40
      $region39: #{tpu_custom_call.1} parent=11 // pred_region
        _
      $region40: #{tpu_custom_call.1} parent=11 // pred_fallthru
        _
      // Predicated region
      $region41: #{tpu_custom_call.1} parent=11 // pred_check
        %p665 = pneg %p229
      $region42: #{tpu_custom_call.1} parent=11 // pred_check_branch
        %667 = sbr.rel (%p665) target = $region44
      $region43: #{tpu_custom_call.1} parent=11 // pred_region
        _
      $region44: #{tpu_custom_call.1} parent=11 // pred_fallthru
        _
      // Predicated region
      $region45: #{tpu_custom_call.1} parent=11 // pred_check
        %p668 = pneg %p250
      $region46: #{tpu_custom_call.1} parent=11 // pred_check_branch
        %670 = sbr.rel (%p668) target = $region48
      $region47: #{tpu_custom_call.1} parent=11 // pred_region
        _
      $region48: #{tpu_custom_call.1} parent=11 // pred_fallthru
        _
      // Predicated region
      $region49: #{tpu_custom_call.1} parent=11 // pred_check
        %p671 = pneg %p271
      $region50: #{tpu_custom_call.1} parent=11 // pred_check_branch
        %673 = sbr.rel (%p671) target = $region52
      $region51: #{tpu_custom_call.1} parent=11 // pred_region
        _
      $region52: #{tpu_custom_call.1} parent=11 // pred_fallthru
        _
      // Predicated region
      $region53: #{tpu_custom_call.1} parent=11 // pred_check
        %p674 = pneg %p292
      $region54: #{tpu_custom_call.1} parent=11 // pred_check_branch
        %676 = sbr.rel (%p674) target = $region56
      $region55: #{tpu_custom_call.1} parent=11 // pred_region
        _
      $region56: #{tpu_custom_call.1} parent=11 // pred_fallthru
        _
      // Predicated region
      $region57: #{tpu_custom_call.1} parent=11 // pred_check
        %p677 = pneg %p313
      $region58: #{tpu_custom_call.1} parent=11 // pred_check_branch
        %679 = sbr.rel (%p677) target = $region60
      $region59: #{tpu_custom_call.1} parent=11 // pred_region
        _
      $region60: #{tpu_custom_call.1} parent=11 // pred_fallthru
        _
      // Predicated region
      $region61: #{tpu_custom_call.1} parent=11 // pred_check
        %p680 = pneg %p516
      $region62: #{tpu_custom_call.1} parent=11 // pred_check_branch
        %682 = sbr.rel (%p680) target = $region64
      $region63: #{tpu_custom_call.1} parent=11 // pred_region
        _
      $region64: #{tpu_custom_call.1} parent=11 // pred_fallthru
        _
      // Predicated region
      $region65: #{tpu_custom_call.1} parent=11 // pred_check
        %p683 = pneg %p537
      $region66: #{tpu_custom_call.1} parent=11 // pred_check_branch
        %685 = sbr.rel (%p683) target = $region68
      $region67: #{tpu_custom_call.1} parent=11 // pred_region
        _
      $region68: #{tpu_custom_call.1} parent=11 // pred_fallthru
        _
      // Predicated region
      $region69: #{tpu_custom_call.1} parent=11 // pred_check
        %p686 = pneg %p558
      $region70: #{tpu_custom_call.1} parent=11 // pred_check_branch
        %688 = sbr.rel (%p686) target = $region72
      $region71: #{tpu_custom_call.1} parent=11 // pred_region
        _
      $region72: #{tpu_custom_call.1} parent=11 // pred_fallthru
        _
      // Predicated region
      $region73: #{tpu_custom_call.1} parent=11 // pred_check
        %p689 = pneg %p579
      $region74: #{tpu_custom_call.1} parent=11 // pred_check_branch
        %691 = sbr.rel (%p689) target = $region76
      $region75: #{tpu_custom_call.1} parent=11 // pred_region
        _
      $region76: #{tpu_custom_call.1} parent=11 // pred_fallthru
        _
    $region12: #{tpu_custom_call.1} parent=5 // pred_fallthru
      _
    %p692 = scmp.lt.s32.totalorder %s29, 2
    // Predicated region
    $region77: #{tpu_custom_call.1} parent=5 // pred_check
      %p693 = pneg %p692
    $region78: #{tpu_custom_call.1} parent=5 // pred_check_branch
      %695 = sbr.rel (%p693) target = $region80
    $region79: #{tpu_custom_call.1} parent=5 // pred_region
      // Predicated region
      $region81: #{tpu_custom_call.1} parent=79 // pred_check
        %p696 = pneg %p333
      $region82: #{tpu_custom_call.1} parent=79 // pred_check_branch
        %698 = sbr.rel (%p696) target = $region84
      $region83: #{tpu_custom_call.1} parent=79 // pred_region
        %p699 = scmp.lt.s32.totalorder %s37, 1
        %s700 = scalar_select %p699, %s37, 1
        %s701 = smul.addr %s700, 8
        %s702 = scalar_lea.vmem %s12, %s701
      $region84: #{tpu_custom_call.1} parent=79 // pred_fallthru
        _
      // Predicated region
      $region85: #{tpu_custom_call.1} parent=79 // pred_check
        %p703 = pneg %p359
      $region86: #{tpu_custom_call.1} parent=79 // pred_check_branch
        %705 = sbr.rel (%p703) target = $region88
      $region87: #{tpu_custom_call.1} parent=79 // pred_region
        %p706 = scmp.lt.s32.totalorder %s37, 1
        %s707 = scalar_select %p706, %s37, 1
        %s708 = scalar_lea.vmem %s13, %s707
      $region88: #{tpu_custom_call.1} parent=79 // pred_fallthru
        _
      // Predicated region
      $region89: #{tpu_custom_call.1} parent=79 // pred_check
        %p709 = pneg %p385
      $region90: #{tpu_custom_call.1} parent=79 // pred_check_branch
        %711 = sbr.rel (%p709) target = $region92
      $region91: #{tpu_custom_call.1} parent=79 // pred_region
        %p712 = scmp.lt.s32.totalorder %s37, 1
        %s713 = scalar_select %p712, %s37, 1
        %s714 = scalar_lea.vmem %s14, %s713
      $region92: #{tpu_custom_call.1} parent=79 // pred_fallthru
        _
      // Predicated region
      $region93: #{tpu_custom_call.1} parent=79 // pred_check
        %p715 = pneg %p411
      $region94: #{tpu_custom_call.1} parent=79 // pred_check_branch
        %717 = sbr.rel (%p715) target = $region96
      $region95: #{tpu_custom_call.1} parent=79 // pred_region
        %p718 = scmp.lt.s32.totalorder %s37, 1
        %s719 = scalar_select %p718, %s37, 1
        %s720 = smul.addr %s719, 4
        %s721 = smul.addr %s720, 4
        %s722 = scalar_lea.vmem %s15, %s721
      $region96: #{tpu_custom_call.1} parent=79 // pred_fallthru
        _
      // Predicated region
      $region97: #{tpu_custom_call.1} parent=79 // pred_check
        %p723 = pneg %p437
      $region98: #{tpu_custom_call.1} parent=79 // pred_check_branch
        %725 = sbr.rel (%p723) target = $region100
      $region99: #{tpu_custom_call.1} parent=79 // pred_region
        %p726 = scmp.lt.s32.totalorder %s37, 1
        %s727 = scalar_select %p726, %s37, 1
        %s728 = smul.addr %s727, 4
        %s729 = smul.addr %s728, 4
        %s730 = scalar_lea.vmem %s16, %s729
      $region100: #{tpu_custom_call.1} parent=79 // pred_fallthru
        _
      // Predicated region
      $region101: #{tpu_custom_call.1} parent=79 // pred_check
        %p731 = pneg %p463
      $region102: #{tpu_custom_call.1} parent=79 // pred_check_branch
        %733 = sbr.rel (%p731) target = $region104
      $region103: #{tpu_custom_call.1} parent=79 // pred_region
        %p734 = scmp.lt.s32.totalorder %s37, 1
        %s735 = scalar_select %p734, %s37, 1
        %s736 = smul.addr %s735, 4
        %s737 = smul.addr %s736, 4
        %s738 = scalar_lea.vmem %s17, %s737
      $region104: #{tpu_custom_call.1} parent=79 // pred_fallthru
        _
      // Predicated region
      $region105: #{tpu_custom_call.1} parent=79 // pred_check
        %p739 = pneg %p489
      $region106: #{tpu_custom_call.1} parent=79 // pred_check_branch
        %741 = sbr.rel (%p739) target = $region108
      $region107: #{tpu_custom_call.1} parent=79 // pred_region
        %p742 = scmp.lt.s32.totalorder %s37, 1
        %s743 = scalar_select %p742, %s37, 1
        %s744 = smul.addr %s743, 16
        %s745 = smul.addr %s744, 4
        %s746 = scalar_lea.vmem %s18, %s745
      $region108: #{tpu_custom_call.1} parent=79 // pred_fallthru
        _
    $region80: #{tpu_custom_call.1} parent=5 // pred_fallthru
      _
    %p747 = scmp.le.s32.totalorder 1, %s29
    %p748 = scmp.lt.s32.totalorder %s29, 3
    %p749 = pnand %p747, %p748
    %p750 = pneg %p749
    // Predicated region
    $region109: #{tpu_custom_call.1} parent=5 // pred_check
      _
    $region110: #{tpu_custom_call.1} parent=5 // pred_check_branch
      %752 = sbr.rel (%p749) target = $region112
    $region111: #{tpu_custom_call.1} parent=5 // pred_region
      %s753 = ssub.s32 %s29, 1
      %s754 = smul.u32 2, %s38
      %p755 = scmp.lt.s32.totalorder %s754, 1
      %s756 = scalar_select %p755, %s754, 1
      %s757 = smul.addr %s756, 8
      %s758 = scalar_lea.vmem %s0, %s757
      %p759 = pneg %p67
      %p760 = pneg %p64
      %s761 = smul.u32 2, %s38
      %p762 = scmp.lt.s32.totalorder %s761, 1
      %s763 = scalar_select %p762, %s761, 1
      %s764 = smul.addr %s763, 8
      %s765 = scalar_lea.vmem %s1, %s764
      %p766 = pneg %p93
      %p767 = pneg %p90
      %s768 = smul.u32 2, %s38
      %p769 = scmp.lt.s32.totalorder %s768, 1
      %s770 = scalar_select %p769, %s768, 1
      %s771 = smul.addr %s770, 8
      %s772 = scalar_lea.vmem %s2, %s771
      %p773 = pneg %p119
      %p774 = pneg %p116
      %s775 = smul.u32 2, %s38
      %p776 = scmp.lt.s32.totalorder %s775, 1
      %s777 = scalar_select %p776, %s775, 1
      %s778 = smul.addr %s777, 8
      %s779 = scalar_lea.vmem %s3, %s778
      %p780 = pneg %p145
      %p781 = pneg %p142
      %p782 = pneg %p166
      %p783 = pneg %p163
      %p784 = pneg %p187
      %p785 = pneg %p184
      %p786 = pneg %p208
      %p787 = pneg %p205
      %p788 = pneg %p229
      %p789 = pneg %p226
      %p790 = pneg %p250
      %p791 = pneg %p247
      %p792 = pneg %p271
      %p793 = pneg %p268
      %p794 = pneg %p292
      %p795 = pneg %p289
      %p796 = pneg %p313
      %p797 = pneg %p310
      %p798 = scmp.lt.s32.totalorder %s39, 1
      %s799 = scalar_select %p798, %s39, 1
      %s800 = smul.addr %s799, 8
      %s801 = scalar_lea.vmem %s12, %s800
      %p802 = pneg %p339
      %p803 = pneg %p336
      %p804 = scmp.lt.s32.totalorder %s39, 1
      %s805 = scalar_select %p804, %s39, 1
      %s806 = scalar_lea.vmem %s13, %s805
      %p807 = pneg %p365
      %p808 = pneg %p362
      %p809 = scmp.lt.s32.totalorder %s39, 1
      %s810 = scalar_select %p809, %s39, 1
      %s811 = scalar_lea.vmem %s14, %s810
      %p812 = pneg %p391
      %p813 = pneg %p388
      %p814 = scmp.lt.s32.totalorder %s39, 1
      %s815 = scalar_select %p814, %s39, 1
      %s816 = smul.addr %s815, 4
      %s817 = smul.addr %s816, 4
      %s818 = scalar_lea.vmem %s15, %s817
      %p819 = pneg %p417
      %p820 = pneg %p414
      %p821 = scmp.lt.s32.totalorder %s39, 1
      %s822 = scalar_select %p821, %s39, 1
      %s823 = smul.addr %s822, 4
      %s824 = smul.addr %s823, 4
      %s825 = scalar_lea.vmem %s16, %s824
      %p826 = pneg %p443
      %p827 = pneg %p440
      %p828 = scmp.lt.s32.totalorder %s39, 1
      %s829 = scalar_select %p828, %s39, 1
      %s830 = smul.addr %s829, 4
      %s831 = smul.addr %s830, 4
      %s832 = scalar_lea.vmem %s17, %s831
      %p833 = pneg %p469
      %p834 = pneg %p466
      %p835 = scmp.lt.s32.totalorder %s39, 1
      %s836 = scalar_select %p835, %s39, 1
      %s837 = smul.addr %s836, 16
      %s838 = smul.addr %s837, 4
      %s839 = scalar_lea.vmem %s18, %s838
      %p840 = pneg %p495
      %p841 = pneg %p492
      %p842 = pneg %p516
      %p843 = pneg %p513
      %p844 = pneg %p537
      %p845 = pneg %p534
      %p846 = pneg %p558
      %p847 = pneg %p555
      %p848 = pneg %p579
      %p849 = pneg %p576
      %p850 = pneg %p605
      %p851 = pneg %p602
      %s852 = smul.u32 2, %s38
      %p853 = scmp.lt.s32.totalorder %s852, 1
      %s854 = scalar_select %p853, %s852, 1
      %s855 = smul.addr %s854, 8
      %s856 = scalar_lea.vmem %s23, %s855
      %s857 = smul.u32 2, %s38
      %p858 = scmp.lt.s32.totalorder %s857, 1
      %s859 = scalar_select %p858, %s857, 1
      %s860 = smul.addr %s859, 8
      %s861 = scalar_lea.vmem %s0, %s860
      %s862 = smul.u32 2, %s38
      %s863 = smul.u32 2, %s38
      %p864 = scmp.lt.s32.totalorder %s863, 1
      %s865 = scalar_select %p864, %s863, 1
      %s866 = smul.addr %s865, 8
      %s867 = scalar_lea.vmem %s1, %s866
      %s868 = smul.u32 2, %s38
      %s869 = smul.u32 2, %s38
      %p870 = scmp.lt.s32.totalorder %s869, 1
      %s871 = scalar_select %p870, %s869, 1
      %s872 = smul.addr %s871, 8
      %s873 = scalar_lea.vmem %s2, %s872
      %s874 = smul.u32 2, %s38
      %s875 = smul.u32 2, %s38
      %p876 = scmp.lt.s32.totalorder %s875, 1
      %s877 = scalar_select %p876, %s875, 1
      %s878 = smul.addr %s877, 8
      %s879 = scalar_lea.vmem %s3, %s878
      %s880 = smul.u32 2, %s38
      %p881 = scmp.lt.s32.totalorder %s39, 1
      %s882 = scalar_select %p881, %s39, 1
      %s883 = smul.addr %s882, 8
      %s884 = scalar_lea.vmem %s12, %s883
      %p885 = scmp.lt.s32.totalorder %s39, 1
      %s886 = scalar_select %p885, %s39, 1
      %s887 = scalar_lea.vmem %s13, %s886
      %p888 = scmp.lt.s32.totalorder %s39, 1
      %s889 = scalar_select %p888, %s39, 1
      %s890 = scalar_lea.vmem %s14, %s889
      %p891 = scmp.lt.s32.totalorder %s39, 1
      %s892 = scalar_select %p891, %s39, 1
      %s893 = smul.addr %s892, 4
      %s894 = smul.addr %s893, 4
      %s895 = scalar_lea.vmem %s15, %s894
      %p896 = scmp.lt.s32.totalorder %s39, 1
      %s897 = scalar_select %p896, %s39, 1
      %s898 = smul.addr %s897, 4
      %s899 = smul.addr %s898, 4
      %s900 = scalar_lea.vmem %s16, %s899
      %p901 = scmp.lt.s32.totalorder %s39, 1
      %s902 = scalar_select %p901, %s39, 1
      %s903 = smul.addr %s902, 4
      %s904 = smul.addr %s903, 4
      %s905 = scalar_lea.vmem %s17, %s904
      %p906 = scmp.lt.s32.totalorder %s39, 1
      %s907 = scalar_select %p906, %s39, 1
      %s908 = smul.addr %s907, 16
      %s909 = smul.addr %s908, 4
      %s910 = scalar_lea.vmem %s18, %s909
      %s911 = smul.u32 2, %s38
      %p912 = scmp.lt.s32.totalorder %s911, 1
      %s913 = scalar_select %p912, %s911, 1
      %s914 = smul.addr %s913, 8
      %s915 = scalar_lea.vmem %s23, %s914
      %s916 = smul.u32 2, %s38
      %p918 = scmp.eq.s32.totalorder %s39, 0
      // Predicated region
      $region113: #{tpu_custom_call.1} parent=111 // pred_check
        %p919 = pneg %p918
      $region114: #{tpu_custom_call.1} parent=111 // pred_check_branch
        %921 = sbr.rel (%p919) target = $region116
      $region115: #{tpu_custom_call.1} parent=111 // pred_region
        %v922 = vld [vmem:[%s879] sm:$0xff]
        %v923 = vld [vmem:[%s879 + $0x8] sm:$0xff]
        %v924 = vld [vmem:[%s10] sm:$0x1]
        %v925 = vld [vmem:[%s11] sm:$0x1]
        %v926 = vld [vmem:[%s873] sm:$0xff]
        %v927 = vld [vmem:[%s873 + $0x8] sm:$0xff]
        %v928 = vld [vmem:[%s8] sm:$0x1]
        %930 = vset.pattern.permute.xlu0 0
        %931 = vperm.xlu0 %930, %v926
        %v932 = vpop.permute.xlu0 %931
        %935 = vset.pattern.permute.xlu0 0
        %936 = vperm.xlu0 %935, %v927
        %v937 = vpop.permute.xlu0 %936
        %v940 = vlaneseq
        %v941 = vshrl.u32 %v940, 7
        %v942 = vsub.s32 0, %v941
        %v943 = vrot.slane %v928, %v942
        %v945 = vmul.f32 %v932, %v943
        %v946 = vmul.f32 %v937, %v943
        %v947 = vld [vmem:[%s9] sm:$0x1]
        %v949 = vlaneseq
        %v950 = vshrl.u32 %v949, 7
        %v951 = vsub.s32 0, %v950
        %v952 = vrot.slane %v947, %v951
        %v954 = vadd.f32 %v945, %v952
        %v955 = vadd.f32 %v946, %v952
        %v956 = vadd.f32 %v954, %v922
        %v957 = vadd.f32 %v955, %v923
        %v958 = vld [vmem:[%s861] sm:$0xff]
        %v959 = vld [vmem:[%s861 + $0x8] sm:$0xff]
        %v960 = vpack.c.bf16 %v959, %v958
        %v961 = vld [vmem:[%s4] sm:$0x3]
        %vm962 = vcmask 31744
        %v964 = vsel %vm962, %v960, 0
        %vm966 = vcmask 1041408
        %v968 = vsel %vm966, %v961, 0
        %970 = vmatprep.subr.bf16.mxu0 0
        %971 = vmatpush1.bf16.msra.mxu0 %v968
        %972 = vmatprep.subr.bf16.mxu0 0
        %973 = vmatpush1.bf16.msra.mxu0 0
        %974 = vmatprep.subr.bf16.mxu0 0
        %975 = vmatpush1.bf16.msra.mxu0 0
        %976 = vmatprep.subr.bf16.mxu0 0
        %977 = vmatpush1.bf16.msra.mxu0 0
        %978 = vmatprep.subr.bf16.mxu0 0
        %979 = vmatpush1.bf16.msra.mxu0 0
        %980 = vmatprep.subr.bf16.mxu0 0
        %981 = vmatpush1.bf16.msra.mxu0 0
        %982 = vmatprep.subr.bf16.mxu0 0
        %983 = vmatpush1.bf16.msra.mxu0 0
        %984 = vmatprep.subr.bf16.mxu0 0
        %985 = vmatpush1.bf16.msra.mxu0 0
        %986 = vmatprep.subr.bf16.mxu0 0
        %987 = vmatpush1.bf16.msra.mxu0 0
        %988 = vmatprep.subr.bf16.mxu0 0
        %989 = vmatpush1.bf16.msra.mxu0 0
        %990 = vmatprep.subr.bf16.mxu0 0
        %991 = vmatpush1.bf16.msra.mxu0 0
        %992 = vmatprep.subr.bf16.mxu0 0
        %993 = vmatpush1.bf16.msra.mxu0 0
        %994 = vmatprep.subr.bf16.mxu0 0
        %995 = vmatpush1.bf16.msra.mxu0 0
        %996 = vmatprep.subr.bf16.mxu0 0
        %997 = vmatpush1.bf16.msra.mxu0 0
        %998 = vmatprep.subr.bf16.mxu0 0
        %999 = vmatpush1.bf16.msra.mxu0 0
        %1000 = vmatprep.subr.bf16.mxu0 0
        %1001 = vmatpush1.bf16.msra.mxu0 0
        %1002 = vmatprep.mubr.bf16.mxu0 0
        %1003 = vmatmul.mubr.bf16.gmra.mrb[0].mxu0 %v964
        %v1004 = vpop.f32.mrb[0].mxu0
        %v1005 = vadd.f32 0.0, %v1004
        %v1006 = vpop.f32.mrb[0].mxu0
        %v1007 = vpop.f32.mrb[0].mxu0
        %v1008 = vadd.f32 0.0, %v1007
        %v1009 = vpop.f32.mrb[0].mxu0
        %1010 = vdwg.mxu0
        %v1011 = vld [vmem:[%s5] sm:$0x1]
        %v1013 = vlaneseq
        %v1014 = vshrl.u32 %v1013, 7
        %v1015 = vsub.s32 0, %v1014
        %v1016 = vrot.slane %v1011, %v1015
        %v1018 = vadd.f32 %v1005, %v1016
        %v1019 = vadd.f32 %v1008, %v1016
        %v1020 = vadd.f32 %v1018, %v922
        %v1021 = vadd.f32 %v1019, %v923
        %v1022 = vld [vmem:[%s867] sm:$0xff]
        %v1023 = vld [vmem:[%s867 + $0x8] sm:$0xff]
        %v1024 = vpack.c.bf16 %v1023, %v1022
        %v1025 = vld [vmem:[%s6] sm:$0x3]
        %vm1026 = vcmask 23552
        %v1028 = vsel %vm1026, %v1024, 0
        %vm1030 = vcmask 1040384
        %v1031 = vsel %vm1030, 4294967295, 65535
        %v1032 = vsel %vm966, %v1031, 0
        %v1034 = vand.u32 %v1025, %v1032
        %1036 = vmatprep.subr.bf16.mxu0 0
        %1037 = vmatpush1.bf16.msra.mxu0 %v1034
        %1038 = vmatprep.subr.bf16.mxu0 0
        %1039 = vmatpush1.bf16.msra.mxu0 0
        %1040 = vmatprep.subr.bf16.mxu0 0
        %1041 = vmatpush1.bf16.msra.mxu0 0
        %1042 = vmatprep.subr.bf16.mxu0 0
        %1043 = vmatpush1.bf16.msra.mxu0 0
        %1044 = vmatprep.subr.bf16.mxu0 0
        %1045 = vmatpush1.bf16.msra.mxu0 0
        %1046 = vmatprep.subr.bf16.mxu0 0
        %1047 = vmatpush1.bf16.msra.mxu0 0
        %1048 = vmatprep.subr.bf16.mxu0 0
        %1049 = vmatpush1.bf16.msra.mxu0 0
        %1050 = vmatprep.subr.bf16.mxu0 0
        %1051 = vmatpush1.bf16.msra.mxu0 0
        %1052 = vmatprep.subr.bf16.mxu0 0
        %1053 = vmatpush1.bf16.msra.mxu0 0
        %1054 = vmatprep.subr.bf16.mxu0 0
        %1055 = vmatpush1.bf16.msra.mxu0 0
        %1056 = vmatprep.subr.bf16.mxu0 0
        %1057 = vmatpush1.bf16.msra.mxu0 0
        %1058 = vmatprep.subr.bf16.mxu0 0
        %1059 = vmatpush1.bf16.msra.mxu0 0
        %1060 = vmatprep.subr.bf16.mxu0 0
        %1061 = vmatpush1.bf16.msra.mxu0 0
        %1062 = vmatprep.subr.bf16.mxu0 0
        %1063 = vmatpush1.bf16.msra.mxu0 0
        %1064 = vmatprep.subr.bf16.mxu0 0
        %1065 = vmatpush1.bf16.msra.mxu0 0
        %1066 = vmatprep.subr.bf16.mxu0 0
        %1067 = vmatpush1.bf16.msra.mxu0 0
        %1068 = vmatprep.mubr.bf16.mxu0 0
        %1069 = vmatmul.mubr.bf16.gmra.mrb[0].mxu0 %v1028
        %v1070 = vpop.f32.mrb[0].mxu0
        %v1071 = vadd.f32 0.0, %v1070
        %v1072 = vpop.f32.mrb[0].mxu0
        %v1073 = vpop.f32.mrb[0].mxu0
        %v1074 = vadd.f32 0.0, %v1073
        %v1075 = vpop.f32.mrb[0].mxu0
        %1076 = vdwg.mxu0
        %v1077 = vld [vmem:[%s7] sm:$0x1]
        %v1079 = vlaneseq
        %v1080 = vshrl.u32 %v1079, 7
        %v1081 = vsub.s32 0, %v1080
        %v1082 = vrot.slane %v1077, %v1081
        %v1084 = vadd.f32 %v1071, %v1082
        %v1085 = vadd.f32 %v1074, %v1082
        %v1086 = vadd.f32 %v1084, %v922
        %v1087 = vadd.f32 %v1085, %v923
        %vm1088 = vcmask 261120
        %v1089 = vsel %vm1088, %v956, 0.0
        %1090 = vadd.xlane.f32.xlu0 %v1089
        %v1091 = vpop.xlane.xlu0 %1090
        %v1092 = vsel %vm1088, %v957, 0.0
        %1093 = vadd.xlane.f32.xlu0 %v1092
        %v1094 = vpop.xlane.xlu0 %1093
        %v1095 = vrcp.pop 32.0
        %v1096 = vmul.f32 %v1091, %v1095
        %v1097 = vmul.f32 %v1094, %v1095
        %v1098 = vsub.f32 %v956, %v1096
        %v1099 = vsub.f32 %v957, %v1097
        %v1100 = vmul.f32 %v1098, %v1098
        %v1101 = vmul.f32 %v1099, %v1099
        %v1102 = vsel %vm1088, %v1100, 0.0
        %1103 = vadd.xlane.f32.xlu0 %v1102
        %v1104 = vpop.xlane.xlu0 %1103
        %v1105 = vsel %vm1088, %v1101, 0.0
        %1106 = vadd.xlane.f32.xlu0 %v1105
        %v1107 = vpop.xlane.xlu0 %1106
        %v1108 = vmul.f32 %v1104, %v1095
        %v1109 = vmul.f32 %v1107, %v1095
        %v1110 = vadd.f32 %v1108, 1e-05
        %v1111 = vadd.f32 %v1109, 1e-05
        %v1112 = vrsqrt.pop %v1110
        %v1113 = vrsqrt.pop %v1111
        %v1114 = vmul.f32 %v1098, %v1112
        %v1115 = vmul.f32 %v1099, %v1113
        %v1117 = vlaneseq
        %v1118 = vshrl.u32 %v1117, 7
        %v1119 = vsub.s32 0, %v1118
        %v1120 = vrot.slane %v924, %v1119
        %v1122 = vmul.f32 %v1114, %v1120
        %v1123 = vmul.f32 %v1115, %v1120
        %v1125 = vlaneseq
        %v1126 = vshrl.u32 %v1125, 7
        %v1127 = vsub.s32 0, %v1126
        %v1128 = vrot.slane %v925, %v1127
        %v1130 = vadd.f32 %v1122, %v1128
        %v1131 = vadd.f32 %v1123, %v1128
        %1132 = vst.msk [vmem:[#allocation2] sm:$0xff] %vm1088, %v1130
        %1133 = vst.msk [vmem:[#allocation2 + $0x18] sm:$0xff] %vm1088, %v1131
        %v1134 = vsel %vm1088, %v1020, 0.0
        %1135 = vadd.xlane.f32.xlu0 %v1134
        %v1136 = vpop.xlane.xlu0 %1135
        %v1137 = vsel %vm1088, %v1021, 0.0
        %1138 = vadd.xlane.f32.xlu0 %v1137
        %v1139 = vpop.xlane.xlu0 %1138
        %v1140 = vmul.f32 %v1136, %v1095
        %v1141 = vmul.f32 %v1139, %v1095
        %v1142 = vsub.f32 %v1020, %v1140
        %v1143 = vsub.f32 %v1021, %v1141
        %v1144 = vmul.f32 %v1142, %v1142
        %v1145 = vmul.f32 %v1143, %v1143
        %v1146 = vsel %vm1088, %v1144, 0.0
        %1147 = vadd.xlane.f32.xlu0 %v1146
        %v1148 = vpop.xlane.xlu0 %1147
        %v1149 = vsel %vm1088, %v1145, 0.0
        %1150 = vadd.xlane.f32.xlu0 %v1149
        %v1151 = vpop.xlane.xlu0 %1150
        %v1152 = vmul.f32 %v1148, %v1095
        %v1153 = vmul.f32 %v1151, %v1095
        %v1154 = vadd.f32 %v1152, 1e-05
        %v1155 = vadd.f32 %v1153, 1e-05
        %v1156 = vrsqrt.pop %v1154
        %v1157 = vrsqrt.pop %v1155
        %v1158 = vmul.f32 %v1142, %v1156
        %v1159 = vmul.f32 %v1143, %v1157
        %v1160 = vmul.f32 %v1158, %v1120
        %v1161 = vmul.f32 %v1159, %v1120
        %v1162 = vadd.f32 %v1160, %v1128
        %v1163 = vadd.f32 %v1161, %v1128
        %1164 = vst.msk [vmem:[#allocation2 + $0x8] sm:$0xff] %vm1088, %v1162
        %1165 = vst.msk [vmem:[#allocation2 + $0x20] sm:$0xff] %vm1088, %v1163
        %v1166 = vsel %vm1088, %v1086, 0.0
        %1167 = vadd.xlane.f32.xlu0 %v1166
        %v1168 = vpop.xlane.xlu0 %1167
        %v1169 = vsel %vm1088, %v1087, 0.0
        %1170 = vadd.xlane.f32.xlu0 %v1169
        %v1171 = vpop.xlane.xlu0 %1170
        %v1172 = vmul.f32 %v1168, %v1095
        %v1173 = vmul.f32 %v1171, %v1095
        %v1174 = vsub.f32 %v1086, %v1172
        %v1175 = vsub.f32 %v1087, %v1173
        %v1176 = vmul.f32 %v1174, %v1174
        %v1177 = vmul.f32 %v1175, %v1175
        %v1178 = vsel %vm1088, %v1176, 0.0
        %1179 = vadd.xlane.f32.xlu0 %v1178
        %v1180 = vpop.xlane.xlu0 %1179
        %v1181 = vsel %vm1088, %v1177, 0.0
        %1182 = vadd.xlane.f32.xlu0 %v1181
        %v1183 = vpop.xlane.xlu0 %1182
        %v1184 = vmul.f32 %v1180, %v1095
        %v1185 = vmul.f32 %v1183, %v1095
        %v1186 = vadd.f32 %v1184, 1e-05
        %v1187 = vadd.f32 %v1185, 1e-05
        %v1188 = vrsqrt.pop %v1186
        %v1189 = vrsqrt.pop %v1187
        %v1190 = vmul.f32 %v1174, %v1188
        %v1191 = vmul.f32 %v1175, %v1189
        %v1192 = vmul.f32 %v1190, %v1120
        %v1193 = vmul.f32 %v1191, %v1120
        %v1194 = vadd.f32 %v1192, %v1128
        %v1195 = vadd.f32 %v1193, %v1128
        %1196 = vst.msk [vmem:[#allocation2 + $0x10] sm:$0xff] %vm1088, %v1194
        %1197 = vst.msk [vmem:[#allocation2 + $0x28] sm:$0xff] %vm1088, %v1195
      $region116: #{tpu_custom_call.1} parent=111 // pred_fallthru
        _
      %v1198 = vld [vmem:[#allocation2] sm:$0xff]
      %v1199 = vld [vmem:[#allocation2 + $0x8] sm:$0xff]
      %v1200 = vld [vmem:[#allocation2 + $0x10] sm:$0xff]
      %v1201 = vld [vmem:[#allocation2 + $0x18] sm:$0xff]
      %v1202 = vld [vmem:[#allocation2 + $0x20] sm:$0xff]
      %v1203 = vld [vmem:[#allocation2 + $0x28] sm:$0xff]
      %v1204 = vld [vmem:[%s884] sm:$0x3f]
      %vm1205 = vcmask 261120
      %v1206 = vsel %vm1205, %v1198, 0.0
      %1207 = vadd.xlane.f32.xlu0 %v1206
      %v1208 = vpop.xlane.xlu0 %1207
      %v1209 = vsel %vm1205, %v1199, 0.0
      %1210 = vadd.xlane.f32.xlu0 %v1209
      %v1211 = vpop.xlane.xlu0 %1210
      %v1212 = vsel %vm1205, %v1200, 0.0
      %1213 = vadd.xlane.f32.xlu0 %v1212
      %v1214 = vpop.xlane.xlu0 %1213
      %v1215 = vsel %vm1205, %v1201, 0.0
      %1216 = vadd.xlane.f32.xlu0 %v1215
      %v1217 = vpop.xlane.xlu0 %1216
      %v1218 = vsel %vm1205, %v1202, 0.0
      %1219 = vadd.xlane.f32.xlu0 %v1218
      %v1220 = vpop.xlane.xlu0 %1219
      %v1221 = vsel %vm1205, %v1203, 0.0
      %1222 = vadd.xlane.f32.xlu0 %v1221
      %v1223 = vpop.xlane.xlu0 %1222
      %v1224 = vrcp.pop 32.0
      %v1225 = vmul.f32 %v1208, %v1224
      %v1226 = vmul.f32 %v1211, %v1224
      %v1227 = vmul.f32 %v1214, %v1224
      %v1228 = vmul.f32 %v1217, %v1224
      %v1229 = vmul.f32 %v1220, %v1224
      %v1230 = vmul.f32 %v1223, %v1224
      %v1231 = vsub.f32 %v1198, %v1225
      %v1232 = vsub.f32 %v1199, %v1226
      %v1233 = vsub.f32 %v1200, %v1227
      %v1234 = vsub.f32 %v1201, %v1228
      %v1235 = vsub.f32 %v1202, %v1229
      %v1236 = vsub.f32 %v1203, %v1230
      %v1237 = vmul.f32 %v1231, %v1231
      %v1238 = vmul.f32 %v1232, %v1232
      %v1239 = vmul.f32 %v1233, %v1233
      %v1240 = vmul.f32 %v1234, %v1234
      %v1241 = vmul.f32 %v1235, %v1235
      %v1242 = vmul.f32 %v1236, %v1236
      %v1243 = vsel %vm1205, %v1237, 0.0
      %1244 = vadd.xlane.f32.xlu0 %v1243
      %v1245 = vpop.xlane.xlu0 %1244
      %v1246 = vsel %vm1205, %v1238, 0.0
      %1247 = vadd.xlane.f32.xlu0 %v1246
      %v1248 = vpop.xlane.xlu0 %1247
      %v1249 = vsel %vm1205, %v1239, 0.0
      %1250 = vadd.xlane.f32.xlu0 %v1249
      %v1251 = vpop.xlane.xlu0 %1250
      %v1252 = vsel %vm1205, %v1240, 0.0
      %1253 = vadd.xlane.f32.xlu0 %v1252
      %v1254 = vpop.xlane.xlu0 %1253
      %v1255 = vsel %vm1205, %v1241, 0.0
      %1256 = vadd.xlane.f32.xlu0 %v1255
      %v1257 = vpop.xlane.xlu0 %1256
      %v1258 = vsel %vm1205, %v1242, 0.0
      %1259 = vadd.xlane.f32.xlu0 %v1258
      %v1260 = vpop.xlane.xlu0 %1259
      %v1261 = vmul.f32 %v1245, %v1224
      %v1262 = vmul.f32 %v1248, %v1224
      %v1263 = vmul.f32 %v1251, %v1224
      %v1264 = vmul.f32 %v1254, %v1224
      %v1265 = vmul.f32 %v1257, %v1224
      %v1266 = vmul.f32 %v1260, %v1224
      %v1267 = vadd.f32 %v1261, 1e-05
      %v1268 = vadd.f32 %v1262, 1e-05
      %v1269 = vadd.f32 %v1263, 1e-05
      %v1270 = vadd.f32 %v1264, 1e-05
      %v1271 = vadd.f32 %v1265, 1e-05
      %v1272 = vadd.f32 %v1266, 1e-05
      %v1273 = vrsqrt.pop %v1267
      %v1274 = vrsqrt.pop %v1268
      %v1275 = vrsqrt.pop %v1269
      %v1276 = vrsqrt.pop %v1270
      %v1277 = vrsqrt.pop %v1271
      %v1278 = vrsqrt.pop %v1272
      %v1279 = vmul.f32 %v1231, %v1273
      %v1280 = vmul.f32 %v1232, %v1274
      %v1281 = vmul.f32 %v1233, %v1275
      %v1282 = vmul.f32 %v1234, %v1276
      %v1283 = vmul.f32 %v1235, %v1277
      %v1284 = vmul.f32 %v1236, %v1278
      %v1285 = vlaneseq
      %v1286 = vshrl.u32 %v1285, 7
      %v1287 = vsub.s32 0, %v1286
      %v1288 = vrot.slane %v1204, %v1287
      %v1289 = vmul.f32 %v1279, %v1288
      %v1290 = vmul.f32 %v1280, %v1288
      %v1291 = vmul.f32 %v1281, %v1288
      %v1292 = vmul.f32 %v1282, %v1288
      %v1293 = vmul.f32 %v1283, %v1288
      %v1294 = vmul.f32 %v1284, %v1288
      %v1295 = vlaneseq
      %v1296 = vshrl.u32 %v1295, 7
      %v1297 = vsub.s32 1, %v1296
      %v1298 = vrot.slane %v1204, %v1297
      %v1299 = vadd.f32 %v1289, %v1298
      %v1300 = vadd.f32 %v1290, %v1298
      %v1301 = vadd.f32 %v1291, %v1298
      %v1302 = vadd.f32 %v1292, %v1298
      %v1303 = vadd.f32 %v1293, %v1298
      %v1304 = vadd.f32 %v1294, %v1298
      %v1305 = vpack.c.bf16 %v1300, %v1299
      %v1306 = vpack.c.bf16 %v1302, %v1301
      %v1307 = vpack.c.bf16 %v1304, %v1303
      %v1308 = vld [vmem:[%s895] sm:$0xf]
      %v1309 = vld [vmem:[%s895 + $0x4] sm:$0xf]
      %v1310 = vld [vmem:[%s895 + $0x8] sm:$0xf]
      %v1311 = vld [vmem:[%s895 + $0xc] sm:$0xf]
      %v1312 = vld [vmem:[%s887] sm:$0x1]
      %v1314 = vlaneseq
      %v1315 = vshrl.u32 %v1314, 7
      %v1316 = vsub.s32 0, %v1315
      %v1317 = vrot.slane %v1312, %v1316
      %v1323 = vunpack.c.l.b16 %v1308
      %v1324 = vunpack.c.l.b16 %v1309
      %v1325 = vunpack.c.l.b16 %v1310
      %v1326 = vunpack.c.l.b16 %v1311
      %v1327 = vpack.c.b16 %v1324, %v1323
      %v1328 = vpack.c.b16 %v1326, %v1325
      %v1332 = vsel %vm1205, %v1305, 0
      %v1335 = vsel %vm1205, %v1306, 0
      %v1338 = vsel %vm1205, %v1307, 0
      %1340 = vmatprep.subr.bf16.mxu0 0
      %1341 = vmatpush1.bf16.msra.mxu0 %v1327
      %1342 = vmatprep.subr.bf16.mxu0 0
      %1343 = vmatpush1.bf16.msra.mxu0 %v1328
      %1344 = vmatprep.subr.bf16.mxu0 0
      %1345 = vmatpush1.bf16.msra.mxu0 0
      %1346 = vmatprep.subr.bf16.mxu0 0
      %1347 = vmatpush1.bf16.msra.mxu0 0
      %1348 = vmatprep.subr.bf16.mxu0 0
      %1349 = vmatpush1.bf16.msra.mxu0 0
      %1350 = vmatprep.subr.bf16.mxu0 0
      %1351 = vmatpush1.bf16.msra.mxu0 0
      %1352 = vmatprep.subr.bf16.mxu0 0
      %1353 = vmatpush1.bf16.msra.mxu0 0
      %1354 = vmatprep.subr.bf16.mxu0 0
      %1355 = vmatpush1.bf16.msra.mxu0 0
      %1356 = vmatprep.subr.bf16.mxu0 0
      %1357 = vmatpush1.bf16.msra.mxu0 0
      %1358 = vmatprep.subr.bf16.mxu0 0
      %1359 = vmatpush1.bf16.msra.mxu0 0
      %1360 = vmatprep.subr.bf16.mxu0 0
      %1361 = vmatpush1.bf16.msra.mxu0 0
      %1362 = vmatprep.subr.bf16.mxu0 0
      %1363 = vmatpush1.bf16.msra.mxu0 0
      %1364 = vmatprep.subr.bf16.mxu0 0
      %1365 = vmatpush1.bf16.msra.mxu0 0
      %1366 = vmatprep.subr.bf16.mxu0 0
      %1367 = vmatpush1.bf16.msra.mxu0 0
      %1368 = vmatprep.subr.bf16.mxu0 0
      %1369 = vmatpush1.bf16.msra.mxu0 0
      %1370 = vmatprep.subr.bf16.mxu0 0
      %1371 = vmatpush1.bf16.msra.mxu0 0
      %1372 = vmatprep.mubr.bf16.mxu0 0
      %1373 = vmatmul.mubr.bf16.gmra.mrb[0].mxu0 %v1332
      %v1374 = vpop.f32.mrb[0].mxu0
      %v1375 = vadd.f32 %v1317, %v1374
      %v1376 = vpop.f32.mrb[0].mxu0
      %v1377 = vpop.f32.mrb[0].mxu0
      %v1378 = vadd.f32 %v1317, %v1377
      %v1379 = vpop.f32.mrb[0].mxu0
      %1380 = vmatprep.mubr.bf16.mxu0 0
      %1381 = vmatmul.mubr.bf16.gmra.mrb[0].mxu0 %v1335
      %v1382 = vpop.f32.mrb[0].mxu0
      %v1383 = vadd.f32 %v1317, %v1382
      %v1384 = vpop.f32.mrb[0].mxu0
      %v1385 = vpop.f32.mrb[0].mxu0
      %v1386 = vadd.f32 %v1317, %v1385
      %v1387 = vpop.f32.mrb[0].mxu0
      %1388 = vmatprep.mubr.bf16.mxu0 0
      %1389 = vmatmul.mubr.bf16.gmra.mrb[0].mxu0 %v1338
      %v1390 = vpop.f32.mrb[0].mxu0
      %v1391 = vadd.f32 %v1317, %v1390
      %v1392 = vpop.f32.mrb[0].mxu0
      %v1393 = vpop.f32.mrb[0].mxu0
      %v1394 = vadd.f32 %v1317, %v1393
      %v1395 = vpop.f32.mrb[0].mxu0
      %1396 = vdwg.mxu0
      %v1397 = vlaneseq
      %v1398 = vshrl.u32 %v1397, 7
      %v1399 = vadd.s32 %v1398, 8
      %v1400 = vadd.s32 %v1398, 16
      %v1401 = vlaneseq
      %v1402 = vand.u32 %v1401, 127
      %vm1403 = vcmp.ge.s32.totalorder %v1398, 8
      %vm1404 = vcmp.ge.s32.totalorder %v1399, 8
      %vm1405 = vcmp.ge.s32.totalorder %v1400, 8
      %v1406 = vsel %vm1403, 1, 0
      %v1407 = vsel %vm1404, 1, 0
      %v1408 = vsel %vm1405, 1, 0
      %vm1409 = vcmp.ge.s32.totalorder %v1398, 16
      %vm1410 = vcmp.ge.s32.totalorder %v1399, 16
      %vm1411 = vcmp.ge.s32.totalorder %v1400, 16
      %v1412 = vsel %vm1409, 1, 0
      %v1413 = vsel %vm1410, 1, 0
      %v1414 = vsel %vm1411, 1, 0
      %v1415 = vadd.s32 %v1406, %v1412
      %v1416 = vadd.s32 %v1407, %v1413
      %v1417 = vadd.s32 %v1408, %v1414
      %vm1418 = vcmp.ge.s32.totalorder %v1402, 8
      %v1419 = vsel %vm1418, 1, 0
      %vm1420 = vcmp.ge.s32.totalorder %v1402, 16
      %v1421 = vsel %vm1420, 1, 0
      %v1422 = vadd.s32 %v1419, %v1421
      %v1423 = vmul.u32 %v1402, 3
      %v1424 = vmul.u32 %v1422, 23
      %v1425 = vsub.s32 %v1423, %v1424
      %v1426 = vmul.u32 %v1398, 3
      %v1427 = vmul.u32 %v1399, 3
      %v1428 = vmul.u32 %v1400, 3
      %v1429 = vmul.u32 %v1415, 23
      %v1430 = vmul.u32 %v1416, 23
      %v1431 = vmul.u32 %v1417, 23
      %v1432 = vsub.s32 %v1426, %v1429
      %v1433 = vsub.s32 %v1427, %v1430
      %v1434 = vsub.s32 %v1428, %v1431
      %vm1435 = vcmp.le.s32.totalorder %v1425, %v1432
      %vm1436 = vcmp.le.s32.totalorder %v1425, %v1433
      %vm1437 = vcmp.le.s32.totalorder %v1425, %v1434
      %v1438 = vmul.f32 %v1375, 0.25
      %v1439 = vmul.f32 %v1378, 0.25
      %v1440 = vmul.f32 %v1383, 0.25
      %v1441 = vmul.f32 %v1386, 0.25
      %v1442 = vmul.f32 %v1391, 0.25
      %v1443 = vmul.f32 %v1394, 0.25
      %v1444 = vpack.c.bf16 %v1439, %v1438
      %v1445 = vpack.c.bf16 %v1440, %v1440
      %v1446 = vpack.c.bf16 %v1442, %v1441
      %v1447 = vpack.c.bf16 %v1443, %v1443
      %v1448 = vpack.c.bf16 %v1378, %v1375
      %v1449 = vpack.c.bf16 %v1383, %v1383
      %v1450 = vpack.c.bf16 %v1391, %v1386
      %v1451 = vpack.c.bf16 %v1394, %v1394
      %1454 = vrot.lane.b32.xlu0 %v1448, 96
      %v1455 = vpop.permute.xlu0 %1454
      %1456 = vrot.lane.b32.xlu0 %v1449, 96
      %v1457 = vpop.permute.xlu0 %1456
      %vm1458 = vcmask 130048
      %v1460 = vsel %vm1458, %v1444, 0
      %v1463 = vsel %vm1458, %v1445, 0
      %v1466 = vsel %vm1458, %v1455, 0
      %v1469 = vsel %vm1458, %v1457, 0
      %1471 = vmatprep.subr.bf16.mxu0 0
      %1472 = vmatpush1.bf16.xpose.msra.mxu0 %v1466
      %1473 = vmatprep.subr.bf16.mxu0 0
      %1474 = vmatpush1.bf16.xpose.msra.mxu0 %v1469
      %1475 = vmatprep.subr.bf16.mxu0 0
      %1476 = vmatpush1.bf16.xpose.msra.mxu0 0
      %1477 = vmatprep.subr.bf16.mxu0 0
      %1478 = vmatpush1.bf16.xpose.msra.mxu0 0
      %1479 = vmatprep.subr.bf16.mxu0 0
      %1480 = vmatpush1.bf16.xpose.msra.mxu0 0
      %1481 = vmatprep.subr.bf16.mxu0 0
      %1482 = vmatpush1.bf16.xpose.msra.mxu0 0
      %1483 = vmatprep.subr.bf16.mxu0 0
      %1484 = vmatpush1.bf16.xpose.msra.mxu0 0
      %1485 = vmatprep.subr.bf16.mxu0 0
      %1486 = vmatpush1.bf16.xpose.msra.mxu0 0
      %1487 = vmatprep.subr.bf16.mxu0 0
      %1488 = vmatpush1.bf16.xpose.msra.mxu0 0
      %1489 = vmatprep.subr.bf16.mxu0 0
      %1490 = vmatpush1.bf16.xpose.msra.mxu0 0
      %1491 = vmatprep.subr.bf16.mxu0 0
      %1492 = vmatpush1.bf16.xpose.msra.mxu0 0
      %1493 = vmatprep.subr.bf16.mxu0 0
      %1494 = vmatpush1.bf16.xpose.msra.mxu0 0
      %1495 = vmatprep.subr.bf16.mxu0 0
      %1496 = vmatpush1.bf16.xpose.msra.mxu0 0
      %1497 = vmatprep.subr.bf16.mxu0 0
      %1498 = vmatpush1.bf16.xpose.msra.mxu0 0
      %1499 = vmatprep.subr.bf16.mxu0 0
      %1500 = vmatpush1.bf16.xpose.msra.mxu0 0
      %1501 = vmatprep.subr.bf16.mxu0 0
      %1502 = vmatpush1.bf16.xpose.msra.mxu0 0
      %1503 = vmatprep.mubr.bf16.mxu0 0
      %1504 = vmatmul.mubr.bf16.gmra.mrb[0].mxu0 %v1460
      %v1505 = vpop.f32.mrb[0].mxu0
      %v1506 = vadd.f32 0.0, %v1505
      %v1507 = vpop.f32.mrb[0].mxu0
      %v1508 = vpop.f32.mrb[0].mxu0
      %v1509 = vadd.f32 0.0, %v1508
      %v1510 = vpop.f32.mrb[0].mxu0
      %1511 = vmatprep.mubr.bf16.mxu0 0
      %1512 = vmatmul.mubr.bf16.gmra.mrb[0].mxu0 %v1463
      %v1513 = vpop.f32.mrb[0].mxu0
      %v1514 = vadd.f32 0.0, %v1513
      %v1515 = vpop.f32.mrb[0].mxu0
      %v1516 = vpop.f32.mrb[0].mxu0
      %v1517 = vpop.f32.mrb[0].mxu0
      %1518 = vdwg.mxu0
      %1521 = vrot.lane.b32.xlu0 %v1450, 96
      %v1522 = vpop.permute.xlu0 %1521
      %1523 = vrot.lane.b32.xlu0 %v1451, 96
      %v1524 = vpop.permute.xlu0 %1523
      %v1526 = vsel %vm1458, %v1446, 0
      %v1529 = vsel %vm1458, %v1447, 0
      %v1532 = vsel %vm1458, %v1522, 0
      %v1535 = vsel %vm1458, %v1524, 0
      %1537 = vmatprep.subr.bf16.mxu0 0
      %1538 = vmatpush1.bf16.xpose.msra.mxu0 %v1532
      %1539 = vmatprep.subr.bf16.mxu0 0
      %1540 = vmatpush1.bf16.xpose.msra.mxu0 %v1535
      %1541 = vmatprep.subr.bf16.mxu0 0
      %1542 = vmatpush1.bf16.xpose.msra.mxu0 0
      %1543 = vmatprep.subr.bf16.mxu0 0
      %1544 = vmatpush1.bf16.xpose.msra.mxu0 0
      %1545 = vmatprep.subr.bf16.mxu0 0
      %1546 = vmatpush1.bf16.xpose.msra.mxu0 0
      %1547 = vmatprep.subr.bf16.mxu0 0
      %1548 = vmatpush1.bf16.xpose.msra.mxu0 0
      %1549 = vmatprep.subr.bf16.mxu0 0
      %1550 = vmatpush1.bf16.xpose.msra.mxu0 0
      %1551 = vmatprep.subr.bf16.mxu0 0
      %1552 = vmatpush1.bf16.xpose.msra.mxu0 0
      %1553 = vmatprep.subr.bf16.mxu0 0
      %1554 = vmatpush1.bf16.xpose.msra.mxu0 0
      %1555 = vmatprep.subr.bf16.mxu0 0
      %1556 = vmatpush1.bf16.xpose.msra.mxu0 0
      %1557 = vmatprep.subr.bf16.mxu0 0
      %1558 = vmatpush1.bf16.xpose.msra.mxu0 0
      %1559 = vmatprep.subr.bf16.mxu0 0
      %1560 = vmatpush1.bf16.xpose.msra.mxu0 0
      %1561 = vmatprep.subr.bf16.mxu0 0
      %1562 = vmatpush1.bf16.xpose.msra.mxu0 0
      %1563 = vmatprep.subr.bf16.mxu0 0
      %1564 = vmatpush1.bf16.xpose.msra.mxu0 0
      %1565 = vmatprep.subr.bf16.mxu0 0
      %1566 = vmatpush1.bf16.xpose.msra.mxu0 0
      %1567 = vmatprep.subr.bf16.mxu0 0
      %1568 = vmatpush1.bf16.xpose.msra.mxu0 0
      %1569 = vmatprep.mubr.bf16.mxu0 0
      %1570 = vmatmul.mubr.bf16.gmra.mrb[0].mxu0 %v1526
      %v1571 = vpop.f32.mrb[0].mxu0
      %v1572 = vadd.f32 0.0, %v1571
      %v1573 = vpop.f32.mrb[0].mxu0
      %v1574 = vpop.f32.mrb[0].mxu0
      %v1575 = vadd.f32 0.0, %v1574
      %v1576 = vpop.f32.mrb[0].mxu0
      %1577 = vmatprep.mubr.bf16.mxu0 0
      %1578 = vmatmul.mubr.bf16.gmra.mrb[0].mxu0 %v1529
      %v1579 = vpop.f32.mrb[0].mxu0
      %v1580 = vadd.f32 0.0, %v1579
      %v1581 = vpop.f32.mrb[0].mxu0
      %v1582 = vpop.f32.mrb[0].mxu0
      %v1583 = vpop.f32.mrb[0].mxu0
      %1584 = vdwg.mxu0
      %v1585 = vsel %vm1435, 1, 0
      %v1586 = vsel %vm1436, 1, 0
      %v1587 = vsel %vm1437, 1, 0
      %vm1588 = vcmp.eq.s32.totalorder %v1585, 1
      %vm1589 = vcmp.eq.s32.totalorder %v1586, 1
      %vm1590 = vcmp.eq.s32.totalorder %v1587, 1
      %v1591 = vsel %vm1588, %v1506, -1e+30
      %v1592 = vsel %vm1589, %v1509, -1e+30
      %v1593 = vsel %vm1590, %v1514, -1e+30
      %v1594 = vsel %vm1588, %v1572, -1e+30
      %v1595 = vsel %vm1589, %v1575, -1e+30
      %v1596 = vsel %vm1590, %v1580, -1e+30
      %vm1597 = vcmask 195584
      %v1598 = vsel %vm1597, %v1591, -inf
      %1599 = vmax.xlane.f32.xlu0 %v1598
      %v1600 = vpop.xlane.xlu0 %1599
      %v1601 = vsel %vm1597, %v1592, -inf
      %1602 = vmax.xlane.f32.xlu0 %v1601
      %v1603 = vpop.xlane.xlu0 %1602
      %v1604 = vsel %vm1597, %v1593, -inf
      %1605 = vmax.xlane.f32.xlu0 %v1604
      %v1606 = vpop.xlane.xlu0 %1605
      %v1607 = vsel %vm1597, %v1594, -inf
      %1608 = vmax.xlane.f32.xlu0 %v1607
      %v1609 = vpop.xlane.xlu0 %1608
      %v1610 = vsel %vm1597, %v1595, -inf
      %1611 = vmax.xlane.f32.xlu0 %v1610
      %v1612 = vpop.xlane.xlu0 %1611
      %v1613 = vsel %vm1597, %v1596, -inf
      %1614 = vmax.xlane.f32.xlu0 %v1613
      %v1615 = vpop.xlane.xlu0 %1614
      %v1616 = vsub.f32 %v1591, %v1600
      %v1617 = vsub.f32 %v1592, %v1603
      %v1618 = vsub.f32 %v1593, %v1606
      %v1619 = vsub.f32 %v1594, %v1609
      %v1620 = vsub.f32 %v1595, %v1612
      %v1621 = vsub.f32 %v1596, %v1615
      %v1622 = vmul.f32 %v1616, 1.442695
      %v1623 = vpow.pop %v1622
      %v1624 = vmul.f32 %v1617, 1.442695
      %v1625 = vpow.pop %v1624
      %v1626 = vmul.f32 %v1618, 1.442695
      %v1627 = vpow.pop %v1626
      %v1628 = vmul.f32 %v1619, 1.442695
      %v1629 = vpow.pop %v1628
      %v1630 = vmul.f32 %v1620, 1.442695
      %v1631 = vpow.pop %v1630
      %v1632 = vmul.f32 %v1621, 1.442695
      %v1633 = vpow.pop %v1632
      %v1634 = vsel %vm1597, %v1623, 0.0
      %1635 = vadd.xlane.f32.xlu0 %v1634
      %v1636 = vpop.xlane.xlu0 %1635
      %v1637 = vsel %vm1597, %v1625, 0.0
      %1638 = vadd.xlane.f32.xlu0 %v1637
      %v1639 = vpop.xlane.xlu0 %1638
      %v1640 = vsel %vm1597, %v1627, 0.0
      %1641 = vadd.xlane.f32.xlu0 %v1640
      %v1642 = vpop.xlane.xlu0 %1641
      %v1643 = vsel %vm1597, %v1629, 0.0
      %1644 = vadd.xlane.f32.xlu0 %v1643
      %v1645 = vpop.xlane.xlu0 %1644
      %v1646 = vsel %vm1597, %v1631, 0.0
      %1647 = vadd.xlane.f32.xlu0 %v1646
      %v1648 = vpop.xlane.xlu0 %1647
      %v1649 = vsel %vm1597, %v1633, 0.0
      %1650 = vadd.xlane.f32.xlu0 %v1649
      %v1651 = vpop.xlane.xlu0 %1650
      %v1652 = vrcp.pop %v1636
      %v1653 = vrcp.pop %v1639
      %v1654 = vrcp.pop %v1642
      %v1655 = vrcp.pop %v1645
      %v1656 = vrcp.pop %v1648
      %v1657 = vrcp.pop %v1651
      %v1658 = vmul.f32 %v1623, %v1652
      %v1659 = vmul.f32 %v1625, %v1653
      %v1660 = vmul.f32 %v1627, %v1654
      %v1661 = vmul.f32 %v1629, %v1655
      %v1662 = vmul.f32 %v1631, %v1656
      %v1663 = vmul.f32 %v1633, %v1657
      %v1664 = vpack.c.bf16 %v1659, %v1658
      %v1665 = vpack.c.bf16 %v1660, %v1660
      %v1666 = vpack.c.bf16 %v1662, %v1661
      %v1667 = vpack.c.bf16 %v1663, %v1663
      %1668 = vrot.lane.b32.xlu0 %v1448, 64
      %v1669 = vpop.permute.xlu0 %1668
      %1670 = vrot.lane.b32.xlu0 %v1449, 64
      %v1671 = vpop.permute.xlu0 %1670
      %v1674 = vsel %vm1597, %v1664, 0
      %v1677 = vsel %vm1597, %v1665, 0
      %vm1679 = vcmask 1043456
      %v1681 = vsel %vm1679, %v1671, 0
      %1683 = vmatprep.subr.bf16.mxu0 0
      %1684 = vmatpush1.bf16.msra.mxu0 %v1669
      %1685 = vmatprep.subr.bf16.mxu0 0
      %1686 = vmatpush1.bf16.msra.mxu0 %v1681
      %1687 = vmatprep.subr.bf16.mxu0 0
      %1688 = vmatpush1.bf16.msra.mxu0 0
      %1689 = vmatprep.subr.bf16.mxu0 0
      %1690 = vmatpush1.bf16.msra.mxu0 0
      %1691 = vmatprep.subr.bf16.mxu0 0
      %1692 = vmatpush1.bf16.msra.mxu0 0
      %1693 = vmatprep.subr.bf16.mxu0 0
      %1694 = vmatpush1.bf16.msra.mxu0 0
      %1695 = vmatprep.subr.bf16.mxu0 0
      %1696 = vmatpush1.bf16.msra.mxu0 0
      %1697 = vmatprep.subr.bf16.mxu0 0
      %1698 = vmatpush1.bf16.msra.mxu0 0
      %1699 = vmatprep.subr.bf16.mxu0 0
      %1700 = vmatpush1.bf16.msra.mxu0 0
      %1701 = vmatprep.subr.bf16.mxu0 0
      %1702 = vmatpush1.bf16.msra.mxu0 0
      %1703 = vmatprep.subr.bf16.mxu0 0
      %1704 = vmatpush1.bf16.msra.mxu0 0
      %1705 = vmatprep.subr.bf16.mxu0 0
      %1706 = vmatpush1.bf16.msra.mxu0 0
      %1707 = vmatprep.subr.bf16.mxu0 0
      %1708 = vmatpush1.bf16.msra.mxu0 0
      %1709 = vmatprep.subr.bf16.mxu0 0
      %1710 = vmatpush1.bf16.msra.mxu0 0
      %1711 = vmatprep.subr.bf16.mxu0 0
      %1712 = vmatpush1.bf16.msra.mxu0 0
      %1713 = vmatprep.subr.bf16.mxu0 0
      %1714 = vmatpush1.bf16.msra.mxu0 0
      %1715 = vmatprep.mubr.bf16.mxu0 0
      %1716 = vmatmul.mubr.bf16.gmra.mrb[0].mxu0 %v1674
      %v1717 = vpop.f32.mrb[0].mxu0
      %v1718 = vadd.f32 0.0, %v1717
      %v1719 = vpop.f32.mrb[0].mxu0
      %v1720 = vpop.f32.mrb[0].mxu0
      %v1721 = vadd.f32 0.0, %v1720
      %v1722 = vpop.f32.mrb[0].mxu0
      %1723 = vmatprep.mubr.bf16.mxu0 0
      %1724 = vmatmul.mubr.bf16.gmra.mrb[0].mxu0 %v1677
      %v1725 = vpop.f32.mrb[0].mxu0
      %v1726 = vadd.f32 0.0, %v1725
      %v1727 = vpop.f32.mrb[0].mxu0
      %v1728 = vpop.f32.mrb[0].mxu0
      %v1729 = vpop.f32.mrb[0].mxu0
      %1730 = vdwg.mxu0
      %1731 = vrot.lane.b32.xlu0 %v1450, 64
      %v1732 = vpop.permute.xlu0 %1731
      %1733 = vrot.lane.b32.xlu0 %v1451, 64
      %v1734 = vpop.permute.xlu0 %1733
      %v1737 = vsel %vm1597, %v1666, 0
      %v1740 = vsel %vm1597, %v1667, 0
      %v1743 = vsel %vm1679, %v1734, 0
      %1745 = vmatprep.subr.bf16.mxu0 0
      %1746 = vmatpush1.bf16.msra.mxu0 %v1732
      %1747 = vmatprep.subr.bf16.mxu0 0
      %1748 = vmatpush1.bf16.msra.mxu0 %v1743
      %1749 = vmatprep.subr.bf16.mxu0 0
      %1750 = vmatpush1.bf16.msra.mxu0 0
      %1751 = vmatprep.subr.bf16.mxu0 0
      %1752 = vmatpush1.bf16.msra.mxu0 0
      %1753 = vmatprep.subr.bf16.mxu0 0
      %1754 = vmatpush1.bf16.msra.mxu0 0
      %1755 = vmatprep.subr.bf16.mxu0 0
      %1756 = vmatpush1.bf16.msra.mxu0 0
      %1757 = vmatprep.subr.bf16.mxu0 0
      %1758 = vmatpush1.bf16.msra.mxu0 0
      %1759 = vmatprep.subr.bf16.mxu0 0
      %1760 = vmatpush1.bf16.msra.mxu0 0
      %1761 = vmatprep.subr.bf16.mxu0 0
      %1762 = vmatpush1.bf16.msra.mxu0 0
      %1763 = vmatprep.subr.bf16.mxu0 0
      %1764 = vmatpush1.bf16.msra.mxu0 0
      %1765 = vmatprep.subr.bf16.mxu0 0
      %1766 = vmatpush1.bf16.msra.mxu0 0
      %1767 = vmatprep.subr.bf16.mxu0 0
      %1768 = vmatpush1.bf16.msra.mxu0 0
      %1769 = vmatprep.subr.bf16.mxu0 0
      %1770 = vmatpush1.bf16.msra.mxu0 0
      %1771 = vmatprep.subr.bf16.mxu0 0
      %1772 = vmatpush1.bf16.msra.mxu0 0
      %1773 = vmatprep.subr.bf16.mxu0 0
      %1774 = vmatpush1.bf16.msra.mxu0 0
      %1775 = vmatprep.subr.bf16.mxu0 0
      %1776 = vmatpush1.bf16.msra.mxu0 0
      %1777 = vmatprep.mubr.bf16.mxu0 0
      %1778 = vmatmul.mubr.bf16.gmra.mrb[0].mxu0 %v1737
      %v1779 = vpop.f32.mrb[0].mxu0
      %v1780 = vadd.f32 0.0, %v1779
      %v1781 = vpop.f32.mrb[0].mxu0
      %v1782 = vpop.f32.mrb[0].mxu0
      %v1783 = vadd.f32 0.0, %v1782
      %v1784 = vpop.f32.mrb[0].mxu0
      %1785 = vmatprep.mubr.bf16.mxu0 0
      %1786 = vmatmul.mubr.bf16.gmra.mrb[0].mxu0 %v1740
      %v1787 = vpop.f32.mrb[0].mxu0
      %v1788 = vadd.f32 0.0, %v1787
      %v1789 = vpop.f32.mrb[0].mxu0
      %v1790 = vpop.f32.mrb[0].mxu0
      %v1791 = vpop.f32.mrb[0].mxu0
      %1792 = vdwg.mxu0
      %1795 = vrot.lane.b32.xlu0 %v1444, 112
      %v1796 = vpop.permute.xlu0 %1795
      %1797 = vrot.lane.b32.xlu0 %v1445, 112
      %v1798 = vpop.permute.xlu0 %1797
      %1799 = vrot.lane.b32.xlu0 %v1448, 80
      %v1800 = vpop.permute.xlu0 %1799
      %1801 = vrot.lane.b32.xlu0 %v1449, 80
      %v1802 = vpop.permute.xlu0 %1801
      %v1804 = vsel %vm1458, %v1796, 0
      %v1807 = vsel %vm1458, %v1798, 0
      %v1810 = vsel %vm1458, %v1800, 0
      %v1813 = vsel %vm1458, %v1802, 0
      %1815 = vmatprep.subr.bf16.mxu0 0
      %1816 = vmatpush1.bf16.xpose.msra.mxu0 %v1810
      %1817 = vmatprep.subr.bf16.mxu0 0
      %1818 = vmatpush1.bf16.xpose.msra.mxu0 %v1813
      %1819 = vmatprep.subr.bf16.mxu0 0
      %1820 = vmatpush1.bf16.xpose.msra.mxu0 0
      %1821 = vmatprep.subr.bf16.mxu0 0
      %1822 = vmatpush1.bf16.xpose.msra.mxu0 0
      %1823 = vmatprep.subr.bf16.mxu0 0
      %1824 = vmatpush1.bf16.xpose.msra.mxu0 0
      %1825 = vmatprep.subr.bf16.mxu0 0
      %1826 = vmatpush1.bf16.xpose.msra.mxu0 0
      %1827 = vmatprep.subr.bf16.mxu0 0
      %1828 = vmatpush1.bf16.xpose.msra.mxu0 0
      %1829 = vmatprep.subr.bf16.mxu0 0
      %1830 = vmatpush1.bf16.xpose.msra.mxu0 0
      %1831 = vmatprep.subr.bf16.mxu0 0
      %1832 = vmatpush1.bf16.xpose.msra.mxu0 0
      %1833 = vmatprep.subr.bf16.mxu0 0
      %1834 = vmatpush1.bf16.xpose.msra.mxu0 0
      %1835 = vmatprep.subr.bf16.mxu0 0
      %1836 = vmatpush1.bf16.xpose.msra.mxu0 0
      %1837 = vmatprep.subr.bf16.mxu0 0
      %1838 = vmatpush1.bf16.xpose.msra.mxu0 0
      %1839 = vmatprep.subr.bf16.mxu0 0
      %1840 = vmatpush1.bf16.xpose.msra.mxu0 0
      %1841 = vmatprep.subr.bf16.mxu0 0
      %1842 = vmatpush1.bf16.xpose.msra.mxu0 0
      %1843 = vmatprep.subr.bf16.mxu0 0
      %1844 = vmatpush1.bf16.xpose.msra.mxu0 0
      %1845 = vmatprep.subr.bf16.mxu0 0
      %1846 = vmatpush1.bf16.xpose.msra.mxu0 0
      %1847 = vmatprep.mubr.bf16.mxu0 0
      %1848 = vmatmul.mubr.bf16.gmra.mrb[0].mxu0 %v1804
      %v1849 = vpop.f32.mrb[0].mxu0
      %v1850 = vadd.f32 0.0, %v1849
      %v1851 = vpop.f32.mrb[0].mxu0
      %v1852 = vpop.f32.mrb[0].mxu0
      %v1853 = vadd.f32 0.0, %v1852
      %v1854 = vpop.f32.mrb[0].mxu0
      %1855 = vmatprep.mubr.bf16.mxu0 0
      %1856 = vmatmul.mubr.bf16.gmra.mrb[0].mxu0 %v1807
      %v1857 = vpop.f32.mrb[0].mxu0
      %v1858 = vadd.f32 0.0, %v1857
      %v1859 = vpop.f32.mrb[0].mxu0
      %v1860 = vpop.f32.mrb[0].mxu0
      %v1861 = vpop.f32.mrb[0].mxu0
      %1862 = vdwg.mxu0
      %1865 = vrot.lane.b32.xlu0 %v1446, 112
      %v1866 = vpop.permute.xlu0 %1865
      %1867 = vrot.lane.b32.xlu0 %v1447, 112
      %v1868 = vpop.permute.xlu0 %1867
      %1869 = vrot.lane.b32.xlu0 %v1450, 80
      %v1870 = vpop.permute.xlu0 %1869
      %1871 = vrot.lane.b32.xlu0 %v1451, 80
      %v1872 = vpop.permute.xlu0 %1871
      %v1874 = vsel %vm1458, %v1866, 0
      %v1877 = vsel %vm1458, %v1868, 0
      %v1880 = vsel %vm1458, %v1870, 0
      %v1883 = vsel %vm1458, %v1872, 0
      %1885 = vmatprep.subr.bf16.mxu0 0
      %1886 = vmatpush1.bf16.xpose.msra.mxu0 %v1880
      %1887 = vmatprep.subr.bf16.mxu0 0
      %1888 = vmatpush1.bf16.xpose.msra.mxu0 %v1883
      %1889 = vmatprep.subr.bf16.mxu0 0
      %1890 = vmatpush1.bf16.xpose.msra.mxu0 0
      %1891 = vmatprep.subr.bf16.mxu0 0
      %1892 = vmatpush1.bf16.xpose.msra.mxu0 0
      %1893 = vmatprep.subr.bf16.mxu0 0
      %1894 = vmatpush1.bf16.xpose.msra.mxu0 0
      %1895 = vmatprep.subr.bf16.mxu0 0
      %1896 = vmatpush1.bf16.xpose.msra.mxu0 0
      %1897 = vmatprep.subr.bf16.mxu0 0
      %1898 = vmatpush1.bf16.xpose.msra.mxu0 0
      %1899 = vmatprep.subr.bf16.mxu0 0
      %1900 = vmatpush1.bf16.xpose.msra.mxu0 0
      %1901 = vmatprep.subr.bf16.mxu0 0
      %1902 = vmatpush1.bf16.xpose.msra.mxu0 0
      %1903 = vmatprep.subr.bf16.mxu0 0
      %1904 = vmatpush1.bf16.xpose.msra.mxu0 0
      %1905 = vmatprep.subr.bf16.mxu0 0
      %1906 = vmatpush1.bf16.xpose.msra.mxu0 0
      %1907 = vmatprep.subr.bf16.mxu0 0
      %1908 = vmatpush1.bf16.xpose.msra.mxu0 0
      %1909 = vmatprep.subr.bf16.mxu0 0
      %1910 = vmatpush1.bf16.xpose.msra.mxu0 0
      %1911 = vmatprep.subr.bf16.mxu0 0
      %1912 = vmatpush1.bf16.xpose.msra.mxu0 0
      %1913 = vmatprep.subr.bf16.mxu0 0
      %1914 = vmatpush1.bf16.xpose.msra.mxu0 0
      %1915 = vmatprep.subr.bf16.mxu0 0
      %1916 = vmatpush1.bf16.xpose.msra.mxu0 0
      %1917 = vmatprep.mubr.bf16.mxu0 0
      %1918 = vmatmul.mubr.bf16.gmra.mrb[0].mxu0 %v1874
      %v1919 = vpop.f32.mrb[0].mxu0
      %v1920 = vadd.f32 0.0, %v1919
      %v1921 = vpop.f32.mrb[0].mxu0
      %v1922 = vpop.f32.mrb[0].mxu0
      %v1923 = vadd.f32 0.0, %v1922
      %v1924 = vpop.f32.mrb[0].mxu0
      %1925 = vmatprep.mubr.bf16.mxu0 0
      %1926 = vmatmul.mubr.bf16.gmra.mrb[0].mxu0 %v1877
      %v1927 = vpop.f32.mrb[0].mxu0
      %v1928 = vadd.f32 0.0, %v1927
      %v1929 = vpop.f32.mrb[0].mxu0
      %v1930 = vpop.f32.mrb[0].mxu0
      %v1931 = vpop.f32.mrb[0].mxu0
      %1932 = vdwg.mxu0
      %v1933 = vsel %vm1588, %v1850, -1e+30
      %v1934 = vsel %vm1589, %v1853, -1e+30
      %v1935 = vsel %vm1590, %v1858, -1e+30
      %v1936 = vsel %vm1588, %v1920, -1e+30
      %v1937 = vsel %vm1589, %v1923, -1e+30
      %v1938 = vsel %vm1590, %v1928, -1e+30
      %v1939 = vsel %vm1597, %v1933, -inf
      %1940 = vmax.xlane.f32.xlu0 %v1939
      %v1941 = vpop.xlane.xlu0 %1940
      %v1942 = vsel %vm1597, %v1934, -inf
      %1943 = vmax.xlane.f32.xlu0 %v1942
      %v1944 = vpop.xlane.xlu0 %1943
      %v1945 = vsel %vm1597, %v1935, -inf
      %1946 = vmax.xlane.f32.xlu0 %v1945
      %v1947 = vpop.xlane.xlu0 %1946
      %v1948 = vsel %vm1597, %v1936, -inf
      %1949 = vmax.xlane.f32.xlu0 %v1948
      %v1950 = vpop.xlane.xlu0 %1949
      %v1951 = vsel %vm1597, %v1937, -inf
      %1952 = vmax.xlane.f32.xlu0 %v1951
      %v1953 = vpop.xlane.xlu0 %1952
      %v1954 = vsel %vm1597, %v1938, -inf
      %1955 = vmax.xlane.f32.xlu0 %v1954
      %v1956 = vpop.xlane.xlu0 %1955
      %v1957 = vsub.f32 %v1933, %v1941
      %v1958 = vsub.f32 %v1934, %v1944
      %v1959 = vsub.f32 %v1935, %v1947
      %v1960 = vsub.f32 %v1936, %v1950
      %v1961 = vsub.f32 %v1937, %v1953
      %v1962 = vsub.f32 %v1938, %v1956
      %v1963 = vmul.f32 %v1957, 1.442695
      %v1964 = vpow.pop %v1963
      %v1965 = vmul.f32 %v1958, 1.442695
      %v1966 = vpow.pop %v1965
      %v1967 = vmul.f32 %v1959, 1.442695
      %v1968 = vpow.pop %v1967
      %v1969 = vmul.f32 %v1960, 1.442695
      %v1970 = vpow.pop %v1969
      %v1971 = vmul.f32 %v1961, 1.442695
      %v1972 = vpow.pop %v1971
      %v1973 = vmul.f32 %v1962, 1.442695
      %v1974 = vpow.pop %v1973
      %v1975 = vsel %vm1597, %v1964, 0.0
      %1976 = vadd.xlane.f32.xlu0 %v1975
      %v1977 = vpop.xlane.xlu0 %1976
      %v1978 = vsel %vm1597, %v1966, 0.0
      %1979 = vadd.xlane.f32.xlu0 %v1978
      %v1980 = vpop.xlane.xlu0 %1979
      %v1981 = vsel %vm1597, %v1968, 0.0
      %1982 = vadd.xlane.f32.xlu0 %v1981
      %v1983 = vpop.xlane.xlu0 %1982
      %v1984 = vsel %vm1597, %v1970, 0.0
      %1985 = vadd.xlane.f32.xlu0 %v1984
      %v1986 = vpop.xlane.xlu0 %1985
      %v1987 = vsel %vm1597, %v1972, 0.0
      %1988 = vadd.xlane.f32.xlu0 %v1987
      %v1989 = vpop.xlane.xlu0 %1988
      %v1990 = vsel %vm1597, %v1974, 0.0
      %1991 = vadd.xlane.f32.xlu0 %v1990
      %v1992 = vpop.xlane.xlu0 %1991
      %v1993 = vrcp.pop %v1977
      %v1994 = vrcp.pop %v1980
      %v1995 = vrcp.pop %v1983
      %v1996 = vrcp.pop %v1986
      %v1997 = vrcp.pop %v1989
      %v1998 = vrcp.pop %v1992
      %v1999 = vmul.f32 %v1964, %v1993
      %v2000 = vmul.f32 %v1966, %v1994
      %v2001 = vmul.f32 %v1968, %v1995
      %v2002 = vmul.f32 %v1970, %v1996
      %v2003 = vmul.f32 %v1972, %v1997
      %v2004 = vmul.f32 %v1974, %v1998
      %v2005 = vpack.c.bf16 %v2000, %v1999
      %v2006 = vpack.c.bf16 %v2001, %v2001
      %v2007 = vpack.c.bf16 %v2003, %v2002
      %v2008 = vpack.c.bf16 %v2004, %v2004
      %2009 = vrot.lane.b32.xlu0 %v1448, 48
      %v2010 = vpop.permute.xlu0 %2009
      %2011 = vrot.lane.b32.xlu0 %v1449, 48
      %v2012 = vpop.permute.xlu0 %2011
      %v2015 = vsel %vm1597, %v2005, 0
      %v2018 = vsel %vm1597, %v2006, 0
      %v2021 = vsel %vm1679, %v2012, 0
      %2023 = vmatprep.subr.bf16.mxu0 0
      %2024 = vmatpush1.bf16.msra.mxu0 %v2010
      %2025 = vmatprep.subr.bf16.mxu0 0
      %2026 = vmatpush1.bf16.msra.mxu0 %v2021
      %2027 = vmatprep.subr.bf16.mxu0 0
      %2028 = vmatpush1.bf16.msra.mxu0 0
      %2029 = vmatprep.subr.bf16.mxu0 0
      %2030 = vmatpush1.bf16.msra.mxu0 0
      %2031 = vmatprep.subr.bf16.mxu0 0
      %2032 = vmatpush1.bf16.msra.mxu0 0
      %2033 = vmatprep.subr.bf16.mxu0 0
      %2034 = vmatpush1.bf16.msra.mxu0 0
      %2035 = vmatprep.subr.bf16.mxu0 0
      %2036 = vmatpush1.bf16.msra.mxu0 0
      %2037 = vmatprep.subr.bf16.mxu0 0
      %2038 = vmatpush1.bf16.msra.mxu0 0
      %2039 = vmatprep.subr.bf16.mxu0 0
      %2040 = vmatpush1.bf16.msra.mxu0 0
      %2041 = vmatprep.subr.bf16.mxu0 0
      %2042 = vmatpush1.bf16.msra.mxu0 0
      %2043 = vmatprep.subr.bf16.mxu0 0
      %2044 = vmatpush1.bf16.msra.mxu0 0
      %2045 = vmatprep.subr.bf16.mxu0 0
      %2046 = vmatpush1.bf16.msra.mxu0 0
      %2047 = vmatprep.subr.bf16.mxu0 0
      %2048 = vmatpush1.bf16.msra.mxu0 0
      %2049 = vmatprep.subr.bf16.mxu0 0
      %2050 = vmatpush1.bf16.msra.mxu0 0
      %2051 = vmatprep.subr.bf16.mxu0 0
      %2052 = vmatpush1.bf16.msra.mxu0 0
      %2053 = vmatprep.subr.bf16.mxu0 0
      %2054 = vmatpush1.bf16.msra.mxu0 0
      %2055 = vmatprep.mubr.bf16.mxu0 0
      %2056 = vmatmul.mubr.bf16.gmra.mrb[0].mxu0 %v2015
      %v2057 = vpop.f32.mrb[0].mxu0
      %v2058 = vadd.f32 0.0, %v2057
      %v2059 = vpop.f32.mrb[0].mxu0
      %v2060 = vpop.f32.mrb[0].mxu0
      %v2061 = vadd.f32 0.0, %v2060
      %v2062 = vpop.f32.mrb[0].mxu0
      %2063 = vmatprep.mubr.bf16.mxu0 0
      %2064 = vmatmul.mubr.bf16.gmra.mrb[0].mxu0 %v2018
      %v2065 = vpop.f32.mrb[0].mxu0
      %v2066 = vadd.f32 0.0, %v2065
      %v2067 = vpop.f32.mrb[0].mxu0
      %v2068 = vpop.f32.mrb[0].mxu0
      %v2069 = vpop.f32.mrb[0].mxu0
      %2070 = vdwg.mxu0
      %2071 = vrot.lane.b32.xlu0 %v1450, 48
      %v2072 = vpop.permute.xlu0 %2071
      %2073 = vrot.lane.b32.xlu0 %v1451, 48
      %v2074 = vpop.permute.xlu0 %2073
      %v2077 = vsel %vm1597, %v2007, 0
      %v2080 = vsel %vm1597, %v2008, 0
      %v2083 = vsel %vm1679, %v2074, 0
      %2085 = vmatprep.subr.bf16.mxu0 0
      %2086 = vmatpush1.bf16.msra.mxu0 %v2072
      %2087 = vmatprep.subr.bf16.mxu0 0
      %2088 = vmatpush1.bf16.msra.mxu0 %v2083
      %2089 = vmatprep.subr.bf16.mxu0 0
      %2090 = vmatpush1.bf16.msra.mxu0 0
      %2091 = vmatprep.subr.bf16.mxu0 0
      %2092 = vmatpush1.bf16.msra.mxu0 0
      %2093 = vmatprep.subr.bf16.mxu0 0
      %2094 = vmatpush1.bf16.msra.mxu0 0
      %2095 = vmatprep.subr.bf16.mxu0 0
      %2096 = vmatpush1.bf16.msra.mxu0 0
      %2097 = vmatprep.subr.bf16.mxu0 0
      %2098 = vmatpush1.bf16.msra.mxu0 0
      %2099 = vmatprep.subr.bf16.mxu0 0
      %2100 = vmatpush1.bf16.msra.mxu0 0
      %2101 = vmatprep.subr.bf16.mxu0 0
      %2102 = vmatpush1.bf16.msra.mxu0 0
      %2103 = vmatprep.subr.bf16.mxu0 0
      %2104 = vmatpush1.bf16.msra.mxu0 0
      %2105 = vmatprep.subr.bf16.mxu0 0
      %2106 = vmatpush1.bf16.msra.mxu0 0
      %2107 = vmatprep.subr.bf16.mxu0 0
      %2108 = vmatpush1.bf16.msra.mxu0 0
      %2109 = vmatprep.subr.bf16.mxu0 0
      %2110 = vmatpush1.bf16.msra.mxu0 0
      %2111 = vmatprep.subr.bf16.mxu0 0
      %2112 = vmatpush1.bf16.msra.mxu0 0
      %2113 = vmatprep.subr.bf16.mxu0 0
      %2114 = vmatpush1.bf16.msra.mxu0 0
      %2115 = vmatprep.subr.bf16.mxu0 0
      %2116 = vmatpush1.bf16.msra.mxu0 0
      %2117 = vmatprep.mubr.bf16.mxu0 0
      %2118 = vmatmul.mubr.bf16.gmra.mrb[0].mxu0 %v2077
      %v2119 = vpop.f32.mrb[0].mxu0
      %v2120 = vadd.f32 0.0, %v2119
      %v2121 = vpop.f32.mrb[0].mxu0
      %v2122 = vpop.f32.mrb[0].mxu0
      %v2123 = vadd.f32 0.0, %v2122
      %v2124 = vpop.f32.mrb[0].mxu0
      %2125 = vmatprep.mubr.bf16.mxu0 0
      %2126 = vmatmul.mubr.bf16.gmra.mrb[0].mxu0 %v2080
      %v2127 = vpop.f32.mrb[0].mxu0
      %v2128 = vadd.f32 0.0, %v2127
      %v2129 = vpop.f32.mrb[0].mxu0
      %v2130 = vpop.f32.mrb[0].mxu0
      %v2131 = vpop.f32.mrb[0].mxu0
      %2132 = vdwg.mxu0
      %2139 = vrot.lane.b32.xlu0 %v2058, 16
      %v2140 = vpop.permute.xlu0 %2139
      %2141 = vrot.lane.b32.xlu0 %v2061, 16
      %v2142 = vpop.permute.xlu0 %2141
      %2143 = vrot.lane.b32.xlu0 %v2066, 16
      %v2144 = vpop.permute.xlu0 %2143
      %2145 = vrot.lane.b32.xlu0 %v2120, 16
      %v2146 = vpop.permute.xlu0 %2145
      %2147 = vrot.lane.b32.xlu0 %v2123, 16
      %v2148 = vpop.permute.xlu0 %2147
      %2149 = vrot.lane.b32.xlu0 %v2128, 16
      %v2150 = vpop.permute.xlu0 %2149
      %v2157 = vsel %vm1458, %v1718, %v2140
      %v2158 = vsel %vm1458, %v1721, %v2142
      %v2159 = vsel %vm1458, %v1726, %v2144
      %v2160 = vsel %vm1458, %v1780, %v2146
      %v2161 = vsel %vm1458, %v1783, %v2148
      %v2162 = vsel %vm1458, %v1788, %v2150
      %v2163 = vpack.c.bf16 %v2158, %v2157
      %v2164 = vpack.c.bf16 %v2160, %v2159
      %v2165 = vpack.c.bf16 %v2162, %v2161
      %v2166 = vld [vmem:[%s900] sm:$0xf]
      %v2167 = vld [vmem:[%s900 + $0x4] sm:$0xf]
      %v2168 = vld [vmem:[%s900 + $0x8] sm:$0xf]
      %v2169 = vld [vmem:[%s900 + $0xc] sm:$0xf]
      %v2174 = vunpack.c.l.b16 %v2166
      %v2175 = vunpack.c.l.b16 %v2167
      %v2176 = vunpack.c.l.b16 %v2168
      %v2177 = vunpack.c.l.b16 %v2169
      %v2178 = vpack.c.b16 %v2175, %v2174
      %v2179 = vpack.c.b16 %v2177, %v2176
      %v2183 = vsel %vm1205, %v2163, 0
      %v2186 = vsel %vm1205, %v2164, 0
      %v2189 = vsel %vm1205, %v2165, 0
      %2191 = vmatprep.subr.bf16.mxu0 0
      %2192 = vmatpush1.bf16.msra.mxu0 %v2178
      %2193 = vmatprep.subr.bf16.mxu0 0
      %2194 = vmatpush1.bf16.msra.mxu0 %v2179
      %2195 = vmatprep.subr.bf16.mxu0 0
      %2196 = vmatpush1.bf16.msra.mxu0 0
      %2197 = vmatprep.subr.bf16.mxu0 0
      %2198 = vmatpush1.bf16.msra.mxu0 0
      %2199 = vmatprep.subr.bf16.mxu0 0
      %2200 = vmatpush1.bf16.msra.mxu0 0
      %2201 = vmatprep.subr.bf16.mxu0 0
      %2202 = vmatpush1.bf16.msra.mxu0 0
      %2203 = vmatprep.subr.bf16.mxu0 0
      %2204 = vmatpush1.bf16.msra.mxu0 0
      %2205 = vmatprep.subr.bf16.mxu0 0
      %2206 = vmatpush1.bf16.msra.mxu0 0
      %2207 = vmatprep.subr.bf16.mxu0 0
      %2208 = vmatpush1.bf16.msra.mxu0 0
      %2209 = vmatprep.subr.bf16.mxu0 0
      %2210 = vmatpush1.bf16.msra.mxu0 0
      %2211 = vmatprep.subr.bf16.mxu0 0
      %2212 = vmatpush1.bf16.msra.mxu0 0
      %2213 = vmatprep.subr.bf16.mxu0 0
      %2214 = vmatpush1.bf16.msra.mxu0 0
      %2215 = vmatprep.subr.bf16.mxu0 0
      %2216 = vmatpush1.bf16.msra.mxu0 0
      %2217 = vmatprep.subr.bf16.mxu0 0
      %2218 = vmatpush1.bf16.msra.mxu0 0
      %2219 = vmatprep.subr.bf16.mxu0 0
      %2220 = vmatpush1.bf16.msra.mxu0 0
      %2221 = vmatprep.subr.bf16.mxu0 0
      %2222 = vmatpush1.bf16.msra.mxu0 0
      %2223 = vmatprep.mubr.bf16.mxu0 0
      %2224 = vmatmul.mubr.bf16.gmra.mrb[0].mxu0 %v2183
      %v2225 = vpop.f32.mrb[0].mxu0
      %v2226 = vadd.f32 0.0, %v2225
      %v2227 = vpop.f32.mrb[0].mxu0
      %v2228 = vpop.f32.mrb[0].mxu0
      %v2229 = vadd.f32 0.0, %v2228
      %v2230 = vpop.f32.mrb[0].mxu0
      %2231 = vmatprep.mubr.bf16.mxu0 0
      %2232 = vmatmul.mubr.bf16.gmra.mrb[0].mxu0 %v2186
      %v2233 = vpop.f32.mrb[0].mxu0
      %v2234 = vadd.f32 0.0, %v2233
      %v2235 = vpop.f32.mrb[0].mxu0
      %v2236 = vpop.f32.mrb[0].mxu0
      %v2237 = vadd.f32 0.0, %v2236
      %v2238 = vpop.f32.mrb[0].mxu0
      %2239 = vmatprep.mubr.bf16.mxu0 0
      %2240 = vmatmul.mubr.bf16.gmra.mrb[0].mxu0 %v2189
      %v2241 = vpop.f32.mrb[0].mxu0
      %v2242 = vadd.f32 0.0, %v2241
      %v2243 = vpop.f32.mrb[0].mxu0
      %v2244 = vpop.f32.mrb[0].mxu0
      %v2245 = vadd.f32 0.0, %v2244
      %v2246 = vpop.f32.mrb[0].mxu0
      %2247 = vdwg.mxu0
      %v2248 = vlaneseq
      %v2249 = vshrl.u32 %v2248, 7
      %v2250 = vsub.s32 4, %v2249
      %v2251 = vrot.slane %v1204, %v2250
      %v2252 = vadd.f32 %v2226, %v2251
      %v2253 = vadd.f32 %v2229, %v2251
      %v2254 = vadd.f32 %v2234, %v2251
      %v2255 = vadd.f32 %v2237, %v2251
      %v2256 = vadd.f32 %v2242, %v2251
      %v2257 = vadd.f32 %v2245, %v2251
      %v2258 = vadd.f32 %v1198, %v2252
      %v2259 = vadd.f32 %v1199, %v2253
      %v2260 = vadd.f32 %v1200, %v2254
      %v2261 = vadd.f32 %v1201, %v2255
      %v2262 = vadd.f32 %v1202, %v2256
      %v2263 = vadd.f32 %v1203, %v2257
      %v2264 = vsel %vm1205, %v2258, 0.0
      %2265 = vadd.xlane.f32.xlu0 %v2264
      %v2266 = vpop.xlane.xlu0 %2265
      %v2267 = vsel %vm1205, %v2259, 0.0
      %2268 = vadd.xlane.f32.xlu0 %v2267
      %v2269 = vpop.xlane.xlu0 %2268
      %v2270 = vsel %vm1205, %v2260, 0.0
      %2271 = vadd.xlane.f32.xlu0 %v2270
      %v2272 = vpop.xlane.xlu0 %2271
      %v2273 = vsel %vm1205, %v2261, 0.0
      %2274 = vadd.xlane.f32.xlu0 %v2273
      %v2275 = vpop.xlane.xlu0 %2274
      %v2276 = vsel %vm1205, %v2262, 0.0
      %2277 = vadd.xlane.f32.xlu0 %v2276
      %v2278 = vpop.xlane.xlu0 %2277
      %v2279 = vsel %vm1205, %v2263, 0.0
      %2280 = vadd.xlane.f32.xlu0 %v2279
      %v2281 = vpop.xlane.xlu0 %2280
      %v2282 = vmul.f32 %v2266, %v1224
      %v2283 = vmul.f32 %v2269, %v1224
      %v2284 = vmul.f32 %v2272, %v1224
      %v2285 = vmul.f32 %v2275, %v1224
      %v2286 = vmul.f32 %v2278, %v1224
      %v2287 = vmul.f32 %v2281, %v1224
      %v2288 = vsub.f32 %v2258, %v2282
      %v2289 = vsub.f32 %v2259, %v2283
      %v2290 = vsub.f32 %v2260, %v2284
      %v2291 = vsub.f32 %v2261, %v2285
      %v2292 = vsub.f32 %v2262, %v2286
      %v2293 = vsub.f32 %v2263, %v2287
      %v2294 = vmul.f32 %v2288, %v2288
      %v2295 = vmul.f32 %v2289, %v2289
      %v2296 = vmul.f32 %v2290, %v2290
      %v2297 = vmul.f32 %v2291, %v2291
      %v2298 = vmul.f32 %v2292, %v2292
      %v2299 = vmul.f32 %v2293, %v2293
      %v2300 = vsel %vm1205, %v2294, 0.0
      %2301 = vadd.xlane.f32.xlu0 %v2300
      %v2302 = vpop.xlane.xlu0 %2301
      %v2303 = vsel %vm1205, %v2295, 0.0
      %2304 = vadd.xlane.f32.xlu0 %v2303
      %v2305 = vpop.xlane.xlu0 %2304
      %v2306 = vsel %vm1205, %v2296, 0.0
      %2307 = vadd.xlane.f32.xlu0 %v2306
      %v2308 = vpop.xlane.xlu0 %2307
      %v2309 = vsel %vm1205, %v2297, 0.0
      %2310 = vadd.xlane.f32.xlu0 %v2309
      %v2311 = vpop.xlane.xlu0 %2310
      %v2312 = vsel %vm1205, %v2298, 0.0
      %2313 = vadd.xlane.f32.xlu0 %v2312
      %v2314 = vpop.xlane.xlu0 %2313
      %v2315 = vsel %vm1205, %v2299, 0.0
      %2316 = vadd.xlane.f32.xlu0 %v2315
      %v2317 = vpop.xlane.xlu0 %2316
      %v2318 = vmul.f32 %v2302, %v1224
      %v2319 = vmul.f32 %v2305, %v1224
      %v2320 = vmul.f32 %v2308, %v1224
      %v2321 = vmul.f32 %v2311, %v1224
      %v2322 = vmul.f32 %v2314, %v1224
      %v2323 = vmul.f32 %v2317, %v1224
      %v2324 = vadd.f32 %v2318, 1e-05
      %v2325 = vadd.f32 %v2319, 1e-05
      %v2326 = vadd.f32 %v2320, 1e-05
      %v2327 = vadd.f32 %v2321, 1e-05
      %v2328 = vadd.f32 %v2322, 1e-05
      %v2329 = vadd.f32 %v2323, 1e-05
      %v2330 = vrsqrt.pop %v2324
      %v2331 = vrsqrt.pop %v2325
      %v2332 = vrsqrt.pop %v2326
      %v2333 = vrsqrt.pop %v2327
      %v2334 = vrsqrt.pop %v2328
      %v2335 = vrsqrt.pop %v2329
      %v2336 = vmul.f32 %v2288, %v2330
      %v2337 = vmul.f32 %v2289, %v2331
      %v2338 = vmul.f32 %v2290, %v2332
      %v2339 = vmul.f32 %v2291, %v2333
      %v2340 = vmul.f32 %v2292, %v2334
      %v2341 = vmul.f32 %v2293, %v2335
      %v2342 = vlaneseq
      %v2343 = vshrl.u32 %v2342, 7
      %v2344 = vsub.s32 2, %v2343
      %v2345 = vrot.slane %v1204, %v2344
      %v2346 = vmul.f32 %v2336, %v2345
      %v2347 = vmul.f32 %v2337, %v2345
      %v2348 = vmul.f32 %v2338, %v2345
      %v2349 = vmul.f32 %v2339, %v2345
      %v2350 = vmul.f32 %v2340, %v2345
      %v2351 = vmul.f32 %v2341, %v2345
      %v2352 = vlaneseq
      %v2353 = vshrl.u32 %v2352, 7
      %v2354 = vsub.s32 3, %v2353
      %v2355 = vrot.slane %v1204, %v2354
      %v2356 = vadd.f32 %v2346, %v2355
      %v2357 = vadd.f32 %v2347, %v2355
      %v2358 = vadd.f32 %v2348, %v2355
      %v2359 = vadd.f32 %v2349, %v2355
      %v2360 = vadd.f32 %v2350, %v2355
      %v2361 = vadd.f32 %v2351, %v2355
      %v2362 = vpack.c.bf16 %v2357, %v2356
      %v2363 = vpack.c.bf16 %v2359, %v2358
      %v2364 = vpack.c.bf16 %v2361, %v2360
      %v2365 = vld [vmem:[%s905] sm:$0xf]
      %v2366 = vld [vmem:[%s905 + $0x4] sm:$0xf]
      %v2367 = vld [vmem:[%s905 + $0x8] sm:$0xf]
      %v2368 = vld [vmem:[%s905 + $0xc] sm:$0xf]
      %v2369 = vld [vmem:[%s890] sm:$0x1]
      %v2371 = vlaneseq
      %v2372 = vshrl.u32 %v2371, 7
      %v2373 = vsub.s32 0, %v2372
      %v2374 = vrot.slane %v2369, %v2373
      %v2380 = vunpack.c.l.b16 %v2365
      %v2381 = vunpack.c.l.b16 %v2366
      %v2382 = vunpack.c.l.b16 %v2367
      %v2383 = vunpack.c.l.b16 %v2368
      %v2384 = vpack.c.b16 %v2381, %v2380
      %v2385 = vpack.c.b16 %v2383, %v2382
      %v2389 = vsel %vm1205, %v2362, 0
      %v2392 = vsel %vm1205, %v2363, 0
      %v2395 = vsel %vm1205, %v2364, 0
      %2397 = vmatprep.subr.bf16.mxu0 0
      %2398 = vmatpush1.bf16.msra.mxu0 %v2384
      %2399 = vmatprep.subr.bf16.mxu0 0
      %2400 = vmatpush1.bf16.msra.mxu0 %v2385
      %2401 = vmatprep.subr.bf16.mxu0 0
      %2402 = vmatpush1.bf16.msra.mxu0 0
      %2403 = vmatprep.subr.bf16.mxu0 0
      %2404 = vmatpush1.bf16.msra.mxu0 0
      %2405 = vmatprep.subr.bf16.mxu0 0
      %2406 = vmatpush1.bf16.msra.mxu0 0
      %2407 = vmatprep.subr.bf16.mxu0 0
      %2408 = vmatpush1.bf16.msra.mxu0 0
      %2409 = vmatprep.subr.bf16.mxu0 0
      %2410 = vmatpush1.bf16.msra.mxu0 0
      %2411 = vmatprep.subr.bf16.mxu0 0
      %2412 = vmatpush1.bf16.msra.mxu0 0
      %2413 = vmatprep.subr.bf16.mxu0 0
      %2414 = vmatpush1.bf16.msra.mxu0 0
      %2415 = vmatprep.subr.bf16.mxu0 0
      %2416 = vmatpush1.bf16.msra.mxu0 0
      %2417 = vmatprep.subr.bf16.mxu0 0
      %2418 = vmatpush1.bf16.msra.mxu0 0
      %2419 = vmatprep.subr.bf16.mxu0 0
      %2420 = vmatpush1.bf16.msra.mxu0 0
      %2421 = vmatprep.subr.bf16.mxu0 0
      %2422 = vmatpush1.bf16.msra.mxu0 0
      %2423 = vmatprep.subr.bf16.mxu0 0
      %2424 = vmatpush1.bf16.msra.mxu0 0
      %2425 = vmatprep.subr.bf16.mxu0 0
      %2426 = vmatpush1.bf16.msra.mxu0 0
      %2427 = vmatprep.subr.bf16.mxu0 0
      %2428 = vmatpush1.bf16.msra.mxu0 0
      %2429 = vmatprep.mubr.bf16.mxu0 0
      %2430 = vmatmul.mubr.bf16.gmra.mrb[0].mxu0 %v2389
      %v2431 = vpop.f32.mrb[0].mxu0
      %v2432 = vadd.f32 %v2374, %v2431
      %v2433 = vpop.f32.mrb[0].mxu0
      %v2434 = vpop.f32.mrb[0].mxu0
      %v2435 = vadd.f32 %v2374, %v2434
      %v2436 = vpop.f32.mrb[0].mxu0
      %2437 = vmatprep.mubr.bf16.mxu0 0
      %2438 = vmatmul.mubr.bf16.gmra.mrb[0].mxu0 %v2392
      %v2439 = vpop.f32.mrb[0].mxu0
      %v2440 = vadd.f32 %v2374, %v2439
      %v2441 = vpop.f32.mrb[0].mxu0
      %v2442 = vpop.f32.mrb[0].mxu0
      %v2443 = vadd.f32 %v2374, %v2442
      %v2444 = vpop.f32.mrb[0].mxu0
      %2445 = vmatprep.mubr.bf16.mxu0 0
      %2446 = vmatmul.mubr.bf16.gmra.mrb[0].mxu0 %v2395
      %v2447 = vpop.f32.mrb[0].mxu0
      %v2448 = vadd.f32 %v2374, %v2447
      %v2449 = vpop.f32.mrb[0].mxu0
      %v2450 = vpop.f32.mrb[0].mxu0
      %v2451 = vadd.f32 %v2374, %v2450
      %v2452 = vpop.f32.mrb[0].mxu0
      %2453 = vdwg.mxu0
      %v2454 = vmul.f32 %v2432, 0.5
      %v2455 = vmul.f32 %v2435, 0.5
      %v2456 = vmul.f32 %v2440, 0.5
      %v2457 = vmul.f32 %v2443, 0.5
      %v2458 = vmul.f32 %v2448, 0.5
      %v2459 = vmul.f32 %v2451, 0.5
      %v2460 = vmul.f32 %v2432, 0.044715
      %v2461 = vmul.f32 %v2435, 0.044715
      %v2462 = vmul.f32 %v2440, 0.044715
      %v2463 = vmul.f32 %v2443, 0.044715
      %v2464 = vmul.f32 %v2448, 0.044715
      %v2465 = vmul.f32 %v2451, 0.044715
      %v2466 = vmul.f32 %v2460, %v2432
      %v2467 = vmul.f32 %v2461, %v2435
      %v2468 = vmul.f32 %v2462, %v2440
      %v2469 = vmul.f32 %v2463, %v2443
      %v2470 = vmul.f32 %v2464, %v2448
      %v2471 = vmul.f32 %v2465, %v2451
      %v2472 = vmul.f32 %v2466, %v2432
      %v2473 = vmul.f32 %v2467, %v2435
      %v2474 = vmul.f32 %v2468, %v2440
      %v2475 = vmul.f32 %v2469, %v2443
      %v2476 = vmul.f32 %v2470, %v2448
      %v2477 = vmul.f32 %v2471, %v2451
      %v2478 = vadd.f32 %v2432, %v2472
      %v2479 = vadd.f32 %v2435, %v2473
      %v2480 = vadd.f32 %v2440, %v2474
      %v2481 = vadd.f32 %v2443, %v2475
      %v2482 = vadd.f32 %v2448, %v2476
      %v2483 = vadd.f32 %v2451, %v2477
      %v2484 = vmul.f32 %v2478, 0.7978846
      %v2485 = vmul.f32 %v2479, 0.7978846
      %v2486 = vmul.f32 %v2480, 0.7978846
      %v2487 = vmul.f32 %v2481, 0.7978846
      %v2488 = vmul.f32 %v2482, 0.7978846
      %v2489 = vmul.f32 %v2483, 0.7978846
      %v2490 = vtanh.pop %v2484
      %v2491 = vtanh.pop %v2485
      %v2492 = vtanh.pop %v2486
      %v2493 = vtanh.pop %v2487
      %v2494 = vtanh.pop %v2488
      %v2495 = vtanh.pop %v2489
      %v2496 = vadd.f32 %v2490, 1.0
      %v2497 = vadd.f32 %v2491, 1.0
      %v2498 = vadd.f32 %v2492, 1.0
      %v2499 = vadd.f32 %v2493, 1.0
      %v2500 = vadd.f32 %v2494, 1.0
      %v2501 = vadd.f32 %v2495, 1.0
      %v2502 = vmul.f32 %v2454, %v2496
      %v2503 = vmul.f32 %v2455, %v2497
      %v2504 = vmul.f32 %v2456, %v2498
      %v2505 = vmul.f32 %v2457, %v2499
      %v2506 = vmul.f32 %v2458, %v2500
      %v2507 = vmul.f32 %v2459, %v2501
      %v2508 = vpack.c.bf16 %v2503, %v2502
      %v2509 = vpack.c.bf16 %v2505, %v2504
      %v2510 = vpack.c.bf16 %v2507, %v2506
      %v2511 = vld [vmem:[%s910] sm:$0xf]
      %v2512 = vld [vmem:[%s910 + $0x4] sm:$0xf]
      %v2513 = vld [vmem:[%s910 + $0x8] sm:$0xf]
      %v2514 = vld [vmem:[%s910 + $0xc] sm:$0xf]
      %v2515 = vld [vmem:[%s910 + $0x10] sm:$0xf]
      %v2516 = vld [vmem:[%s910 + $0x14] sm:$0xf]
      %v2517 = vld [vmem:[%s910 + $0x18] sm:$0xf]
      %v2518 = vld [vmem:[%s910 + $0x1c] sm:$0xf]
      %v2519 = vld [vmem:[%s910 + $0x20] sm:$0xf]
      %v2520 = vld [vmem:[%s910 + $0x24] sm:$0xf]
      %v2521 = vld [vmem:[%s910 + $0x28] sm:$0xf]
      %v2522 = vld [vmem:[%s910 + $0x2c] sm:$0xf]
      %v2523 = vld [vmem:[%s910 + $0x30] sm:$0xf]
      %v2524 = vld [vmem:[%s910 + $0x34] sm:$0xf]
      %v2525 = vld [vmem:[%s910 + $0x38] sm:$0xf]
      %v2526 = vld [vmem:[%s910 + $0x3c] sm:$0xf]
      %v2543 = vunpack.c.l.b16 %v2511
      %v2544 = vunpack.c.l.b16 %v2512
      %v2545 = vunpack.c.l.b16 %v2513
      %v2546 = vunpack.c.l.b16 %v2514
      %v2547 = vunpack.c.l.b16 %v2515
      %v2548 = vunpack.c.l.b16 %v2516
      %v2549 = vunpack.c.l.b16 %v2517
      %v2550 = vunpack.c.l.b16 %v2518
      %v2551 = vunpack.c.l.b16 %v2519
      %v2552 = vunpack.c.l.b16 %v2520
      %v2553 = vunpack.c.l.b16 %v2521
      %v2554 = vunpack.c.l.b16 %v2522
      %v2555 = vunpack.c.l.b16 %v2523
      %v2556 = vunpack.c.l.b16 %v2524
      %v2557 = vunpack.c.l.b16 %v2525
      %v2558 = vunpack.c.l.b16 %v2526
      %v2559 = vpack.c.b16 %v2544, %v2543
      %v2560 = vpack.c.b16 %v2546, %v2545
      %v2561 = vpack.c.b16 %v2548, %v2547
      %v2562 = vpack.c.b16 %v2550, %v2549
      %v2563 = vpack.c.b16 %v2552, %v2551
      %v2564 = vpack.c.b16 %v2554, %v2553
      %v2565 = vpack.c.b16 %v2556, %v2555
      %v2566 = vpack.c.b16 %v2558, %v2557
      %2575 = vmatprep.subr.bf16.mxu0 0
      %2576 = vmatpush1.bf16.msra.mxu0 %v2559
      %2577 = vmatprep.subr.bf16.mxu0 0
      %2578 = vmatpush1.bf16.msra.mxu0 %v2560
      %2579 = vmatprep.subr.bf16.mxu0 0
      %2580 = vmatpush1.bf16.msra.mxu0 %v2561
      %2581 = vmatprep.subr.bf16.mxu0 0
      %2582 = vmatpush1.bf16.msra.mxu0 %v2562
      %2583 = vmatprep.subr.bf16.mxu0 0
      %2584 = vmatpush1.bf16.msra.mxu0 %v2563
      %2585 = vmatprep.subr.bf16.mxu0 0
      %2586 = vmatpush1.bf16.msra.mxu0 %v2564
      %2587 = vmatprep.subr.bf16.mxu0 0
      %2588 = vmatpush1.bf16.msra.mxu0 %v2565
      %2589 = vmatprep.subr.bf16.mxu0 0
      %2590 = vmatpush1.bf16.msra.mxu0 %v2566
      %2591 = vmatprep.subr.bf16.mxu0 0
      %2592 = vmatpush1.bf16.msra.mxu0 0
      %2593 = vmatprep.subr.bf16.mxu0 0
      %2594 = vmatpush1.bf16.msra.mxu0 0
      %2595 = vmatprep.subr.bf16.mxu0 0
      %2596 = vmatpush1.bf16.msra.mxu0 0
      %2597 = vmatprep.subr.bf16.mxu0 0
      %2598 = vmatpush1.bf16.msra.mxu0 0
      %2599 = vmatprep.subr.bf16.mxu0 0
      %2600 = vmatpush1.bf16.msra.mxu0 0
      %2601 = vmatprep.subr.bf16.mxu0 0
      %2602 = vmatpush1.bf16.msra.mxu0 0
      %2603 = vmatprep.subr.bf16.mxu0 0
      %2604 = vmatpush1.bf16.msra.mxu0 0
      %2605 = vmatprep.subr.bf16.mxu0 0
      %2606 = vmatpush1.bf16.msra.mxu0 0
      %2607 = vmatprep.mubr.bf16.mxu0 0
      %2608 = vmatmul.mubr.bf16.gmra.mrb[0].mxu0 %v2508
      %v2609 = vpop.f32.mrb[0].mxu0
      %v2610 = vadd.f32 0.0, %v2609
      %v2611 = vpop.f32.mrb[0].mxu0
      %v2612 = vpop.f32.mrb[0].mxu0
      %v2613 = vadd.f32 0.0, %v2612
      %v2614 = vpop.f32.mrb[0].mxu0
      %2615 = vmatprep.mubr.bf16.mxu0 0
      %2616 = vmatmul.mubr.bf16.gmra.mrb[0].mxu0 %v2509
      %v2617 = vpop.f32.mrb[0].mxu0
      %v2618 = vadd.f32 0.0, %v2617
      %v2619 = vpop.f32.mrb[0].mxu0
      %v2620 = vpop.f32.mrb[0].mxu0
      %v2621 = vadd.f32 0.0, %v2620
      %v2622 = vpop.f32.mrb[0].mxu0
      %2623 = vmatprep.mubr.bf16.mxu0 0
      %2624 = vmatmul.mubr.bf16.gmra.mrb[0].mxu0 %v2510
      %v2625 = vpop.f32.mrb[0].mxu0
      %v2626 = vadd.f32 0.0, %v2625
      %v2627 = vpop.f32.mrb[0].mxu0
      %v2628 = vpop.f32.mrb[0].mxu0
      %v2629 = vadd.f32 0.0, %v2628
      %v2630 = vpop.f32.mrb[0].mxu0
      %2631 = vdwg.mxu0
      %v2632 = vlaneseq
      %v2633 = vshrl.u32 %v2632, 7
      %v2634 = vsub.s32 5, %v2633
      %v2635 = vrot.slane %v1204, %v2634
      %v2636 = vadd.f32 %v2610, %v2635
      %v2637 = vadd.f32 %v2613, %v2635
      %v2638 = vadd.f32 %v2618, %v2635
      %v2639 = vadd.f32 %v2621, %v2635
      %v2640 = vadd.f32 %v2626, %v2635
      %v2641 = vadd.f32 %v2629, %v2635
      %v2642 = vadd.f32 %v2258, %v2636
      %v2643 = vadd.f32 %v2259, %v2637
      %v2644 = vadd.f32 %v2260, %v2638
      %v2645 = vadd.f32 %v2261, %v2639
      %v2646 = vadd.f32 %v2262, %v2640
      %v2647 = vadd.f32 %v2263, %v2641
      %2648 = vst.msk [vmem:[#allocation2] sm:$0xff] %vm1205, %v2642
      %2649 = vst.msk [vmem:[#allocation2 + $0x8] sm:$0xff] %vm1205, %v2643
      %2650 = vst.msk [vmem:[#allocation2 + $0x10] sm:$0xff] %vm1205, %v2644
      %2651 = vst.msk [vmem:[#allocation2 + $0x18] sm:$0xff] %vm1205, %v2645
      %2652 = vst.msk [vmem:[#allocation2 + $0x20] sm:$0xff] %vm1205, %v2646
      %2653 = vst.msk [vmem:[#allocation2 + $0x28] sm:$0xff] %vm1205, %v2647
      %p2654 = scmp.eq.s32.totalorder %s39, 1
      // Predicated region
      $region117: #{tpu_custom_call.1} parent=111 // pred_check
        %p2655 = pneg %p2654
      $region118: #{tpu_custom_call.1} parent=111 // pred_check_branch
        %2657 = sbr.rel (%p2655) target = $region120
      $region119: #{tpu_custom_call.1} parent=111 // pred_region
        %v2658 = vld [vmem:[%s19] sm:$0x1]
        %v2659 = vld [vmem:[%s20] sm:$0x1]
        %v2660 = vsel %vm1205, %v2643, 0.0
        %2661 = vadd.xlane.f32.xlu0 %v2660
        %v2662 = vpop.xlane.xlu0 %2661
        %v2663 = vsel %vm1205, %v2646, 0.0
        %2664 = vadd.xlane.f32.xlu0 %v2663
        %v2665 = vpop.xlane.xlu0 %2664
        %v2666 = vmul.f32 %v2662, %v1224
        %v2667 = vmul.f32 %v2665, %v1224
        %v2668 = vsub.f32 %v2643, %v2666
        %v2669 = vsub.f32 %v2646, %v2667
        %v2670 = vmul.f32 %v2668, %v2668
        %v2671 = vmul.f32 %v2669, %v2669
        %v2672 = vsel %vm1205, %v2670, 0.0
        %2673 = vadd.xlane.f32.xlu0 %v2672
        %v2674 = vpop.xlane.xlu0 %2673
        %v2675 = vsel %vm1205, %v2671, 0.0
        %2676 = vadd.xlane.f32.xlu0 %v2675
        %v2677 = vpop.xlane.xlu0 %2676
        %v2678 = vmul.f32 %v2674, %v1224
        %v2679 = vmul.f32 %v2677, %v1224
        %v2680 = vadd.f32 %v2678, 1e-05
        %v2681 = vadd.f32 %v2679, 1e-05
        %v2682 = vrsqrt.pop %v2680
        %v2683 = vrsqrt.pop %v2681
        %v2684 = vmul.f32 %v2668, %v2682
        %v2685 = vmul.f32 %v2669, %v2683
        %v2687 = vlaneseq
        %v2688 = vshrl.u32 %v2687, 7
        %v2689 = vsub.s32 0, %v2688
        %v2690 = vrot.slane %v2658, %v2689
        %v2692 = vmul.f32 %v2684, %v2690
        %v2693 = vmul.f32 %v2685, %v2690
        %v2695 = vlaneseq
        %v2696 = vshrl.u32 %v2695, 7
        %v2697 = vsub.s32 0, %v2696
        %v2698 = vrot.slane %v2659, %v2697
        %v2700 = vadd.f32 %v2692, %v2698
        %v2701 = vadd.f32 %v2693, %v2698
        %v2702 = vpack.c.bf16 %v2701, %v2700
        %v2703 = vld [vmem:[%s21] sm:$0xf]
        %v2704 = vld [vmem:[%s21 + $0x4] sm:$0xf]
        %v2705 = vld [vmem:[%s21 + $0x8] sm:$0xf]
        %v2706 = vld [vmem:[%s21 + $0xc] sm:$0xf]
        %v2707 = vld [vmem:[%s22] sm:$0x1]
        %v2709 = vlaneseq
        %v2710 = vshrl.u32 %v2709, 7
        %v2711 = vsub.s32 0, %v2710
        %v2712 = vrot.slane %v2707, %v2711
        %v2718 = vunpack.c.l.b16 %v2703
        %v2719 = vunpack.c.l.b16 %v2704
        %v2720 = vunpack.c.l.b16 %v2705
        %v2721 = vunpack.c.l.b16 %v2706
        %v2722 = vpack.c.b16 %v2719, %v2718
        %v2723 = vpack.c.b16 %v2721, %v2720
        %v2727 = vsel %vm1205, %v2702, 0
        %2729 = vmatprep.subr.bf16.mxu0 0
        %2730 = vmatpush1.bf16.msra.mxu0 %v2722
        %2731 = vmatprep.subr.bf16.mxu0 0
        %2732 = vmatpush1.bf16.msra.mxu0 %v2723
        %2733 = vmatprep.subr.bf16.mxu0 0
        %2734 = vmatpush1.bf16.msra.mxu0 0
        %2735 = vmatprep.subr.bf16.mxu0 0
        %2736 = vmatpush1.bf16.msra.mxu0 0
        %2737 = vmatprep.subr.bf16.mxu0 0
        %2738 = vmatpush1.bf16.msra.mxu0 0
        %2739 = vmatprep.subr.bf16.mxu0 0
        %2740 = vmatpush1.bf16.msra.mxu0 0
        %2741 = vmatprep.subr.bf16.mxu0 0
        %2742 = vmatpush1.bf16.msra.mxu0 0
        %2743 = vmatprep.subr.bf16.mxu0 0
        %2744 = vmatpush1.bf16.msra.mxu0 0
        %2745 = vmatprep.subr.bf16.mxu0 0
        %2746 = vmatpush1.bf16.msra.mxu0 0
        %2747 = vmatprep.subr.bf16.mxu0 0
        %2748 = vmatpush1.bf16.msra.mxu0 0
        %2749 = vmatprep.subr.bf16.mxu0 0
        %2750 = vmatpush1.bf16.msra.mxu0 0
        %2751 = vmatprep.subr.bf16.mxu0 0
        %2752 = vmatpush1.bf16.msra.mxu0 0
        %2753 = vmatprep.subr.bf16.mxu0 0
        %2754 = vmatpush1.bf16.msra.mxu0 0
        %2755 = vmatprep.subr.bf16.mxu0 0
        %2756 = vmatpush1.bf16.msra.mxu0 0
        %2757 = vmatprep.subr.bf16.mxu0 0
        %2758 = vmatpush1.bf16.msra.mxu0 0
        %2759 = vmatprep.subr.bf16.mxu0 0
        %2760 = vmatpush1.bf16.msra.mxu0 0
        %2761 = vmatprep.mubr.bf16.mxu0 0
        %2762 = vmatmul.mubr.bf16.gmra.mrb[0].mxu0 %v2727
        %v2763 = vpop.f32.mrb[0].mxu0
        %v2764 = vadd.f32 %v2712, %v2763
        %v2765 = vpop.f32.mrb[0].mxu0
        %v2766 = vpop.f32.mrb[0].mxu0
        %v2767 = vadd.f32 %v2712, %v2766
        %v2768 = vpop.f32.mrb[0].mxu0
        %2769 = vdwg.mxu0
        %v2770 = vtanh.pop %v2764
        %v2771 = vtanh.pop %v2767
        %vm2772 = vcmask 23552
        %2773 = vst.msk [vmem:[%s915] sm:$0xff] %vm2772, %v2770
        %2774 = vst.msk [vmem:[%s915 + $0x8] sm:$0xff] %vm2772, %v2771
      $region120: #{tpu_custom_call.1} parent=111 // pred_fallthru
        _
      %s2775 = smul.u32 2, %s38
      %p2776 = scmp.lt.s32.totalorder %s2775, 1
      %s2777 = scalar_select %p2776, %s2775, 1
      %s2778 = smul.addr %s2777, 8
      %s2779 = scalar_lea.vmem %s23, %s2778
      // Predicated region
      $region121: #{tpu_custom_call.1} parent=111 // pred_check
        %p2780 = pneg %p602
      $region122: #{tpu_custom_call.1} parent=111 // pred_check_branch
        %2782 = sbr.rel (%p2780) target = $region124
      $region123: #{tpu_custom_call.1} parent=111 // pred_region
        %s2783 = smul.u32 2, %s38
      $region124: #{tpu_custom_call.1} parent=111 // pred_fallthru
        _
      // Predicated region
      $region125: #{tpu_custom_call.1} parent=111 // pred_check
        %p2784 = pneg %p602
      $region126: #{tpu_custom_call.1} parent=111 // pred_check_branch
        %2786 = sbr.rel (%p2784) target = $region128
      $region127: #{tpu_custom_call.1} parent=111 // pred_region
        %s2787 = smul.u32 2, %s38
        %p2788 = scmp.lt.s32.totalorder %s2787, 1
        %s2789 = scalar_select %p2788, %s2787, 1
        %s2790 = smul.addr %s2789, 8
        %s2791 = scalar_lea.vmem %s23, %s2790
      $region128: #{tpu_custom_call.1} parent=111 // pred_fallthru
        _
    $region112: #{tpu_custom_call.1} parent=5 // pred_fallthru
      _
    %p2792 = scmp.le.s32.totalorder 2, %s29
    // Predicated region
    $region129: #{tpu_custom_call.1} parent=5 // pred_check
      %p2793 = pneg %p2792
    $region130: #{tpu_custom_call.1} parent=5 // pred_check_branch
      %2795 = sbr.rel (%p2793) target = $region132
    $region131: #{tpu_custom_call.1} parent=5 // pred_region
      %s2796 = ssub.s32 %s29, 2
    $region132: #{tpu_custom_call.1} parent=5 // pred_fallthru
      _
  $region6: #{tpu_custom_call.1} parent=0 // loop_footer
    %s33 = sadd.s32 1, %s29
  $region7: #{tpu_custom_call.1} parent=0 // loop_footer_branch
    %28 = sbr.rel target = $region3
  $region8: #{tpu_custom_call.1} parent=0 // loop_exit
    _

</llo_original>
